<compile_context>
chip_gen: v7x
topology: tpu7x:2x2x1
jax: 0.10.0
libtpu: 0.0.40
codegen_flags: <defaults>
</compile_context>

<pallas_src>
import functools
import math

import jax
import jax.numpy as jnp
import numpy as np
from jax.experimental import pallas as pl
from jax.experimental.pallas import tpu as pltpu


# ----------------------------------------------------------------------------
# Fused self-attention kernel: B samples per grid step, channel-major layout
# (token axis on lanes; all matmul results, LN/softmax/GELU element-wise work
# and the output stores are lane-dense).
# ----------------------------------------------------------------------------
def _erf_poly(z):
    """erf(z) via Abramowitz & Stegun 7.1.26 (|error| < 1.5e-7); only uses
    exp / mul / add / select so it lowers cleanly on Mosaic."""
    a1, a2, a3, a4, a5 = (0.254829592, -0.284496736, 1.421413741,
                          -1.453152027, 1.061405429)
    pc = 0.3275911
    sgn = jnp.where(z >= 0.0, 1.0, -1.0)
    az = jnp.abs(z)
    t = 1.0 / (1.0 + pc * az)
    poly = ((((a5 * t + a4) * t + a3) * t + a2) * t + a1) * t
    return sgn * (1.0 - poly * jnp.exp(-az * az))


def _attn_kernel(x_ref, wqkv_ref, wrest_ref, vec_ref, o_ref, *, num_heads):
    """x_ref:    (B, C, S)   tokens, channel-major (token axis on lanes)
    wqkv_ref: (3C, C)     [Wq*scale; Wk; Wv]        (PyTorch (out, in) layout)
    wrest_ref:(3, C, C)   [Wo, Wff1, Wff2]
    vec_ref:  (C, 16)     columns: ln1_g, ln1_b, bq*scale, bk, bv, bo,
                                   ln2_g, ln2_b, bff1, bff2, 0...
    o_ref:    (B, C, S)
    """
    B, C, S = x_ref.shape
    hd = C // num_heads

    def vcol(i):                                   # (C, 1) broadcast column
        return vec_ref[:, i:i + 1]

    def layernorm(h, g, b):
        # LayerNorm over the channel (sublane) axis, i.e. per token column.
        mean = jnp.mean(h, axis=0, keepdims=True)
        var = jnp.mean(h * h, axis=0, keepdims=True) - mean * mean
        var = jnp.maximum(var, 0.0)                # guard one-pass cancellation
        return (h - mean) * jax.lax.rsqrt(var + 1e-5) * g + b

    def gelu(h):                                   # exact (erf) GELU
        return 0.5 * h * (1.0 + _erf_poly(h * 0.7071067811865476))

    # Merge the B samples into one lane-dense (C, B*S) slab (VMEM-local copy).
    if B == 1:
        x_all = x_ref[0]
    else:
        x_all = jnp.concatenate([x_ref[b] for b in range(B)], axis=1)

    x_ln = layernorm(x_all, vcol(0), vcol(1))

    # Fused QKV projection: one (3C, C) @ (C, B*S) matmul.
    qkv = jnp.dot(wqkv_ref[...], x_ln, preferred_element_type=jnp.float32)
    q = qkv[0:C] + vcol(2)          # Wq / bq already pre-scaled by 1/sqrt(hd)
    k = qkv[C:2 * C] + vcol(3)
    v = qkv[2 * C:3 * C] + vcol(4)

    wo = wrest_ref[0]                                        # (C, C)
    wo_heads = [wo[:, h * hd:(h + 1) * hd] for h in range(num_heads)]

    # Attention is per sample: loop over B (and heads) for the (S, S) part.
    attn_cols = []
    for b in range(B):
        lo = b * S
        acc = None
        for h in range(num_heads):
            r0 = h * hd
            qh = q[r0:r0 + hd, lo:lo + S]                    # (hd, S) pre-scaled
            kh = k[r0:r0 + hd, lo:lo + S]
            vh = v[r0:r0 + hd, lo:lo + S]
            # scores with keys on sublanes, queries on lanes: s[j, i] = k_j . q_i
            s = jax.lax.dot_general(kh, qh, (((0,), (0,)), ((), ())),
                                    preferred_element_type=jnp.float32)  # (S, S)
            s = s - jnp.max(s, axis=0, keepdims=True)        # per-query max (1, S)
            p = jnp.exp(s)
            inv_l = 1.0 / jnp.sum(p, axis=0, keepdims=True)  # (1, S), O(S) divide
            # PV on unnormalised p, then scale only the (hd, S) head output.
            oh = jnp.dot(vh, p, preferred_element_type=jnp.float32) * inv_l
            # Output projection fused per head: no head concatenation.
            contrib = jnp.dot(wo_heads[h], oh,
                              preferred_element_type=jnp.float32)        # (C, S)
            acc = contrib if acc is None else acc + contrib
        attn_cols.append(acc)
    attn = attn_cols[0] if B == 1 else jnp.concatenate(attn_cols, axis=1)

    # Residual #1 (Wo bias applied once to the merged slab).
    h1 = attn + vcol(5) + x_all                                          # (C, B*S)

    # Feed-forward block (LN -> Linear -> GELU -> Linear) + residual #2,
    # all on the merged (C, B*S) slab.
    f = layernorm(h1, vcol(6), vcol(7))
    f = jnp.dot(wrest_ref[1], f, preferred_element_type=jnp.float32) + vcol(8)
    f = gelu(f)
    f = jnp.dot(wrest_ref[2], f, preferred_element_type=jnp.float32) + vcol(9)
    out = f + h1

    if B == 1:
        o_ref[0] = out
    else:
        for b in range(B):
            o_ref[b] = out[:, b * S:(b + 1) * S]             # lane-dense stores


def _choose_block_batch(n):
    """Largest sub-batch that (a) divides N, (b) keeps >= 2 grid steps when
    N >= 2 (so both v7x TensorCores get work), (c) caps the merged slab."""
    if n <= 1:
        return 1
    for b in (8, 4, 2, 1):
        if n % b == 0 and n // b >= 2:
            return b
    return 1


def self_attention_forward(params, x, *, num_heads=2, block_batch=None):
    """x: (N, C, size, size) float32 -> (N, C, size, size).
    Matches PyTorch SelfAttention.forward (2 heads, batch_first MHA)."""
    N, C, H, W = x.shape
    S = H * W
    assert C % num_heads == 0
    B = _choose_block_batch(N) if block_batch is None else block_batch
    assert N % B == 0
    G = N // B

    x_cs = x.reshape(N, C, S)                     # free reshape, no transpose
    out = pl.pallas_call(
        functools.partial(_attn_kernel, num_heads=num_heads),
        out_shape=jax.ShapeDtypeStruct((N, C, S), jnp.float32),
        grid=(G,),
        in_specs=[
            pl.BlockSpec((B, C, S), lambda g: (g, 0, 0)),
            pl.BlockSpec((3 * C, C), lambda g: (0, 0)),
            pl.BlockSpec((3, C, C), lambda g: (0, 0, 0)),
            pl.BlockSpec((C, 16), lambda g: (0, 0)),
        ],
        out_specs=pl.BlockSpec((B, C, S), lambda g: (g, 0, 0)),
        compiler_params=pltpu.CompilerParams(
            dimension_semantics=("parallel",)),
    )(x_cs, params["w_qkv"], params["w_rest"], params["v_tile"])
    return out.reshape(N, C, H, W)


# ----------------------------------------------------------------------------
# Parameters (deterministic) + packed forms consumed by the kernel.
# ----------------------------------------------------------------------------
def init_params(key, channels, num_heads=2):
    ks = jax.random.split(key, 16)

    def mat(k):
        return (1.0 / math.sqrt(channels)) * jax.random.normal(
            k, (channels, channels), jnp.float32)

    def vec(k, scale=0.05):
        return scale * jax.random.normal(k, (channels,), jnp.float32)

    p = {
        "wq": mat(ks[0]), "wk": mat(ks[1]), "wv": mat(ks[2]), "wo": mat(ks[3]),
        "wf1": mat(ks[4]), "wf2": mat(ks[5]),
        "bq": vec(ks[6]), "bk": vec(ks[7]), "bv": vec(ks[8]), "bo": vec(ks[9]),
        "bf1": vec(ks[10]), "bf2": vec(ks[11]),
        "ln1_g": 1.0 + 0.1 * jax.random.normal(ks[12], (channels,), jnp.float32),
        "ln1_b": vec(ks[13]),
        "ln2_g": 1.0 + 0.1 * jax.random.normal(ks[14], (channels,), jnp.float32),
        "ln2_b": vec(ks[15]),
    }
    hd = channels // num_heads
    scale = 1.0 / math.sqrt(hd)
    # Fused QKV weight with the 1/sqrt(hd) attention scale baked into Wq / bq.
    p["w_qkv"] = jnp.concatenate(
        [p["wq"] * scale, p["wk"], p["wv"]], axis=0)                   # (3C, C)
    p["w_rest"] = jnp.stack([p["wo"], p["wf1"], p["wf2"]])             # (3, C, C)
    # All vectors in a single (C, 16) lane tile (one DMA, cheap splats).
    vt = jnp.stack(
        [p["ln1_g"], p["ln1_b"], p["bq"] * scale, p["bk"], p["bv"], p["bo"],
         p["ln2_g"], p["ln2_b"], p["bf1"], p["bf2"]], axis=1)          # (C, 10)
    p["v_tile"] = jnp.pad(vt, ((0, 0), (0, 16 - vt.shape[1])))         # (C, 16)
    return p


# ----------------------------------------------------------------------------
# Pure-JAX reference (PyTorch-faithful, token-major) for a numerical check.
# ----------------------------------------------------------------------------
def ref_forward(params, x, *, num_heads=2):
    N, C, H, W = x.shape
    S = H * W
    t = jnp.transpose(x.reshape(N, C, S), (0, 2, 1))           # (N, S, C)

    def ln(h, g, b):
        mean = jnp.mean(h, axis=-1, keepdims=True)
        var = jnp.mean((h - mean) ** 2, axis=-1, keepdims=True)
        return (h - mean) * jax.lax.rsqrt(var + 1e-5) * g + b

    x_ln = ln(t, params["ln1_g"], params["ln1_b"])
    q = x_ln @ params["wq"].T + params["bq"]
    k = x_ln @ params["wk"].T + params["bk"]
    v = x_ln @ params["wv"].T + params["bv"]
    hd = C // num_heads
    q = q.reshape(N, S, num_heads, hd).transpose(0, 2, 1, 3)
    k = k.reshape(N, S, num_heads, hd).transpose(0, 2, 1, 3)
    v = v.reshape(N, S, num_heads, hd).transpose(0, 2, 1, 3)
    scores = jnp.einsum("nhqd,nhkd->nhqk", q, k) / math.sqrt(hd)
    p = jax.nn.softmax(scores, axis=-1)
    o = jnp.einsum("nhqk,nhkd->nhqd", p, v)
    o = o.transpose(0, 2, 1, 3).reshape(N, S, C)
    attn = o @ params["wo"].T + params["bo"]
    av = attn + t
    f = ln(av, params["ln2_g"], params["ln2_b"])
    f = f @ params["wf1"].T + params["bf1"]
    f = 0.5 * f * (1.0 + jax.lax.erf(f * 0.7071067811865476))
    f = f @ params["wf2"].T + params["bf2"]
    out = f + av
    return jnp.transpose(out, (0, 2, 1)).reshape(N, C, H, W)


if __name__ == "__main__":
    # seq len S = 256 (lane-dense), 2 heads -> hd = 8 (sublane-aligned),
    # N=4 -> sub-batch B=2, grid=(2,) so both v7x TensorCores get a block.
    N, channels, size = 4, 16, 16
    key = jax.random.PRNGKey(0)
    k_x, k_p = jax.random.split(key)
    x = jax.random.normal(k_x, (N, channels, size, size), jnp.float32)
    params = init_params(k_p, channels)

    fwd = jax.jit(self_attention_forward)
    out = jax.block_until_ready(fwd(params, x))
    assert out.shape == (N, channels, size, size), out.shape

    ref = jax.block_until_ready(ref_forward(params, x))
    np.testing.assert_allclose(np.asarray(out), np.asarray(ref),
                               rtol=2e-4, atol=2e-4)
    print("KERNEL_OK")
</pallas_src>

<mosaic_0001>
module attributes {stable_mosaic.version = 11 : i64} {
  func.func @_attn_kernel(%arg0: i32, %arg1: memref<2x16x256xf32, #tpu.memory_space<vmem>>, %arg2: memref<48x16xf32, #tpu.memory_space<vmem>>, %arg3: memref<3x16x16xf32, #tpu.memory_space<vmem>>, %arg4: memref<16x16xf32, #tpu.memory_space<vmem>>, %arg5: memref<2x16x256xf32, #tpu.memory_space<vmem>>) attributes {dimension_semantics = [#tpu.dimension_semantics<parallel>], iteration_bounds = array<i64: 2>, scalar_prefetch = 0 : i64, scratch_operands = 0 : i64, tpu.core_type = #tpu.core_type<tc>, window_params = [{transform_indices = @transform_0, window_bounds = array<i64: 2, 16, 256>}, {pipeline_mode = #tpu.pipeline_mode<synchronous>, transform_indices = @transform_1, window_bounds = array<i64: 48, 16>}, {pipeline_mode = #tpu.pipeline_mode<synchronous>, transform_indices = @transform_2, window_bounds = array<i64: 3, 16, 16>}, {pipeline_mode = #tpu.pipeline_mode<synchronous>, transform_indices = @transform_3, window_bounds = array<i64: 16, 16>}, {transform_indices = @transform_4, window_bounds = array<i64: 2, 16, 256>}]} {
    %c0 = arith.constant 0 : index
    %c0_0 = arith.constant 0 : index
    %c0_1 = arith.constant 0 : index
    %0 = vector.load %arg1[%c0, %c0_0, %c0_1] : memref<2x16x256xf32, #tpu.memory_space<vmem>>, vector<1x16x256xf32>
    %1 = vector.shape_cast %0 : vector<1x16x256xf32> to vector<16x256xf32>
    %c1 = arith.constant 1 : index
    %c0_2 = arith.constant 0 : index
    %c0_3 = arith.constant 0 : index
    %2 = vector.load %arg1[%c1, %c0_2, %c0_3] : memref<2x16x256xf32, #tpu.memory_space<vmem>>, vector<1x16x256xf32>
    %3 = vector.shape_cast %2 : vector<1x16x256xf32> to vector<16x256xf32>
    %4 = tpu.concatenate %1, %3 in 1 : vector<16x256xf32>, vector<16x256xf32> -> vector<16x512xf32>
    %c0_4 = arith.constant 0 : index
    %c0_5 = arith.constant 0 : index
    %5 = vector.load %arg4[%c0_4, %c0_5] : memref<16x16xf32, #tpu.memory_space<vmem>>, vector<16x1xf32>
    %c0_6 = arith.constant 0 : index
    %c1_7 = arith.constant 1 : index
    %6 = vector.load %arg4[%c0_6, %c1_7] : memref<16x16xf32, #tpu.memory_space<vmem>>, vector<16x1xf32>
    %cst = arith.constant dense<0.000000e+00> : vector<512xf32>
    %7 = vector.multi_reduction <add>, %4, %cst [0] : vector<16x512xf32> to vector<512xf32>
    %8 = vector.shape_cast %7 : vector<512xf32> to vector<1x512xf32>
    %cst_8 = arith.constant 1.600000e+01 : f32
    %9 = vector.broadcast %cst_8 : f32 to vector<1x512xf32>
    %10 = arith.divf %8, %9 : vector<1x512xf32>
    %11 = arith.mulf %4, %4 : vector<16x512xf32>
    %cst_9 = arith.constant dense<0.000000e+00> : vector<512xf32>
    %12 = vector.multi_reduction <add>, %11, %cst_9 [0] : vector<16x512xf32> to vector<512xf32>
    %13 = vector.shape_cast %12 : vector<512xf32> to vector<1x512xf32>
    %cst_10 = arith.constant 1.600000e+01 : f32
    %14 = vector.broadcast %cst_10 : f32 to vector<1x512xf32>
    %15 = arith.divf %13, %14 : vector<1x512xf32>
    %16 = arith.mulf %10, %10 : vector<1x512xf32>
    %17 = arith.subf %15, %16 : vector<1x512xf32>
    %cst_11 = arith.constant 0.000000e+00 : f32
    %18 = vector.broadcast %cst_11 : f32 to vector<1x512xf32>
    %19 = arith.maximumf %17, %18 : vector<1x512xf32>
    %20 = vector.broadcast %10 : vector<1x512xf32> to vector<16x512xf32>
    %21 = arith.subf %4, %20 : vector<16x512xf32>
    %cst_12 = arith.constant 9.99999974E-6 : f32
    %22 = vector.broadcast %cst_12 : f32 to vector<1x512xf32>
    %23 = arith.addf %19, %22 : vector<1x512xf32>
    %24 = math.rsqrt %23 : vector<1x512xf32>
    %25 = vector.broadcast %24 : vector<1x512xf32> to vector<16x512xf32>
    %26 = arith.mulf %21, %25 : vector<16x512xf32>
    %27 = vector.broadcast %5 : vector<16x1xf32> to vector<16x512xf32>
    %28 = arith.mulf %26, %27 : vector<16x512xf32>
    %29 = vector.broadcast %6 : vector<16x1xf32> to vector<16x512xf32>
    %30 = arith.addf %28, %29 : vector<16x512xf32>
    %c0_13 = arith.constant 0 : index
    %c0_14 = arith.constant 0 : index
    %31 = vector.load %arg2[%c0_13, %c0_14] : memref<48x16xf32, #tpu.memory_space<vmem>>, vector<48x16xf32>
    %cst_15 = arith.constant dense<0.000000e+00> : vector<48x512xf32>
    %32 = tpu.matmul %31, %30, %cst_15 {dimension_numbers = #tpu.dot_dimension_numbers<[1], [0], [0], [1], [0, 0, 1, 1], [], []>} : vector<48x16xf32>, vector<16x512xf32>, vector<48x512xf32> -> vector<48x512xf32>
    %33 = vector.extract_strided_slice %32 {offsets = [0, 0], sizes = [16, 512], strides = [1, 1]} : vector<48x512xf32> to vector<16x512xf32>
    %c0_16 = arith.constant 0 : index
    %c2 = arith.constant 2 : index
    %34 = vector.load %arg4[%c0_16, %c2] : memref<16x16xf32, #tpu.memory_space<vmem>>, vector<16x1xf32>
    %35 = vector.broadcast %34 : vector<16x1xf32> to vector<16x512xf32>
    %36 = arith.addf %33, %35 : vector<16x512xf32>
    %37 = vector.extract_strided_slice %32 {offsets = [16, 0], sizes = [16, 512], strides = [1, 1]} : vector<48x512xf32> to vector<16x512xf32>
    %c0_17 = arith.constant 0 : index
    %c3 = arith.constant 3 : index
    %38 = vector.load %arg4[%c0_17, %c3] : memref<16x16xf32, #tpu.memory_space<vmem>>, vector<16x1xf32>
    %39 = vector.broadcast %38 : vector<16x1xf32> to vector<16x512xf32>
    %40 = arith.addf %37, %39 : vector<16x512xf32>
    %41 = vector.extract_strided_slice %32 {offsets = [32, 0], sizes = [16, 512], strides = [1, 1]} : vector<48x512xf32> to vector<16x512xf32>
    %c0_18 = arith.constant 0 : index
    %c4 = arith.constant 4 : index
    %42 = vector.load %arg4[%c0_18, %c4] : memref<16x16xf32, #tpu.memory_space<vmem>>, vector<16x1xf32>
    %43 = vector.broadcast %42 : vector<16x1xf32> to vector<16x512xf32>
    %44 = arith.addf %41, %43 : vector<16x512xf32>
    %c0_19 = arith.constant 0 : index
    %c0_20 = arith.constant 0 : index
    %c0_21 = arith.constant 0 : index
    %45 = vector.load %arg3[%c0_19, %c0_20, %c0_21] : memref<3x16x16xf32, #tpu.memory_space<vmem>>, vector<1x16x16xf32>
    %46 = vector.shape_cast %45 : vector<1x16x16xf32> to vector<16x16xf32>
    %47 = vector.extract_strided_slice %46 {offsets = [0, 0], sizes = [16, 8], strides = [1, 1]} : vector<16x16xf32> to vector<16x8xf32>
    %48 = vector.extract_strided_slice %46 {offsets = [0, 8], sizes = [16, 8], strides = [1, 1]} : vector<16x16xf32> to vector<16x8xf32>
    %49 = vector.extract_strided_slice %36 {offsets = [0, 0], sizes = [8, 256], strides = [1, 1]} : vector<16x512xf32> to vector<8x256xf32>
    %50 = vector.extract_strided_slice %40 {offsets = [0, 0], sizes = [8, 256], strides = [1, 1]} : vector<16x512xf32> to vector<8x256xf32>
    %51 = vector.extract_strided_slice %44 {offsets = [0, 0], sizes = [8, 256], strides = [1, 1]} : vector<16x512xf32> to vector<8x256xf32>
    %cst_22 = arith.constant dense<0.000000e+00> : vector<256x256xf32>
    %52 = tpu.matmul %50, %49, %cst_22 {dimension_numbers = #tpu.dot_dimension_numbers<[0], [0], [1], [1], [0, 1, 1, 1], [], []>} : vector<8x256xf32>, vector<8x256xf32>, vector<256x256xf32> -> vector<256x256xf32>
    %cst_23 = arith.constant dense<0xFF800000> : vector<256xf32>
    %53 = vector.multi_reduction <maximumf>, %52, %cst_23 [0] : vector<256x256xf32> to vector<256xf32>
    %54 = vector.shape_cast %53 : vector<256xf32> to vector<1x256xf32>
    %55 = vector.broadcast %54 : vector<1x256xf32> to vector<256x256xf32>
    %56 = arith.subf %52, %55 : vector<256x256xf32>
    %57 = math.exp %56 : vector<256x256xf32>
    %cst_24 = arith.constant dense<0.000000e+00> : vector<256xf32>
    %58 = vector.multi_reduction <add>, %57, %cst_24 [0] : vector<256x256xf32> to vector<256xf32>
    %59 = vector.shape_cast %58 : vector<256xf32> to vector<1x256xf32>
    %cst_25 = arith.constant 1.000000e+00 : f32
    %60 = vector.broadcast %cst_25 : f32 to vector<1x256xf32>
    %61 = arith.divf %60, %59 : vector<1x256xf32>
    %cst_26 = arith.constant dense<0.000000e+00> : vector<8x256xf32>
    %62 = tpu.matmul %51, %57, %cst_26 {dimension_numbers = #tpu.dot_dimension_numbers<[1], [0], [0], [1], [0, 0, 1, 1], [], []>} : vector<8x256xf32>, vector<256x256xf32>, vector<8x256xf32> -> vector<8x256xf32>
    %63 = vector.broadcast %61 : vector<1x256xf32> to vector<8x256xf32>
    %64 = arith.mulf %62, %63 : vector<8x256xf32>
    %cst_27 = arith.constant dense<0.000000e+00> : vector<16x256xf32>
    %65 = tpu.matmul %47, %64, %cst_27 {dimension_numbers = #tpu.dot_dimension_numbers<[1], [0], [0], [1], [0, 0, 1, 1], [], []>} : vector<16x8xf32>, vector<8x256xf32>, vector<16x256xf32> -> vector<16x256xf32>
    %66 = vector.extract_strided_slice %36 {offsets = [8, 0], sizes = [8, 256], strides = [1, 1]} : vector<16x512xf32> to vector<8x256xf32>
    %67 = vector.extract_strided_slice %40 {offsets = [8, 0], sizes = [8, 256], strides = [1, 1]} : vector<16x512xf32> to vector<8x256xf32>
    %68 = vector.extract_strided_slice %44 {offsets = [8, 0], sizes = [8, 256], strides = [1, 1]} : vector<16x512xf32> to vector<8x256xf32>
    %cst_28 = arith.constant dense<0.000000e+00> : vector<256x256xf32>
    %69 = tpu.matmul %67, %66, %cst_28 {dimension_numbers = #tpu.dot_dimension_numbers<[0], [0], [1], [1], [0, 1, 1, 1], [], []>} : vector<8x256xf32>, vector<8x256xf32>, vector<256x256xf32> -> vector<256x256xf32>
    %cst_29 = arith.constant dense<0xFF800000> : vector<256xf32>
    %70 = vector.multi_reduction <maximumf>, %69, %cst_29 [0] : vector<256x256xf32> to vector<256xf32>
    %71 = vector.shape_cast %70 : vector<256xf32> to vector<1x256xf32>
    %72 = vector.broadcast %71 : vector<1x256xf32> to vector<256x256xf32>
    %73 = arith.subf %69, %72 : vector<256x256xf32>
    %74 = math.exp %73 : vector<256x256xf32>
    %cst_30 = arith.constant dense<0.000000e+00> : vector<256xf32>
    %75 = vector.multi_reduction <add>, %74, %cst_30 [0] : vector<256x256xf32> to vector<256xf32>
    %76 = vector.shape_cast %75 : vector<256xf32> to vector<1x256xf32>
    %cst_31 = arith.constant 1.000000e+00 : f32
    %77 = vector.broadcast %cst_31 : f32 to vector<1x256xf32>
    %78 = arith.divf %77, %76 : vector<1x256xf32>
    %cst_32 = arith.constant dense<0.000000e+00> : vector<8x256xf32>
    %79 = tpu.matmul %68, %74, %cst_32 {dimension_numbers = #tpu.dot_dimension_numbers<[1], [0], [0], [1], [0, 0, 1, 1], [], []>} : vector<8x256xf32>, vector<256x256xf32>, vector<8x256xf32> -> vector<8x256xf32>
    %80 = vector.broadcast %78 : vector<1x256xf32> to vector<8x256xf32>
    %81 = arith.mulf %79, %80 : vector<8x256xf32>
    %cst_33 = arith.constant dense<0.000000e+00> : vector<16x256xf32>
    %82 = tpu.matmul %48, %81, %cst_33 {dimension_numbers = #tpu.dot_dimension_numbers<[1], [0], [0], [1], [0, 0, 1, 1], [], []>} : vector<16x8xf32>, vector<8x256xf32>, vector<16x256xf32> -> vector<16x256xf32>
    %83 = arith.addf %65, %82 : vector<16x256xf32>
    %84 = vector.extract_strided_slice %36 {offsets = [0, 256], sizes = [8, 256], strides = [1, 1]} : vector<16x512xf32> to vector<8x256xf32>
    %85 = vector.extract_strided_slice %40 {offsets = [0, 256], sizes = [8, 256], strides = [1, 1]} : vector<16x512xf32> to vector<8x256xf32>
    %86 = vector.extract_strided_slice %44 {offsets = [0, 256], sizes = [8, 256], strides = [1, 1]} : vector<16x512xf32> to vector<8x256xf32>
    %cst_34 = arith.constant dense<0.000000e+00> : vector<256x256xf32>
    %87 = tpu.matmul %85, %84, %cst_34 {dimension_numbers = #tpu.dot_dimension_numbers<[0], [0], [1], [1], [0, 1, 1, 1], [], []>} : vector<8x256xf32>, vector<8x256xf32>, vector<256x256xf32> -> vector<256x256xf32>
    %cst_35 = arith.constant dense<0xFF800000> : vector<256xf32>
    %88 = vector.multi_reduction <maximumf>, %87, %cst_35 [0] : vector<256x256xf32> to vector<256xf32>
    %89 = vector.shape_cast %88 : vector<256xf32> to vector<1x256xf32>
    %90 = vector.broadcast %89 : vector<1x256xf32> to vector<256x256xf32>
    %91 = arith.subf %87, %90 : vector<256x256xf32>
    %92 = math.exp %91 : vector<256x256xf32>
    %cst_36 = arith.constant dense<0.000000e+00> : vector<256xf32>
    %93 = vector.multi_reduction <add>, %92, %cst_36 [0] : vector<256x256xf32> to vector<256xf32>
    %94 = vector.shape_cast %93 : vector<256xf32> to vector<1x256xf32>
    %cst_37 = arith.constant 1.000000e+00 : f32
    %95 = vector.broadcast %cst_37 : f32 to vector<1x256xf32>
    %96 = arith.divf %95, %94 : vector<1x256xf32>
    %cst_38 = arith.constant dense<0.000000e+00> : vector<8x256xf32>
    %97 = tpu.matmul %86, %92, %cst_38 {dimension_numbers = #tpu.dot_dimension_numbers<[1], [0], [0], [1], [0, 0, 1, 1], [], []>} : vector<8x256xf32>, vector<256x256xf32>, vector<8x256xf32> -> vector<8x256xf32>
    %98 = vector.broadcast %96 : vector<1x256xf32> to vector<8x256xf32>
    %99 = arith.mulf %97, %98 : vector<8x256xf32>
    %cst_39 = arith.constant dense<0.000000e+00> : vector<16x256xf32>
    %100 = tpu.matmul %47, %99, %cst_39 {dimension_numbers = #tpu.dot_dimension_numbers<[1], [0], [0], [1], [0, 0, 1, 1], [], []>} : vector<16x8xf32>, vector<8x256xf32>, vector<16x256xf32> -> vector<16x256xf32>
    %101 = vector.extract_strided_slice %36 {offsets = [8, 256], sizes = [8, 256], strides = [1, 1]} : vector<16x512xf32> to vector<8x256xf32>
    %102 = vector.extract_strided_slice %40 {offsets = [8, 256], sizes = [8, 256], strides = [1, 1]} : vector<16x512xf32> to vector<8x256xf32>
    %103 = vector.extract_strided_slice %44 {offsets = [8, 256], sizes = [8, 256], strides = [1, 1]} : vector<16x512xf32> to vector<8x256xf32>
    %cst_40 = arith.constant dense<0.000000e+00> : vector<256x256xf32>
    %104 = tpu.matmul %102, %101, %cst_40 {dimension_numbers = #tpu.dot_dimension_numbers<[0], [0], [1], [1], [0, 1, 1, 1], [], []>} : vector<8x256xf32>, vector<8x256xf32>, vector<256x256xf32> -> vector<256x256xf32>
    %cst_41 = arith.constant dense<0xFF800000> : vector<256xf32>
    %105 = vector.multi_reduction <maximumf>, %104, %cst_41 [0] : vector<256x256xf32> to vector<256xf32>
    %106 = vector.shape_cast %105 : vector<256xf32> to vector<1x256xf32>
    %107 = vector.broadcast %106 : vector<1x256xf32> to vector<256x256xf32>
    %108 = arith.subf %104, %107 : vector<256x256xf32>
    %109 = math.exp %108 : vector<256x256xf32>
    %cst_42 = arith.constant dense<0.000000e+00> : vector<256xf32>
    %110 = vector.multi_reduction <add>, %109, %cst_42 [0] : vector<256x256xf32> to vector<256xf32>
    %111 = vector.shape_cast %110 : vector<256xf32> to vector<1x256xf32>
    %cst_43 = arith.constant 1.000000e+00 : f32
    %112 = vector.broadcast %cst_43 : f32 to vector<1x256xf32>
    %113 = arith.divf %112, %111 : vector<1x256xf32>
    %cst_44 = arith.constant dense<0.000000e+00> : vector<8x256xf32>
    %114 = tpu.matmul %103, %109, %cst_44 {dimension_numbers = #tpu.dot_dimension_numbers<[1], [0], [0], [1], [0, 0, 1, 1], [], []>} : vector<8x256xf32>, vector<256x256xf32>, vector<8x256xf32> -> vector<8x256xf32>
    %115 = vector.broadcast %113 : vector<1x256xf32> to vector<8x256xf32>
    %116 = arith.mulf %114, %115 : vector<8x256xf32>
    %cst_45 = arith.constant dense<0.000000e+00> : vector<16x256xf32>
    %117 = tpu.matmul %48, %116, %cst_45 {dimension_numbers = #tpu.dot_dimension_numbers<[1], [0], [0], [1], [0, 0, 1, 1], [], []>} : vector<16x8xf32>, vector<8x256xf32>, vector<16x256xf32> -> vector<16x256xf32>
    %118 = arith.addf %100, %117 : vector<16x256xf32>
    %119 = tpu.concatenate %83, %118 in 1 : vector<16x256xf32>, vector<16x256xf32> -> vector<16x512xf32>
    %c0_46 = arith.constant 0 : index
    %c5 = arith.constant 5 : index
    %120 = vector.load %arg4[%c0_46, %c5] : memref<16x16xf32, #tpu.memory_space<vmem>>, vector<16x1xf32>
    %121 = vector.broadcast %120 : vector<16x1xf32> to vector<16x512xf32>
    %122 = arith.addf %119, %121 : vector<16x512xf32>
    %123 = arith.addf %122, %4 : vector<16x512xf32>
    %c0_47 = arith.constant 0 : index
    %c6 = arith.constant 6 : index
    %124 = vector.load %arg4[%c0_47, %c6] : memref<16x16xf32, #tpu.memory_space<vmem>>, vector<16x1xf32>
    %c0_48 = arith.constant 0 : index
    %c7 = arith.constant 7 : index
    %125 = vector.load %arg4[%c0_48, %c7] : memref<16x16xf32, #tpu.memory_space<vmem>>, vector<16x1xf32>
    %cst_49 = arith.constant dense<0.000000e+00> : vector<512xf32>
    %126 = vector.multi_reduction <add>, %123, %cst_49 [0] : vector<16x512xf32> to vector<512xf32>
    %127 = vector.shape_cast %126 : vector<512xf32> to vector<1x512xf32>
    %cst_50 = arith.constant 1.600000e+01 : f32
    %128 = vector.broadcast %cst_50 : f32 to vector<1x512xf32>
    %129 = arith.divf %127, %128 : vector<1x512xf32>
    %130 = arith.mulf %123, %123 : vector<16x512xf32>
    %cst_51 = arith.constant dense<0.000000e+00> : vector<512xf32>
    %131 = vector.multi_reduction <add>, %130, %cst_51 [0] : vector<16x512xf32> to vector<512xf32>
    %132 = vector.shape_cast %131 : vector<512xf32> to vector<1x512xf32>
    %cst_52 = arith.constant 1.600000e+01 : f32
    %133 = vector.broadcast %cst_52 : f32 to vector<1x512xf32>
    %134 = arith.divf %132, %133 : vector<1x512xf32>
    %135 = arith.mulf %129, %129 : vector<1x512xf32>
    %136 = arith.subf %134, %135 : vector<1x512xf32>
    %cst_53 = arith.constant 0.000000e+00 : f32
    %137 = vector.broadcast %cst_53 : f32 to vector<1x512xf32>
    %138 = arith.maximumf %136, %137 : vector<1x512xf32>
    %139 = vector.broadcast %129 : vector<1x512xf32> to vector<16x512xf32>
    %140 = arith.subf %123, %139 : vector<16x512xf32>
    %cst_54 = arith.constant 9.99999974E-6 : f32
    %141 = vector.broadcast %cst_54 : f32 to vector<1x512xf32>
    %142 = arith.addf %138, %141 : vector<1x512xf32>
    %143 = math.rsqrt %142 : vector<1x512xf32>
    %144 = vector.broadcast %143 : vector<1x512xf32> to vector<16x512xf32>
    %145 = arith.mulf %140, %144 : vector<16x512xf32>
    %146 = vector.broadcast %124 : vector<16x1xf32> to vector<16x512xf32>
    %147 = arith.mulf %145, %146 : vector<16x512xf32>
    %148 = vector.broadcast %125 : vector<16x1xf32> to vector<16x512xf32>
    %149 = arith.addf %147, %148 : vector<16x512xf32>
    %c1_55 = arith.constant 1 : index
    %c0_56 = arith.constant 0 : index
    %c0_57 = arith.constant 0 : index
    %150 = vector.load %arg3[%c1_55, %c0_56, %c0_57] : memref<3x16x16xf32, #tpu.memory_space<vmem>>, vector<1x16x16xf32>
    %151 = vector.shape_cast %150 : vector<1x16x16xf32> to vector<16x16xf32>
    %cst_58 = arith.constant dense<0.000000e+00> : vector<16x512xf32>
    %152 = tpu.matmul %151, %149, %cst_58 {dimension_numbers = #tpu.dot_dimension_numbers<[1], [0], [0], [1], [0, 0, 1, 1], [], []>} : vector<16x16xf32>, vector<16x512xf32>, vector<16x512xf32> -> vector<16x512xf32>
    %c0_59 = arith.constant 0 : index
    %c8 = arith.constant 8 : index
    %153 = vector.load %arg4[%c0_59, %c8] : memref<16x16xf32, #tpu.memory_space<vmem>>, vector<16x1xf32>
    %154 = vector.broadcast %153 : vector<16x1xf32> to vector<16x512xf32>
    %155 = arith.addf %152, %154 : vector<16x512xf32>
    %cst_60 = arith.constant 5.000000e-01 : f32
    %156 = vector.broadcast %cst_60 : f32 to vector<16x512xf32>
    %157 = arith.mulf %156, %155 : vector<16x512xf32>
    %cst_61 = arith.constant 0.707106769 : f32
    %158 = vector.broadcast %cst_61 : f32 to vector<16x512xf32>
    %159 = arith.mulf %155, %158 : vector<16x512xf32>
    %cst_62 = arith.constant 0.000000e+00 : f32
    %160 = vector.broadcast %cst_62 : f32 to vector<16x512xf32>
    %161 = arith.cmpf oge, %159, %160 : vector<16x512xf32>
    %cst_63 = arith.constant 1.000000e+00 : f32
    %cst_64 = arith.constant -1.000000e+00 : f32
    %162 = vector.broadcast %cst_63 : f32 to vector<16x512xf32>
    %163 = vector.broadcast %cst_64 : f32 to vector<16x512xf32>
    %164 = arith.select %161, %162, %163 : vector<16x512xi1>, vector<16x512xf32>
    %165 = math.absf %159 : vector<16x512xf32>
    %cst_65 = arith.constant 0.327591091 : f32
    %166 = vector.broadcast %cst_65 : f32 to vector<16x512xf32>
    %167 = arith.mulf %166, %165 : vector<16x512xf32>
    %cst_66 = arith.constant 1.000000e+00 : f32
    %168 = vector.broadcast %cst_66 : f32 to vector<16x512xf32>
    %169 = arith.addf %168, %167 : vector<16x512xf32>
    %cst_67 = arith.constant 1.000000e+00 : f32
    %170 = vector.broadcast %cst_67 : f32 to vector<16x512xf32>
    %171 = arith.divf %170, %169 : vector<16x512xf32>
    %cst_68 = arith.constant 1.06140542 : f32
    %172 = vector.broadcast %cst_68 : f32 to vector<16x512xf32>
    %173 = arith.mulf %172, %171 : vector<16x512xf32>
    %cst_69 = arith.constant -1.45315206 : f32
    %174 = vector.broadcast %cst_69 : f32 to vector<16x512xf32>
    %175 = arith.addf %173, %174 : vector<16x512xf32>
    %176 = arith.mulf %175, %171 : vector<16x512xf32>
    %cst_70 = arith.constant 1.42141378 : f32
    %177 = vector.broadcast %cst_70 : f32 to vector<16x512xf32>
    %178 = arith.addf %176, %177 : vector<16x512xf32>
    %179 = arith.mulf %178, %171 : vector<16x512xf32>
    %cst_71 = arith.constant -0.284496725 : f32
    %180 = vector.broadcast %cst_71 : f32 to vector<16x512xf32>
    %181 = arith.addf %179, %180 : vector<16x512xf32>
    %182 = arith.mulf %181, %171 : vector<16x512xf32>
    %cst_72 = arith.constant 0.254829586 : f32
    %183 = vector.broadcast %cst_72 : f32 to vector<16x512xf32>
    %184 = arith.addf %182, %183 : vector<16x512xf32>
    %185 = arith.mulf %184, %171 : vector<16x512xf32>
    %cst_73 = arith.constant 0.000000e+00 : f32
    %186 = vector.broadcast %cst_73 : f32 to vector<16x512xf32>
    %187 = arith.subf %186, %165 : vector<16x512xf32>
    %188 = arith.mulf %187, %165 : vector<16x512xf32>
    %189 = math.exp %188 : vector<16x512xf32>
    %190 = arith.mulf %185, %189 : vector<16x512xf32>
    %cst_74 = arith.constant 1.000000e+00 : f32
    %191 = vector.broadcast %cst_74 : f32 to vector<16x512xf32>
    %192 = arith.subf %191, %190 : vector<16x512xf32>
    %193 = arith.mulf %164, %192 : vector<16x512xf32>
    %cst_75 = arith.constant 1.000000e+00 : f32
    %194 = vector.broadcast %cst_75 : f32 to vector<16x512xf32>
    %195 = arith.addf %194, %193 : vector<16x512xf32>
    %196 = arith.mulf %157, %195 : vector<16x512xf32>
    %c2_76 = arith.constant 2 : index
    %c0_77 = arith.constant 0 : index
    %c0_78 = arith.constant 0 : index
    %197 = vector.load %arg3[%c2_76, %c0_77, %c0_78] : memref<3x16x16xf32, #tpu.memory_space<vmem>>, vector<1x16x16xf32>
    %198 = vector.shape_cast %197 : vector<1x16x16xf32> to vector<16x16xf32>
    %cst_79 = arith.constant dense<0.000000e+00> : vector<16x512xf32>
    %199 = tpu.matmul %198, %196, %cst_79 {dimension_numbers = #tpu.dot_dimension_numbers<[1], [0], [0], [1], [0, 0, 1, 1], [], []>} : vector<16x16xf32>, vector<16x512xf32>, vector<16x512xf32> -> vector<16x512xf32>
    %c0_80 = arith.constant 0 : index
    %c9 = arith.constant 9 : index
    %200 = vector.load %arg4[%c0_80, %c9] : memref<16x16xf32, #tpu.memory_space<vmem>>, vector<16x1xf32>
    %201 = vector.broadcast %200 : vector<16x1xf32> to vector<16x512xf32>
    %202 = arith.addf %199, %201 : vector<16x512xf32>
    %203 = arith.addf %202, %123 : vector<16x512xf32>
    %204 = vector.extract_strided_slice %203 {offsets = [0, 0], sizes = [16, 256], strides = [1, 1]} : vector<16x512xf32> to vector<16x256xf32>
    %c0_81 = arith.constant 0 : index
    %c0_82 = arith.constant 0 : index
    %c0_83 = arith.constant 0 : index
    %205 = vector.load %arg5[%c0_81, %c0_82, %c0_83] : memref<2x16x256xf32, #tpu.memory_space<vmem>>, vector<1x16x256xf32>
    %206 = vector.shape_cast %205 : vector<1x16x256xf32> to vector<16x256xf32>
    %207 = vector.shape_cast %204 : vector<16x256xf32> to vector<1x16x256xf32>
    tpu.vector_store %arg5[%c0_81, %c0_82, %c0_83], %207 {strides = array<i32>} : memref<2x16x256xf32, #tpu.memory_space<vmem>>, vector<1x16x256xf32>,
    %208 = vector.extract_strided_slice %203 {offsets = [0, 256], sizes = [16, 256], strides = [1, 1]} : vector<16x512xf32> to vector<16x256xf32>
    %c1_84 = arith.constant 1 : index
    %c0_85 = arith.constant 0 : index
    %c0_86 = arith.constant 0 : index
    %209 = vector.load %arg5[%c1_84, %c0_85, %c0_86] : memref<2x16x256xf32, #tpu.memory_space<vmem>>, vector<1x16x256xf32>
    %210 = vector.shape_cast %209 : vector<1x16x256xf32> to vector<16x256xf32>
    %211 = vector.shape_cast %208 : vector<16x256xf32> to vector<1x16x256xf32>
    tpu.vector_store %arg5[%c1_84, %c0_85, %c0_86], %211 {strides = array<i32>} : memref<2x16x256xf32, #tpu.memory_space<vmem>>, vector<1x16x256xf32>,
    return
  }
  func.func @transform_0(%arg0: i32) -> (i32, i32, i32) {
    %c0_i32 = arith.constant 0 : i32
    %c0_i32_0 = arith.constant 0 : i32
    %c0_i32_1 = arith.constant 0 : i32
    return %arg0, %c0_i32, %c0_i32_0 : i32, i32, i32
  }
  func.func @transform_1(%arg0: i32) -> (i32, i32) {
    %c0_i32 = arith.constant 0 : i32
    %c0_i32_0 = arith.constant 0 : i32
    %c0_i32_1 = arith.constant 0 : i32
    return %c0_i32, %c0_i32_0 : i32, i32
  }
  func.func @transform_2(%arg0: i32) -> (i32, i32, i32) {
    %c0_i32 = arith.constant 0 : i32
    %c0_i32_0 = arith.constant 0 : i32
    %c0_i32_1 = arith.constant 0 : i32
    %c0_i32_2 = arith.constant 0 : i32
    return %c0_i32, %c0_i32_0, %c0_i32_1 : i32, i32, i32
  }
  func.func @transform_3(%arg0: i32) -> (i32, i32) {
    %c0_i32 = arith.constant 0 : i32
    %c0_i32_0 = arith.constant 0 : i32
    %c0_i32_1 = arith.constant 0 : i32
    return %c0_i32, %c0_i32_0 : i32, i32
  }
  func.func @transform_4(%arg0: i32) -> (i32, i32, i32) {
    %c0_i32 = arith.constant 0 : i32
    %c0_i32_0 = arith.constant 0 : i32
    %c0_i32_1 = arith.constant 0 : i32
    return %arg0, %c0_i32, %c0_i32_0 : i32, i32, i32
  }
}

</mosaic_0001>

<llo_original>
// kernel: self_attention_forward.1
$region0: #{self_attention_forward.1}
  #allocation0 [shape = 'u32[]', space=smem, size = 0x4, offset = 0x4, fixed_abs, tag = 'smem constant byte address 0x4 - core index']
  #allocation1 [shape = 'u32[144,128]{1,0:T(1,128)}', space=vmem, size = 0x12000, scoped, tag = 'internal scratch']
  %s0 = inlined_call_operand.vmem [shape: f32[4,16,256], index: 0, kind: input, shape index: {}]
  %s1 = inlined_call_operand.vmem [shape: f32[48,16], index: 1, kind: input, shape index: {}]
  %s2 = inlined_call_operand.vmem [shape: f32[3,16,16], index: 2, kind: input, shape index: {}]
  %s3 = inlined_call_operand.vmem [shape: f32[16,16], index: 3, kind: input, shape index: {}]
  %s4 = inlined_call_operand.vmem [shape: f32[4,16,256], index: 4, kind: output, shape index: {}]
  %s5 = sld [smem:[#allocation0]]
  $region49: #{self_attention_forward.1} parent=0
    _
  %s7 = ssub.s32 1, %s5
  %s8 = scalar_select 0, %s7, %s5
  loop: start=0, step=1, limit=4
  $region2: #{self_attention_forward.1} parent=0 // loop_pre_header
    _
  $region3: #{self_attention_forward.1} parent=0 // loop_header
    %s10 = sphi 0, %s14
    %p11 = scmp.ge.s32.totalorder %s10, 4
    %s20 = sphi 0, %s22
    %s23 = sphi 0, %s20
    %s24 = sphi 0, %s23
    %s40 = sphi 0, %s24
    %s44 = sphi 0, %s44
    %s46 = sphi 0, %s44
    %s47 = sphi 0, %s46
    %s61 = sphi 0, %s47
    %s65 = sphi 0, %s65
    %s67 = sphi 0, %s65
    %s68 = sphi 0, %s67
    %s82 = sphi 0, %s68
    %s86 = sphi 0, %s86
    %s88 = sphi 0, %s86
    %s89 = sphi 0, %s88
    %s103 = sphi 0, %s89
    %s109 = sphi 0, %s111
    %s112 = sphi 0, %s109
    %s113 = sphi 0, %s112
    %s129 = sphi 0, %s113
  $region4: #{self_attention_forward.1} parent=0 // loop_header_branch
    %13 = sbr.rel (%p11) target = $region8
  $region5: #{self_attention_forward.1} parent=0 // loop_body
    %s15 = ssub.s32 %s10, 1
    %s16 = ssub.s32 %s10, 2
    %s17 = sadd.s32 %s10, 1
    %s18 = ssub.s32 %s10, %s17
    %p19 = scmp.eq.s32.totalorder %s18, 0
    %s21 = sadd.s32 %s20, 1
    %s22 = scalar_select %p19, %s20, %s21
    %p25 = pneg %p19
    %p26 = scmp.eq.s32.totalorder %s10, 1
    %p27 = por %p25, %p26
    %p28 = scmp.ne.s32.totalorder %s20, %s23
    %p29 = scmp.eq.s32.totalorder %s10, 0
    %p30 = por %p28, %p29
    %p31 = scmp.ne.s32.totalorder %s20, %s23
    %p32 = scmp.eq.s32.totalorder %s15, 1
    %p33 = por %p31, %p32
    %p34 = scmp.ne.s32.totalorder %s23, %s24
    %p35 = scmp.eq.s32.totalorder %s15, 0
    %p36 = por %p34, %p35
    %p37 = scmp.ne.s32.totalorder %s23, %s24
    %p38 = scmp.eq.s32.totalorder %s16, 1
    %p39 = por %p37, %p38
    %p41 = scmp.ne.s32.totalorder %s24, %s40
    %p42 = scmp.eq.s32.totalorder %s16, 0
    %p43 = por %p41, %p42
    %s45 = sadd.s32 %s44, 1
    %p48 = scmp.eq.s32.totalorder %s10, 1
    %p49 = scmp.ne.s32.totalorder %s44, %s46
    %p50 = scmp.eq.s32.totalorder %s10, 0
    %p51 = por %p49, %p50
    %p52 = scmp.ne.s32.totalorder %s44, %s46
    %p53 = scmp.eq.s32.totalorder %s15, 1
    %p54 = por %p52, %p53
    %p55 = scmp.ne.s32.totalorder %s46, %s47
    %p56 = scmp.eq.s32.totalorder %s15, 0
    %p57 = por %p55, %p56
    %p58 = scmp.ne.s32.totalorder %s46, %s47
    %p59 = scmp.eq.s32.totalorder %s16, 1
    %p60 = por %p58, %p59
    %p62 = scmp.ne.s32.totalorder %s47, %s61
    %p63 = scmp.eq.s32.totalorder %s16, 0
    %p64 = por %p62, %p63
    %s66 = sadd.s32 %s65, 1
    %p69 = scmp.eq.s32.totalorder %s10, 1
    %p70 = scmp.ne.s32.totalorder %s65, %s67
    %p71 = scmp.eq.s32.totalorder %s10, 0
    %p72 = por %p70, %p71
    %p73 = scmp.ne.s32.totalorder %s65, %s67
    %p74 = scmp.eq.s32.totalorder %s15, 1
    %p75 = por %p73, %p74
    %p76 = scmp.ne.s32.totalorder %s67, %s68
    %p77 = scmp.eq.s32.totalorder %s15, 0
    %p78 = por %p76, %p77
    %p79 = scmp.ne.s32.totalorder %s67, %s68
    %p80 = scmp.eq.s32.totalorder %s16, 1
    %p81 = por %p79, %p80
    %p83 = scmp.ne.s32.totalorder %s68, %s82
    %p84 = scmp.eq.s32.totalorder %s16, 0
    %p85 = por %p83, %p84
    %s87 = sadd.s32 %s86, 1
    %p90 = scmp.eq.s32.totalorder %s10, 1
    %p91 = scmp.ne.s32.totalorder %s86, %s88
    %p92 = scmp.eq.s32.totalorder %s10, 0
    %p93 = por %p91, %p92
    %p94 = scmp.ne.s32.totalorder %s86, %s88
    %p95 = scmp.eq.s32.totalorder %s15, 1
    %p96 = por %p94, %p95
    %p97 = scmp.ne.s32.totalorder %s88, %s89
    %p98 = scmp.eq.s32.totalorder %s15, 0
    %p99 = por %p97, %p98
    %p100 = scmp.ne.s32.totalorder %s88, %s89
    %p101 = scmp.eq.s32.totalorder %s16, 1
    %p102 = por %p100, %p101
    %p104 = scmp.ne.s32.totalorder %s89, %s103
    %p105 = scmp.eq.s32.totalorder %s16, 0
    %p106 = por %p104, %p105
    %s107 = ssub.s32 %s10, %s17
    %p108 = scmp.eq.s32.totalorder %s107, 0
    %s110 = sadd.s32 %s109, 1
    %s111 = scalar_select %p108, %s109, %s110
    %p114 = pneg %p108
    %p115 = scmp.eq.s32.totalorder %s10, 1
    %p116 = por %p114, %p115
    %p117 = scmp.ne.s32.totalorder %s109, %s112
    %p118 = scmp.eq.s32.totalorder %s10, 0
    %p119 = por %p117, %p118
    %p120 = scmp.ne.s32.totalorder %s109, %s112
    %p121 = scmp.eq.s32.totalorder %s15, 1
    %p122 = por %p120, %p121
    %p123 = scmp.ne.s32.totalorder %s112, %s113
    %p124 = scmp.eq.s32.totalorder %s15, 0
    %p125 = por %p123, %p124
    %p126 = scmp.ne.s32.totalorder %s112, %s113
    %p127 = scmp.eq.s32.totalorder %s16, 1
    %p128 = por %p126, %p127
    %p130 = scmp.ne.s32.totalorder %s113, %s129
    %p131 = scmp.eq.s32.totalorder %s16, 0
    %p132 = por %p130, %p131
    %p133 = scmp.le.s32.totalorder 1, %s10
    %p134 = scmp.lt.s32.totalorder %s10, 3
    %p135 = pnand %p133, %p134
    %p136 = pneg %p135
    // Predicated region
    $region9: #{self_attention_forward.1} parent=5 // pred_check
      _
    $region10: #{self_attention_forward.1} parent=5 // pred_check_branch
      %138 = sbr.rel (%p135) target = $region12
    $region11: #{self_attention_forward.1} parent=5 // pred_region
      %s139 = ssub.s32 %s10, 1
      // Predicated region
      $region13: #{self_attention_forward.1} parent=11 // pred_check
        %p140 = pneg %p57
      $region14: #{self_attention_forward.1} parent=11 // pred_check_branch
        %142 = sbr.rel (%p140) target = $region16
      $region15: #{self_attention_forward.1} parent=11 // pred_region
        _
      $region16: #{self_attention_forward.1} parent=11 // pred_fallthru
        _
      // Predicated region
      $region17: #{self_attention_forward.1} parent=11 // pred_check
        %p143 = pneg %p78
      $region18: #{self_attention_forward.1} parent=11 // pred_check_branch
        %145 = sbr.rel (%p143) target = $region20
      $region19: #{self_attention_forward.1} parent=11 // pred_region
        _
      $region20: #{self_attention_forward.1} parent=11 // pred_fallthru
        _
      // Predicated region
      $region21: #{self_attention_forward.1} parent=11 // pred_check
        %p146 = pneg %p99
      $region22: #{self_attention_forward.1} parent=11 // pred_check_branch
        %148 = sbr.rel (%p146) target = $region24
      $region23: #{self_attention_forward.1} parent=11 // pred_region
        _
      $region24: #{self_attention_forward.1} parent=11 // pred_fallthru
        _
    $region12: #{self_attention_forward.1} parent=5 // pred_fallthru
      _
    %p149 = scmp.lt.s32.totalorder %s10, 2
    // Predicated region
    $region25: #{self_attention_forward.1} parent=5 // pred_check
      %p150 = pneg %p149
    $region26: #{self_attention_forward.1} parent=5 // pred_check_branch
      %152 = sbr.rel (%p150) target = $region28
    $region27: #{self_attention_forward.1} parent=5 // pred_region
      // Predicated region
      $region29: #{self_attention_forward.1} parent=27 // pred_check
        %p153 = pneg %p30
      $region30: #{self_attention_forward.1} parent=27 // pred_check_branch
        %155 = sbr.rel (%p153) target = $region32
      $region31: #{self_attention_forward.1} parent=27 // pred_region
        %s156 = smul.u32 2, %s10
        %p157 = scmp.lt.s32.totalorder %s156, 3
        %s158 = scalar_select %p157, %s156, 3
        %s159 = smul.addr %s158, 4
        %s160 = smul.addr %s159, 8
        %s161 = scalar_lea.vmem %s0, %s160
        %s162 = smul.u32 2, %s10
      $region32: #{self_attention_forward.1} parent=27 // pred_fallthru
        _
    $region28: #{self_attention_forward.1} parent=5 // pred_fallthru
      _
    %p163 = scmp.le.s32.totalorder 1, %s10
    %p164 = scmp.lt.s32.totalorder %s10, 3
    %p165 = pnand %p163, %p164
    %p166 = pneg %p165
    // Predicated region
    $region33: #{self_attention_forward.1} parent=5 // pred_check
      _
    $region34: #{self_attention_forward.1} parent=5 // pred_check_branch
      %168 = sbr.rel (%p165) target = $region36
    $region35: #{self_attention_forward.1} parent=5 // pred_region
      %s169 = ssub.s32 %s10, 1
      %s170 = smul.u32 2, %s15
      %p171 = scmp.lt.s32.totalorder %s170, 3
      %s172 = scalar_select %p171, %s170, 3
      %s173 = smul.addr %s172, 4
      %s174 = smul.addr %s173, 8
      %s175 = scalar_lea.vmem %s0, %s174
      %p176 = pneg %p36
      %p177 = pneg %p33
      %p178 = pneg %p57
      %p179 = pneg %p54
      %p180 = pneg %p78
      %p181 = pneg %p75
      %p182 = pneg %p99
      %p183 = pneg %p96
      %p184 = pneg %p125
      %p185 = pneg %p122
      %s186 = smul.u32 2, %s15
      %p187 = scmp.lt.s32.totalorder %s186, 3
      %s188 = scalar_select %p187, %s186, 3
      %s189 = smul.addr %s188, 4
      %s190 = smul.addr %s189, 8
      %s191 = scalar_lea.vmem %s4, %s190
      %s192 = smul.u32 2, %s15
      %p193 = scmp.lt.s32.totalorder %s192, 3
      %s194 = scalar_select %p193, %s192, 3
      %s195 = smul.addr %s194, 4
      %s196 = smul.addr %s195, 8
      %s197 = scalar_lea.vmem %s0, %s196
      %s198 = smul.u32 2, %s15
      %s199 = smul.u32 2, %s15
      %p200 = scmp.lt.s32.totalorder %s199, 3
      %s201 = scalar_select %p200, %s199, 3
      %s202 = smul.addr %s201, 4
      %s203 = smul.addr %s202, 8
      %s204 = scalar_lea.vmem %s4, %s203
      %s205 = smul.u32 2, %s15
      %v206 = vld [vmem:[%s197] sm:$0xff]
      %v207 = vld [vmem:[%s197 + $0x8] sm:$0xff]
      %v208 = vld [vmem:[%s197 + $0x10] sm:$0xff]
      %v209 = vld [vmem:[%s197 + $0x18] sm:$0xff]
      %s210 = scalar_lea.vmem %s197, 32
      %v211 = vld [vmem:[%s210] sm:$0xff]
      %v212 = vld [vmem:[%s210 + $0x8] sm:$0xff]
      %v213 = vld [vmem:[%s210 + $0x10] sm:$0xff]
      %v214 = vld [vmem:[%s210 + $0x18] sm:$0xff]
      %v215 = vld [vmem:[%s3] sm:$0xff]
      %v216 = vld [vmem:[%s3 + $0x8] sm:$0xff]
      %v217 = vadd.f32 %v206, %v208
      %v218 = vrot.slane %v217, 4
      %v219 = vadd.f32 %v217, %v218
      %v220 = vrot.slane %v219, 2
      %v221 = vadd.f32 %v219, %v220
      %v222 = vrot.slane %v221, 1
      %v223 = vadd.f32 %v221, %v222
      %v224 = vadd.f32 %v207, %v209
      %v225 = vrot.slane %v224, 4
      %v226 = vadd.f32 %v224, %v225
      %v227 = vrot.slane %v226, 2
      %v228 = vadd.f32 %v226, %v227
      %v229 = vrot.slane %v228, 1
      %v230 = vadd.f32 %v228, %v229
      %v231 = vadd.f32 %v211, %v213
      %v232 = vrot.slane %v231, 4
      %v233 = vadd.f32 %v231, %v232
      %v234 = vrot.slane %v233, 2
      %v235 = vadd.f32 %v233, %v234
      %v236 = vrot.slane %v235, 1
      %v237 = vadd.f32 %v235, %v236
      %v238 = vadd.f32 %v212, %v214
      %v239 = vrot.slane %v238, 4
      %v240 = vadd.f32 %v238, %v239
      %v241 = vrot.slane %v240, 2
      %v242 = vadd.f32 %v240, %v241
      %v243 = vrot.slane %v242, 1
      %v244 = vadd.f32 %v242, %v243
      %v245 = vrcp.pop 16.0
      %v246 = vmul.f32 %v223, %v245
      %v247 = vmul.f32 %v230, %v245
      %v248 = vmul.f32 %v237, %v245
      %v249 = vmul.f32 %v244, %v245
      %v250 = vmul.f32 %v206, %v206
      %v251 = vmul.f32 %v207, %v207
      %v252 = vmul.f32 %v211, %v211
      %v253 = vmul.f32 %v212, %v212
      %v254 = vmul.f32 %v208, %v208
      %v255 = vmul.f32 %v209, %v209
      %v256 = vmul.f32 %v213, %v213
      %v257 = vmul.f32 %v214, %v214
      %v258 = vadd.f32 %v250, %v254
      %v259 = vrot.slane %v258, 4
      %v260 = vadd.f32 %v258, %v259
      %v261 = vrot.slane %v260, 2
      %v262 = vadd.f32 %v260, %v261
      %v263 = vrot.slane %v262, 1
      %v264 = vadd.f32 %v262, %v263
      %v265 = vadd.f32 %v251, %v255
      %v266 = vrot.slane %v265, 4
      %v267 = vadd.f32 %v265, %v266
      %v268 = vrot.slane %v267, 2
      %v269 = vadd.f32 %v267, %v268
      %v270 = vrot.slane %v269, 1
      %v271 = vadd.f32 %v269, %v270
      %v272 = vadd.f32 %v252, %v256
      %v273 = vrot.slane %v272, 4
      %v274 = vadd.f32 %v272, %v273
      %v275 = vrot.slane %v274, 2
      %v276 = vadd.f32 %v274, %v275
      %v277 = vrot.slane %v276, 1
      %v278 = vadd.f32 %v276, %v277
      %v279 = vadd.f32 %v253, %v257
      %v280 = vrot.slane %v279, 4
      %v281 = vadd.f32 %v279, %v280
      %v282 = vrot.slane %v281, 2
      %v283 = vadd.f32 %v281, %v282
      %v284 = vrot.slane %v283, 1
      %v285 = vadd.f32 %v283, %v284
      %v286 = vmul.f32 %v264, %v245
      %v287 = vmul.f32 %v271, %v245
      %v288 = vmul.f32 %v278, %v245
      %v289 = vmul.f32 %v285, %v245
      %v290 = vmul.f32 %v246, %v246
      %v291 = vmul.f32 %v247, %v247
      %v292 = vmul.f32 %v248, %v248
      %v293 = vmul.f32 %v249, %v249
      %v294 = vsub.f32 %v286, %v290
      %v295 = vsub.f32 %v287, %v291
      %v296 = vsub.f32 %v288, %v292
      %v297 = vsub.f32 %v289, %v293
      %v298 = vmax.f32 %v294, 0.0
      %v299 = vmax.f32 %v295, 0.0
      %v300 = vmax.f32 %v296, 0.0
      %v301 = vmax.f32 %v297, 0.0
      %v302 = vsub.f32 %v206, %v246
      %v303 = vsub.f32 %v207, %v247
      %v304 = vsub.f32 %v211, %v248
      %v305 = vsub.f32 %v212, %v249
      %v306 = vsub.f32 %v208, %v246
      %v307 = vsub.f32 %v209, %v247
      %v308 = vsub.f32 %v213, %v248
      %v309 = vsub.f32 %v214, %v249
      %v310 = vadd.f32 %v298, 1e-05
      %v311 = vadd.f32 %v299, 1e-05
      %v312 = vadd.f32 %v300, 1e-05
      %v313 = vadd.f32 %v301, 1e-05
      %v314 = vrsqrt.pop %v310
      %v315 = vrsqrt.pop %v311
      %v316 = vrsqrt.pop %v312
      %v317 = vrsqrt.pop %v313
      %v318 = vmul.f32 %v302, %v314
      %v319 = vmul.f32 %v303, %v315
      %v320 = vmul.f32 %v304, %v316
      %v321 = vmul.f32 %v305, %v317
      %v322 = vmul.f32 %v306, %v314
      %v323 = vmul.f32 %v307, %v315
      %v324 = vmul.f32 %v308, %v316
      %v325 = vmul.f32 %v309, %v317
      %327 = vset.pattern.permute.xlu0 0
      %328 = vperm.xlu0 %327, %v215
      %v329 = vpop.permute.xlu0 %328
      %332 = vset.pattern.permute.xlu0 0
      %333 = vperm.xlu0 %332, %v216
      %v334 = vpop.permute.xlu0 %333
      %v336 = vmul.f32 %v318, %v329
      %v337 = vmul.f32 %v319, %v329
      %v338 = vmul.f32 %v320, %v329
      %v339 = vmul.f32 %v321, %v329
      %v340 = vmul.f32 %v322, %v334
      %v341 = vmul.f32 %v323, %v334
      %v342 = vmul.f32 %v324, %v334
      %v343 = vmul.f32 %v325, %v334
      %344 = vset.pattern.permute.xlu0 1
      %345 = vperm.xlu0 %344, %v215
      %v346 = vpop.permute.xlu0 %345
      %348 = vset.pattern.permute.xlu0 1
      %349 = vperm.xlu0 %348, %v216
      %v350 = vpop.permute.xlu0 %349
      %v352 = vadd.f32 %v336, %v346
      %v353 = vadd.f32 %v337, %v346
      %v354 = vadd.f32 %v338, %v346
      %v355 = vadd.f32 %v339, %v346
      %v356 = vadd.f32 %v340, %v350
      %v357 = vadd.f32 %v341, %v350
      %v358 = vadd.f32 %v342, %v350
      %v359 = vadd.f32 %v343, %v350
      %v360 = vld [vmem:[%s1] sm:$0xff]
      %v361 = vld [vmem:[%s1 + $0x8] sm:$0xff]
      %v362 = vld [vmem:[%s1 + $0x10] sm:$0xff]
      %v363 = vld [vmem:[%s1 + $0x18] sm:$0xff]
      %v364 = vld [vmem:[%s1 + $0x20] sm:$0xff]
      %v365 = vld [vmem:[%s1 + $0x28] sm:$0xff]
      %vm366 = vcmask 130048
      %v368 = vsel %vm366, %v360, 0
      %v371 = vsel %vm366, %v361, 0
      %v374 = vsel %vm366, %v362, 0
      %v377 = vsel %vm366, %v363, 0
      %v380 = vsel %vm366, %v364, 0
      %v383 = vsel %vm366, %v365, 0
      %385 = vmatprep.subr.mxu0 %v353
      %386 = vmatpush1.msra.mxu0 %v352
      %387 = vmatprep.subr.mxu0 %v357
      %388 = vmatpush1.msra.mxu0 %v356
      %389 = vmatprep.subr.mxu0 0.0
      %390 = vmatpush1.msra.mxu0 0.0
      %391 = vmatprep.subr.mxu0 0.0
      %392 = vmatpush1.msra.mxu0 0.0
      %393 = vmatprep.subr.mxu0 0.0
      %394 = vmatpush1.msra.mxu0 0.0
      %395 = vmatprep.subr.mxu0 0.0
      %396 = vmatpush1.msra.mxu0 0.0
      %397 = vmatprep.subr.mxu0 0.0
      %398 = vmatpush1.msra.mxu0 0.0
      %399 = vmatprep.subr.mxu0 0.0
      %400 = vmatpush1.msra.mxu0 0.0
      %401 = vmatprep.subr.mxu0 0.0
      %402 = vmatpush1.msra.mxu0 0.0
      %403 = vmatprep.subr.mxu0 0.0
      %404 = vmatpush1.msra.mxu0 0.0
      %405 = vmatprep.subr.mxu0 0.0
      %406 = vmatpush1.msra.mxu0 0.0
      %407 = vmatprep.subr.mxu0 0.0
      %408 = vmatpush1.msra.mxu0 0.0
      %409 = vmatprep.subr.mxu0 0.0
      %410 = vmatpush1.msra.mxu0 0.0
      %411 = vmatprep.subr.mxu0 0.0
      %412 = vmatpush1.msra.mxu0 0.0
      %413 = vmatprep.subr.mxu0 0.0
      %414 = vmatpush1.msra.mxu0 0.0
      %415 = vmatprep.subr.mxu0 0.0
      %416 = vmatpush1.msra.mxu0 0.0
      %417 = vmatprep.subr.mxu0 0.0
      %418 = vmatpush1.msra.mxu0 0.0
      %419 = vmatprep.subr.mxu0 0.0
      %420 = vmatpush1.msra.mxu0 0.0
      %421 = vmatprep.subr.mxu0 0.0
      %422 = vmatpush1.msra.mxu0 0.0
      %423 = vmatprep.subr.mxu0 0.0
      %424 = vmatpush1.msra.mxu0 0.0
      %425 = vmatprep.subr.mxu0 0.0
      %426 = vmatpush1.msra.mxu0 0.0
      %427 = vmatprep.subr.mxu0 0.0
      %428 = vmatpush1.msra.mxu0 0.0
      %429 = vmatprep.subr.mxu0 0.0
      %430 = vmatpush1.msra.mxu0 0.0
      %431 = vmatprep.subr.mxu0 0.0
      %432 = vmatpush1.msra.mxu0 0.0
      %433 = vmatprep.subr.mxu0 0.0
      %434 = vmatpush1.msra.mxu0 0.0
      %435 = vmatprep.subr.mxu0 0.0
      %436 = vmatpush1.msra.mxu0 0.0
      %437 = vmatprep.subr.mxu0 0.0
      %438 = vmatpush1.msra.mxu0 0.0
      %439 = vmatprep.subr.mxu0 0.0
      %440 = vmatpush1.msra.mxu0 0.0
      %441 = vmatprep.subr.mxu0 0.0
      %442 = vmatpush1.msra.mxu0 0.0
      %443 = vmatprep.subr.mxu0 0.0
      %444 = vmatpush1.msra.mxu0 0.0
      %445 = vmatprep.subr.mxu0 0.0
      %446 = vmatpush1.msra.mxu0 0.0
      %447 = vmatprep.subr.mxu0 0.0
      %448 = vmatpush1.msra.mxu0 0.0
      %449 = vmatprep.mubr.f32.mxu0 0.0
      %450 = vmatmul.mubr.f32.gmra.mrb[0].mxu0 %v368
      %v451 = vpop.f32.mrb[0].mxu0
      %v452 = vadd.f32 0.0, %v451
      %v453 = vpop.f32.mrb[0].mxu0
      %v454 = vadd.f32 0.0, %v453
      %455 = vmatprep.mubr.f32.mxu0 0.0
      %456 = vmatmul.mubr.f32.gmra.mrb[0].mxu0 %v371
      %v457 = vpop.f32.mrb[0].mxu0
      %v458 = vadd.f32 0.0, %v457
      %v459 = vpop.f32.mrb[0].mxu0
      %v460 = vadd.f32 0.0, %v459
      %461 = vmatprep.mubr.f32.mxu0 0.0
      %462 = vmatmul.mubr.f32.gmra.mrb[0].mxu0 %v374
      %v463 = vpop.f32.mrb[0].mxu0
      %v464 = vadd.f32 0.0, %v463
      %v465 = vpop.f32.mrb[0].mxu0
      %v466 = vadd.f32 0.0, %v465
      %467 = vmatprep.mubr.f32.mxu0 0.0
      %468 = vmatmul.mubr.f32.gmra.mrb[0].mxu0 %v377
      %v469 = vpop.f32.mrb[0].mxu0
      %v470 = vadd.f32 0.0, %v469
      %v471 = vpop.f32.mrb[0].mxu0
      %v472 = vadd.f32 0.0, %v471
      %473 = vmatprep.mubr.f32.mxu0 0.0
      %474 = vmatmul.mubr.f32.gmra.mrb[0].mxu0 %v380
      %v475 = vpop.f32.mrb[0].mxu0
      %v476 = vadd.f32 0.0, %v475
      %v477 = vpop.f32.mrb[0].mxu0
      %v478 = vadd.f32 0.0, %v477
      %479 = vmatprep.mubr.f32.mxu0 0.0
      %480 = vmatmul.mubr.f32.gmra.mrb[0].mxu0 %v383
      %v481 = vpop.f32.mrb[0].mxu0
      %v482 = vadd.f32 0.0, %v481
      %v483 = vpop.f32.mrb[0].mxu0
      %v484 = vadd.f32 0.0, %v483
      %485 = vdwg.mxu0
      %486 = vmatprep.subr.mxu0 %v355
      %487 = vmatpush1.msra.mxu0 %v354
      %488 = vmatprep.subr.mxu0 %v359
      %489 = vmatpush1.msra.mxu0 %v358
      %490 = vmatprep.subr.mxu0 0.0
      %491 = vmatpush1.msra.mxu0 0.0
      %492 = vmatprep.subr.mxu0 0.0
      %493 = vmatpush1.msra.mxu0 0.0
      %494 = vmatprep.subr.mxu0 0.0
      %495 = vmatpush1.msra.mxu0 0.0
      %496 = vmatprep.subr.mxu0 0.0
      %497 = vmatpush1.msra.mxu0 0.0
      %498 = vmatprep.subr.mxu0 0.0
      %499 = vmatpush1.msra.mxu0 0.0
      %500 = vmatprep.subr.mxu0 0.0
      %501 = vmatpush1.msra.mxu0 0.0
      %502 = vmatprep.subr.mxu0 0.0
      %503 = vmatpush1.msra.mxu0 0.0
      %504 = vmatprep.subr.mxu0 0.0
      %505 = vmatpush1.msra.mxu0 0.0
      %506 = vmatprep.subr.mxu0 0.0
      %507 = vmatpush1.msra.mxu0 0.0
      %508 = vmatprep.subr.mxu0 0.0
      %509 = vmatpush1.msra.mxu0 0.0
      %510 = vmatprep.subr.mxu0 0.0
      %511 = vmatpush1.msra.mxu0 0.0
      %512 = vmatprep.subr.mxu0 0.0
      %513 = vmatpush1.msra.mxu0 0.0
      %514 = vmatprep.subr.mxu0 0.0
      %515 = vmatpush1.msra.mxu0 0.0
      %516 = vmatprep.subr.mxu0 0.0
      %517 = vmatpush1.msra.mxu0 0.0
      %518 = vmatprep.subr.mxu0 0.0
      %519 = vmatpush1.msra.mxu0 0.0
      %520 = vmatprep.subr.mxu0 0.0
      %521 = vmatpush1.msra.mxu0 0.0
      %522 = vmatprep.subr.mxu0 0.0
      %523 = vmatpush1.msra.mxu0 0.0
      %524 = vmatprep.subr.mxu0 0.0
      %525 = vmatpush1.msra.mxu0 0.0
      %526 = vmatprep.subr.mxu0 0.0
      %527 = vmatpush1.msra.mxu0 0.0
      %528 = vmatprep.subr.mxu0 0.0
      %529 = vmatpush1.msra.mxu0 0.0
      %530 = vmatprep.subr.mxu0 0.0
      %531 = vmatpush1.msra.mxu0 0.0
      %532 = vmatprep.subr.mxu0 0.0
      %533 = vmatpush1.msra.mxu0 0.0
      %534 = vmatprep.subr.mxu0 0.0
      %535 = vmatpush1.msra.mxu0 0.0
      %536 = vmatprep.subr.mxu0 0.0
      %537 = vmatpush1.msra.mxu0 0.0
      %538 = vmatprep.subr.mxu0 0.0
      %539 = vmatpush1.msra.mxu0 0.0
      %540 = vmatprep.subr.mxu0 0.0
      %541 = vmatpush1.msra.mxu0 0.0
      %542 = vmatprep.subr.mxu0 0.0
      %543 = vmatpush1.msra.mxu0 0.0
      %544 = vmatprep.subr.mxu0 0.0
      %545 = vmatpush1.msra.mxu0 0.0
      %546 = vmatprep.subr.mxu0 0.0
      %547 = vmatpush1.msra.mxu0 0.0
      %548 = vmatprep.subr.mxu0 0.0
      %549 = vmatpush1.msra.mxu0 0.0
      %550 = vmatprep.mubr.f32.mxu0 0.0
      %551 = vmatmul.mubr.f32.gmra.mrb[0].mxu0 %v368
      %v552 = vpop.f32.mrb[0].mxu0
      %v553 = vadd.f32 0.0, %v552
      %v554 = vpop.f32.mrb[0].mxu0
      %v555 = vadd.f32 0.0, %v554
      %556 = vmatprep.mubr.f32.mxu0 0.0
      %557 = vmatmul.mubr.f32.gmra.mrb[0].mxu0 %v371
      %v558 = vpop.f32.mrb[0].mxu0
      %v559 = vadd.f32 0.0, %v558
      %v560 = vpop.f32.mrb[0].mxu0
      %v561 = vadd.f32 0.0, %v560
      %562 = vmatprep.mubr.f32.mxu0 0.0
      %563 = vmatmul.mubr.f32.gmra.mrb[0].mxu0 %v374
      %v564 = vpop.f32.mrb[0].mxu0
      %v565 = vadd.f32 0.0, %v564
      %v566 = vpop.f32.mrb[0].mxu0
      %v567 = vadd.f32 0.0, %v566
      %568 = vmatprep.mubr.f32.mxu0 0.0
      %569 = vmatmul.mubr.f32.gmra.mrb[0].mxu0 %v377
      %v570 = vpop.f32.mrb[0].mxu0
      %v571 = vadd.f32 0.0, %v570
      %v572 = vpop.f32.mrb[0].mxu0
      %v573 = vadd.f32 0.0, %v572
      %574 = vmatprep.mubr.f32.mxu0 0.0
      %575 = vmatmul.mubr.f32.gmra.mrb[0].mxu0 %v380
      %v576 = vpop.f32.mrb[0].mxu0
      %v577 = vadd.f32 0.0, %v576
      %v578 = vpop.f32.mrb[0].mxu0
      %v579 = vadd.f32 0.0, %v578
      %580 = vmatprep.mubr.f32.mxu0 0.0
      %581 = vmatmul.mubr.f32.gmra.mrb[0].mxu0 %v383
      %v582 = vpop.f32.mrb[0].mxu0
      %v583 = vadd.f32 0.0, %v582
      %v584 = vpop.f32.mrb[0].mxu0
      %v585 = vadd.f32 0.0, %v584
      %586 = vdwg.mxu0
      %587 = vset.pattern.permute.xlu0 2
      %588 = vperm.xlu0 %587, %v215
      %v589 = vpop.permute.xlu0 %588
      %591 = vset.pattern.permute.xlu0 2
      %592 = vperm.xlu0 %591, %v216
      %v593 = vpop.permute.xlu0 %592
      %v595 = vadd.f32 %v452, %v589
      %v596 = vadd.f32 %v454, %v589
      %v597 = vadd.f32 %v553, %v589
      %v598 = vadd.f32 %v555, %v589
      %v599 = vadd.f32 %v458, %v593
      %v600 = vadd.f32 %v460, %v593
      %v601 = vadd.f32 %v559, %v593
      %v602 = vadd.f32 %v561, %v593
      %603 = vset.pattern.permute.xlu0 3
      %604 = vperm.xlu0 %603, %v215
      %v605 = vpop.permute.xlu0 %604
      %607 = vset.pattern.permute.xlu0 3
      %608 = vperm.xlu0 %607, %v216
      %v609 = vpop.permute.xlu0 %608
      %v611 = vadd.f32 %v464, %v605
      %v612 = vadd.f32 %v466, %v605
      %v613 = vadd.f32 %v565, %v605
      %v614 = vadd.f32 %v567, %v605
      %v615 = vadd.f32 %v470, %v609
      %v616 = vadd.f32 %v472, %v609
      %v617 = vadd.f32 %v571, %v609
      %v618 = vadd.f32 %v573, %v609
      %619 = vset.pattern.permute.xlu0 4
      %620 = vperm.xlu0 %619, %v215
      %v621 = vpop.permute.xlu0 %620
      %623 = vset.pattern.permute.xlu0 4
      %624 = vperm.xlu0 %623, %v216
      %v625 = vpop.permute.xlu0 %624
      %v627 = vadd.f32 %v476, %v621
      %v628 = vadd.f32 %v478, %v621
      %v629 = vadd.f32 %v577, %v621
      %v630 = vadd.f32 %v579, %v621
      %v631 = vadd.f32 %v482, %v625
      %v632 = vadd.f32 %v484, %v625
      %v633 = vadd.f32 %v583, %v625
      %v634 = vadd.f32 %v585, %v625
      %v635 = vld [vmem:[%s2] sm:$0xff]
      %v636 = vld [vmem:[%s2 + $0x8] sm:$0xff]
      %637 = vxpose.xlu0.b32.start [1/16] %v611, 128
      %638 = vxpose.xlu0.b32.cont [2/16] 0.0, 128
      %639 = vxpose.xlu0.b32.cont [3/16] 0.0, 128
      %640 = vxpose.xlu0.b32.cont [4/16] 0.0, 128
      %641 = vxpose.xlu0.b32.cont [5/16] 0.0, 128
      %642 = vxpose.xlu0.b32.cont [6/16] 0.0, 128
      %643 = vxpose.xlu0.b32.cont [7/16] 0.0, 128
      %644 = vxpose.xlu0.b32.cont [8/16] 0.0, 128
      %645 = vxpose.xlu0.b32.cont [9/16] 0.0, 128
      %646 = vxpose.xlu0.b32.cont [10/16] 0.0, 128
      %647 = vxpose.xlu0.b32.cont [11/16] 0.0, 128
      %648 = vxpose.xlu0.b32.cont [12/16] 0.0, 128
      %649 = vxpose.xlu0.b32.cont [13/16] 0.0, 128
      %650 = vxpose.xlu0.b32.cont [14/16] 0.0, 128
      %651 = vxpose.xlu0.b32.cont [15/16] 0.0, 128
      %652 = vxpose.xlu0.b32.end [16/16] 0.0, 128
      %v653 = vpop.trf.xlu0
      %v654 = vpop.trf.xlu0
      %v655 = vpop.trf.xlu0
      %v656 = vpop.trf.xlu0
      %v657 = vpop.trf.xlu0
      %v658 = vpop.trf.xlu0
      %v659 = vpop.trf.xlu0
      %v660 = vpop.trf.xlu0
      %v661 = vpop.trf.xlu0
      %v662 = vpop.trf.xlu0
      %v663 = vpop.trf.xlu0
      %v664 = vpop.trf.xlu0
      %v665 = vpop.trf.xlu0
      %v666 = vpop.trf.xlu0
      %v667 = vpop.trf.xlu0
      %v668 = vpop.trf.xlu0
      %669 = vxpose.xlu0.b32.start [1/16] %v612, 128
      %670 = vxpose.xlu0.b32.cont [2/16] 0.0, 128
      %671 = vxpose.xlu0.b32.cont [3/16] 0.0, 128
      %672 = vxpose.xlu0.b32.cont [4/16] 0.0, 128
      %673 = vxpose.xlu0.b32.cont [5/16] 0.0, 128
      %674 = vxpose.xlu0.b32.cont [6/16] 0.0, 128
      %675 = vxpose.xlu0.b32.cont [7/16] 0.0, 128
      %676 = vxpose.xlu0.b32.cont [8/16] 0.0, 128
      %677 = vxpose.xlu0.b32.cont [9/16] 0.0, 128
      %678 = vxpose.xlu0.b32.cont [10/16] 0.0, 128
      %679 = vxpose.xlu0.b32.cont [11/16] 0.0, 128
      %680 = vxpose.xlu0.b32.cont [12/16] 0.0, 128
      %681 = vxpose.xlu0.b32.cont [13/16] 0.0, 128
      %682 = vxpose.xlu0.b32.cont [14/16] 0.0, 128
      %683 = vxpose.xlu0.b32.cont [15/16] 0.0, 128
      %684 = vxpose.xlu0.b32.end [16/16] 0.0, 128
      %v685 = vpop.trf.xlu0
      %v686 = vpop.trf.xlu0
      %v687 = vpop.trf.xlu0
      %v688 = vpop.trf.xlu0
      %v689 = vpop.trf.xlu0
      %v690 = vpop.trf.xlu0
      %v691 = vpop.trf.xlu0
      %v692 = vpop.trf.xlu0
      %v693 = vpop.trf.xlu0
      %v694 = vpop.trf.xlu0
      %v695 = vpop.trf.xlu0
      %v696 = vpop.trf.xlu0
      %v697 = vpop.trf.xlu0
      %v698 = vpop.trf.xlu0
      %v699 = vpop.trf.xlu0
      %v700 = vpop.trf.xlu0
      %vm701 = vcmask 64512
      %v703 = vsel %vm701, %v653, 0
      %v706 = vsel %vm701, %v654, 0
      %v709 = vsel %vm701, %v655, 0
      %v712 = vsel %vm701, %v656, 0
      %v715 = vsel %vm701, %v657, 0
      %v718 = vsel %vm701, %v658, 0
      %v721 = vsel %vm701, %v659, 0
      %v724 = vsel %vm701, %v660, 0
      %v727 = vsel %vm701, %v661, 0
      %v730 = vsel %vm701, %v662, 0
      %v733 = vsel %vm701, %v663, 0
      %v736 = vsel %vm701, %v664, 0
      %v739 = vsel %vm701, %v665, 0
      %v742 = vsel %vm701, %v666, 0
      %v745 = vsel %vm701, %v667, 0
      %v748 = vsel %vm701, %v668, 0
      %v751 = vsel %vm701, %v685, 0
      %v754 = vsel %vm701, %v686, 0
      %v757 = vsel %vm701, %v687, 0
      %v760 = vsel %vm701, %v688, 0
      %v763 = vsel %vm701, %v689, 0
      %v766 = vsel %vm701, %v690, 0
      %v769 = vsel %vm701, %v691, 0
      %v772 = vsel %vm701, %v692, 0
      %v775 = vsel %vm701, %v693, 0
      %v778 = vsel %vm701, %v694, 0
      %v781 = vsel %vm701, %v695, 0
      %v784 = vsel %vm701, %v696, 0
      %v787 = vsel %vm701, %v697, 0
      %v790 = vsel %vm701, %v698, 0
      %v793 = vsel %vm701, %v699, 0
      %v796 = vsel %vm701, %v700, 0
      %798 = vmatprep.subr.mxu0 %v596
      %799 = vmatpush1.msra.mxu0 %v595
      %800 = vmatprep.subr.mxu0 0.0
      %801 = vmatpush1.msra.mxu0 0.0
      %802 = vmatprep.subr.mxu0 0.0
      %803 = vmatpush1.msra.mxu0 0.0
      %804 = vmatprep.subr.mxu0 0.0
      %805 = vmatpush1.msra.mxu0 0.0
      %806 = vmatprep.subr.mxu0 0.0
      %807 = vmatpush1.msra.mxu0 0.0
      %808 = vmatprep.subr.mxu0 0.0
      %809 = vmatpush1.msra.mxu0 0.0
      %810 = vmatprep.subr.mxu0 0.0
      %811 = vmatpush1.msra.mxu0 0.0
      %812 = vmatprep.subr.mxu0 0.0
      %813 = vmatpush1.msra.mxu0 0.0
      %814 = vmatprep.subr.mxu0 0.0
      %815 = vmatpush1.msra.mxu0 0.0
      %816 = vmatprep.subr.mxu0 0.0
      %817 = vmatpush1.msra.mxu0 0.0
      %818 = vmatprep.subr.mxu0 0.0
      %819 = vmatpush1.msra.mxu0 0.0
      %820 = vmatprep.subr.mxu0 0.0
      %821 = vmatpush1.msra.mxu0 0.0
      %822 = vmatprep.subr.mxu0 0.0
      %823 = vmatpush1.msra.mxu0 0.0
      %824 = vmatprep.subr.mxu0 0.0
      %825 = vmatpush1.msra.mxu0 0.0
      %826 = vmatprep.subr.mxu0 0.0
      %827 = vmatpush1.msra.mxu0 0.0
      %828 = vmatprep.subr.mxu0 0.0
      %829 = vmatpush1.msra.mxu0 0.0
      %830 = vmatprep.subr.mxu0 0.0
      %831 = vmatpush1.msra.mxu0 0.0
      %832 = vmatprep.subr.mxu0 0.0
      %833 = vmatpush1.msra.mxu0 0.0
      %834 = vmatprep.subr.mxu0 0.0
      %835 = vmatpush1.msra.mxu0 0.0
      %836 = vmatprep.subr.mxu0 0.0
      %837 = vmatpush1.msra.mxu0 0.0
      %838 = vmatprep.subr.mxu0 0.0
      %839 = vmatpush1.msra.mxu0 0.0
      %840 = vmatprep.subr.mxu0 0.0
      %841 = vmatpush1.msra.mxu0 0.0
      %842 = vmatprep.subr.mxu0 0.0
      %843 = vmatpush1.msra.mxu0 0.0
      %844 = vmatprep.subr.mxu0 0.0
      %845 = vmatpush1.msra.mxu0 0.0
      %846 = vmatprep.subr.mxu0 0.0
      %847 = vmatpush1.msra.mxu0 0.0
      %848 = vmatprep.subr.mxu0 0.0
      %849 = vmatpush1.msra.mxu0 0.0
      %850 = vmatprep.subr.mxu0 0.0
      %851 = vmatpush1.msra.mxu0 0.0
      %852 = vmatprep.subr.mxu0 0.0
      %853 = vmatpush1.msra.mxu0 0.0
      %854 = vmatprep.subr.mxu0 0.0
      %855 = vmatpush1.msra.mxu0 0.0
      %856 = vmatprep.subr.mxu0 0.0
      %857 = vmatpush1.msra.mxu0 0.0
      %858 = vmatprep.subr.mxu0 0.0
      %859 = vmatpush1.msra.mxu0 0.0
      %860 = vmatprep.subr.mxu0 0.0
      %861 = vmatpush1.msra.mxu0 0.0
      %862 = vmatprep.mubr.f32.mxu0 0.0
      %863 = vmatmul.mubr.f32.gmra.mrb[0].mxu0 %v703
      %v864 = vpop.f32.mrb[0].mxu0
      %v865 = vadd.f32 0.0, %v864
      %v866 = vpop.f32.mrb[0].mxu0
      %v867 = vadd.f32 0.0, %v866
      %868 = vmatprep.mubr.f32.mxu0 0.0
      %869 = vmatmul.mubr.f32.gmra.mrb[0].mxu0 %v706
      %v870 = vpop.f32.mrb[0].mxu0
      %v871 = vadd.f32 0.0, %v870
      %v872 = vpop.f32.mrb[0].mxu0
      %v873 = vadd.f32 0.0, %v872
      %874 = vmatprep.mubr.f32.mxu0 0.0
      %875 = vmatmul.mubr.f32.gmra.mrb[0].mxu0 %v709
      %v876 = vpop.f32.mrb[0].mxu0
      %v877 = vadd.f32 0.0, %v876
      %v878 = vpop.f32.mrb[0].mxu0
      %v879 = vadd.f32 0.0, %v878
      %880 = vmatprep.mubr.f32.mxu0 0.0
      %881 = vmatmul.mubr.f32.gmra.mrb[0].mxu0 %v712
      %v882 = vpop.f32.mrb[0].mxu0
      %v883 = vadd.f32 0.0, %v882
      %v884 = vpop.f32.mrb[0].mxu0
      %v885 = vadd.f32 0.0, %v884
      %886 = vmatprep.mubr.f32.mxu0 0.0
      %887 = vmatmul.mubr.f32.gmra.mrb[0].mxu0 %v715
      %v888 = vpop.f32.mrb[0].mxu0
      %v889 = vadd.f32 0.0, %v888
      %v890 = vpop.f32.mrb[0].mxu0
      %v891 = vadd.f32 0.0, %v890
      %892 = vmatprep.mubr.f32.mxu0 0.0
      %893 = vmatmul.mubr.f32.gmra.mrb[0].mxu0 %v718
      %v894 = vpop.f32.mrb[0].mxu0
      %v895 = vadd.f32 0.0, %v894
      %v896 = vpop.f32.mrb[0].mxu0
      %v897 = vadd.f32 0.0, %v896
      %898 = vmatprep.mubr.f32.mxu0 0.0
      %899 = vmatmul.mubr.f32.gmra.mrb[0].mxu0 %v721
      %v900 = vpop.f32.mrb[0].mxu0
      %v901 = vadd.f32 0.0, %v900
      %v902 = vpop.f32.mrb[0].mxu0
      %v903 = vadd.f32 0.0, %v902
      %904 = vmatprep.mubr.f32.mxu0 0.0
      %905 = vmatmul.mubr.f32.gmra.mrb[0].mxu0 %v724
      %v906 = vpop.f32.mrb[0].mxu0
      %v907 = vadd.f32 0.0, %v906
      %v908 = vpop.f32.mrb[0].mxu0
      %v909 = vadd.f32 0.0, %v908
      %910 = vmatprep.mubr.f32.mxu0 0.0
      %911 = vmatmul.mubr.f32.gmra.mrb[0].mxu0 %v727
      %v912 = vpop.f32.mrb[0].mxu0
      %v913 = vadd.f32 0.0, %v912
      %v914 = vpop.f32.mrb[0].mxu0
      %v915 = vadd.f32 0.0, %v914
      %916 = vmatprep.mubr.f32.mxu0 0.0
      %917 = vmatmul.mubr.f32.gmra.mrb[0].mxu0 %v730
      %v918 = vpop.f32.mrb[0].mxu0
      %v919 = vadd.f32 0.0, %v918
      %v920 = vpop.f32.mrb[0].mxu0
      %v921 = vadd.f32 0.0, %v920
      %922 = vmatprep.mubr.f32.mxu0 0.0
      %923 = vmatmul.mubr.f32.gmra.mrb[0].mxu0 %v733
      %v924 = vpop.f32.mrb[0].mxu0
      %v925 = vadd.f32 0.0, %v924
      %v926 = vpop.f32.mrb[0].mxu0
      %v927 = vadd.f32 0.0, %v926
      %928 = vmatprep.mubr.f32.mxu0 0.0
      %929 = vmatmul.mubr.f32.gmra.mrb[0].mxu0 %v736
      %v930 = vpop.f32.mrb[0].mxu0
      %v931 = vadd.f32 0.0, %v930
      %v932 = vpop.f32.mrb[0].mxu0
      %v933 = vadd.f32 0.0, %v932
      %934 = vmatprep.mubr.f32.mxu0 0.0
      %935 = vmatmul.mubr.f32.gmra.mrb[0].mxu0 %v739
      %v936 = vpop.f32.mrb[0].mxu0
      %v937 = vadd.f32 0.0, %v936
      %v938 = vpop.f32.mrb[0].mxu0
      %v939 = vadd.f32 0.0, %v938
      %940 = vmatprep.mubr.f32.mxu0 0.0
      %941 = vmatmul.mubr.f32.gmra.mrb[0].mxu0 %v742
      %v942 = vpop.f32.mrb[0].mxu0
      %v943 = vadd.f32 0.0, %v942
      %v944 = vpop.f32.mrb[0].mxu0
      %v945 = vadd.f32 0.0, %v944
      %946 = vmatprep.mubr.f32.mxu0 0.0
      %947 = vmatmul.mubr.f32.gmra.mrb[0].mxu0 %v745
      %v948 = vpop.f32.mrb[0].mxu0
      %v949 = vadd.f32 0.0, %v948
      %v950 = vpop.f32.mrb[0].mxu0
      %v951 = vadd.f32 0.0, %v950
      %952 = vmatprep.mubr.f32.mxu0 0.0
      %953 = vmatmul.mubr.f32.gmra.mrb[0].mxu0 %v748
      %v954 = vpop.f32.mrb[0].mxu0
      %v955 = vadd.f32 0.0, %v954
      %v956 = vpop.f32.mrb[0].mxu0
      %v957 = vadd.f32 0.0, %v956
      %958 = vmatprep.mubr.f32.mxu0 0.0
      %959 = vmatmul.mubr.f32.gmra.mrb[0].mxu0 %v751
      %v960 = vpop.f32.mrb[0].mxu0
      %v961 = vadd.f32 0.0, %v960
      %v962 = vpop.f32.mrb[0].mxu0
      %v963 = vadd.f32 0.0, %v962
      %964 = vmatprep.mubr.f32.mxu0 0.0
      %965 = vmatmul.mubr.f32.gmra.mrb[0].mxu0 %v754
      %v966 = vpop.f32.mrb[0].mxu0
      %v967 = vadd.f32 0.0, %v966
      %v968 = vpop.f32.mrb[0].mxu0
      %v969 = vadd.f32 0.0, %v968
      %970 = vmatprep.mubr.f32.mxu0 0.0
      %971 = vmatmul.mubr.f32.gmra.mrb[0].mxu0 %v757
      %v972 = vpop.f32.mrb[0].mxu0
      %v973 = vadd.f32 0.0, %v972
      %v974 = vpop.f32.mrb[0].mxu0
      %v975 = vadd.f32 0.0, %v974
      %976 = vmatprep.mubr.f32.mxu0 0.0
      %977 = vmatmul.mubr.f32.gmra.mrb[0].mxu0 %v760
      %v978 = vpop.f32.mrb[0].mxu0
      %v979 = vadd.f32 0.0, %v978
      %v980 = vpop.f32.mrb[0].mxu0
      %v981 = vadd.f32 0.0, %v980
      %982 = vmatprep.mubr.f32.mxu0 0.0
      %983 = vmatmul.mubr.f32.gmra.mrb[0].mxu0 %v763
      %v984 = vpop.f32.mrb[0].mxu0
      %v985 = vadd.f32 0.0, %v984
      %v986 = vpop.f32.mrb[0].mxu0
      %v987 = vadd.f32 0.0, %v986
      %988 = vmatprep.mubr.f32.mxu0 0.0
      %989 = vmatmul.mubr.f32.gmra.mrb[0].mxu0 %v766
      %v990 = vpop.f32.mrb[0].mxu0
      %v991 = vadd.f32 0.0, %v990
      %v992 = vpop.f32.mrb[0].mxu0
      %v993 = vadd.f32 0.0, %v992
      %994 = vmatprep.mubr.f32.mxu0 0.0
      %995 = vmatmul.mubr.f32.gmra.mrb[0].mxu0 %v769
      %v996 = vpop.f32.mrb[0].mxu0
      %v997 = vadd.f32 0.0, %v996
      %v998 = vpop.f32.mrb[0].mxu0
      %v999 = vadd.f32 0.0, %v998
      %1000 = vmatprep.mubr.f32.mxu0 0.0
      %1001 = vmatmul.mubr.f32.gmra.mrb[0].mxu0 %v772
      %v1002 = vpop.f32.mrb[0].mxu0
      %v1003 = vadd.f32 0.0, %v1002
      %v1004 = vpop.f32.mrb[0].mxu0
      %v1005 = vadd.f32 0.0, %v1004
      %1006 = vmatprep.mubr.f32.mxu0 0.0
      %1007 = vmatmul.mubr.f32.gmra.mrb[0].mxu0 %v775
      %v1008 = vpop.f32.mrb[0].mxu0
      %v1009 = vadd.f32 0.0, %v1008
      %v1010 = vpop.f32.mrb[0].mxu0
      %v1011 = vadd.f32 0.0, %v1010
      %1012 = vmatprep.mubr.f32.mxu0 0.0
      %1013 = vmatmul.mubr.f32.gmra.mrb[0].mxu0 %v778
      %v1014 = vpop.f32.mrb[0].mxu0
      %v1015 = vadd.f32 0.0, %v1014
      %v1016 = vpop.f32.mrb[0].mxu0
      %v1017 = vadd.f32 0.0, %v1016
      %1018 = vmatprep.mubr.f32.mxu0 0.0
      %1019 = vmatmul.mubr.f32.gmra.mrb[0].mxu0 %v781
      %v1020 = vpop.f32.mrb[0].mxu0
      %v1021 = vadd.f32 0.0, %v1020
      %v1022 = vpop.f32.mrb[0].mxu0
      %v1023 = vadd.f32 0.0, %v1022
      %1024 = vmatprep.mubr.f32.mxu0 0.0
      %1025 = vmatmul.mubr.f32.gmra.mrb[0].mxu0 %v784
      %v1026 = vpop.f32.mrb[0].mxu0
      %v1027 = vadd.f32 0.0, %v1026
      %v1028 = vpop.f32.mrb[0].mxu0
      %v1029 = vadd.f32 0.0, %v1028
      %1030 = vmatprep.mubr.f32.mxu0 0.0
      %1031 = vmatmul.mubr.f32.gmra.mrb[0].mxu0 %v787
      %v1032 = vpop.f32.mrb[0].mxu0
      %v1033 = vadd.f32 0.0, %v1032
      %v1034 = vpop.f32.mrb[0].mxu0
      %v1035 = vadd.f32 0.0, %v1034
      %1036 = vmatprep.mubr.f32.mxu0 0.0
      %1037 = vmatmul.mubr.f32.gmra.mrb[0].mxu0 %v790
      %v1038 = vpop.f32.mrb[0].mxu0
      %v1039 = vadd.f32 0.0, %v1038
      %v1040 = vpop.f32.mrb[0].mxu0
      %v1041 = vadd.f32 0.0, %v1040
      %1042 = vmatprep.mubr.f32.mxu0 0.0
      %1043 = vmatmul.mubr.f32.gmra.mrb[0].mxu0 %v793
      %v1044 = vpop.f32.mrb[0].mxu0
      %v1045 = vadd.f32 0.0, %v1044
      %v1046 = vpop.f32.mrb[0].mxu0
      %v1047 = vadd.f32 0.0, %v1046
      %1048 = vmatprep.mubr.f32.mxu0 0.0
      %1049 = vmatmul.mubr.f32.gmra.mrb[0].mxu0 %v796
      %v1050 = vpop.f32.mrb[0].mxu0
      %v1051 = vadd.f32 0.0, %v1050
      %v1052 = vpop.f32.mrb[0].mxu0
      %v1053 = vadd.f32 0.0, %v1052
      %1054 = vdwg.mxu0
      %v1055 = vmax.f32 %v865, %v877
      %v1056 = vmax.f32 %v871, %v883
      %v1057 = vmax.f32 %v1055, %v889
      %v1058 = vmax.f32 %v1056, %v895
      %v1059 = vmax.f32 %v1057, %v901
      %v1060 = vmax.f32 %v1058, %v907
      %v1061 = vmax.f32 %v1059, %v913
      %v1062 = vmax.f32 %v1060, %v919
      %v1063 = vmax.f32 %v1061, %v925
      %v1064 = vmax.f32 %v1062, %v931
      %v1065 = vmax.f32 %v1063, %v937
      %v1066 = vmax.f32 %v1064, %v943
      %v1067 = vmax.f32 %v1065, %v949
      %v1068 = vmax.f32 %v1066, %v955
      %v1069 = vmax.f32 %v1067, %v961
      %v1070 = vmax.f32 %v1068, %v967
      %v1071 = vmax.f32 %v1069, %v973
      %v1072 = vmax.f32 %v1070, %v979
      %v1073 = vmax.f32 %v1071, %v985
      %v1074 = vmax.f32 %v1072, %v991
      %v1075 = vmax.f32 %v1073, %v997
      %v1076 = vmax.f32 %v1074, %v1003
      %v1077 = vmax.f32 %v1075, %v1009
      %v1078 = vmax.f32 %v1076, %v1015
      %v1079 = vmax.f32 %v1077, %v1021
      %v1080 = vmax.f32 %v1078, %v1027
      %v1081 = vmax.f32 %v1079, %v1033
      %v1082 = vmax.f32 %v1080, %v1039
      %v1083 = vmax.f32 %v1081, %v1045
      %v1084 = vmax.f32 %v1082, %v1051
      %v1085 = vmax.f32 %v1083, %v1084
      %v1086 = vrot.slane %v1085, 4
      %v1087 = vmax.f32 %v1085, %v1086
      %v1088 = vrot.slane %v1087, 2
      %v1089 = vmax.f32 %v1087, %v1088
      %v1090 = vrot.slane %v1089, 1
      %v1091 = vmax.f32 %v1089, %v1090
      %v1092 = vmax.f32 %v867, %v879
      %v1093 = vmax.f32 %v873, %v885
      %v1094 = vmax.f32 %v1092, %v891
      %v1095 = vmax.f32 %v1093, %v897
      %v1096 = vmax.f32 %v1094, %v903
      %v1097 = vmax.f32 %v1095, %v909
      %v1098 = vmax.f32 %v1096, %v915
      %v1099 = vmax.f32 %v1097, %v921
      %v1100 = vmax.f32 %v1098, %v927
      %v1101 = vmax.f32 %v1099, %v933
      %v1102 = vmax.f32 %v1100, %v939
      %v1103 = vmax.f32 %v1101, %v945
      %v1104 = vmax.f32 %v1102, %v951
      %v1105 = vmax.f32 %v1103, %v957
      %v1106 = vmax.f32 %v1104, %v963
      %v1107 = vmax.f32 %v1105, %v969
      %v1108 = vmax.f32 %v1106, %v975
      %v1109 = vmax.f32 %v1107, %v981
      %v1110 = vmax.f32 %v1108, %v987
      %v1111 = vmax.f32 %v1109, %v993
      %v1112 = vmax.f32 %v1110, %v999
      %v1113 = vmax.f32 %v1111, %v1005
      %v1114 = vmax.f32 %v1112, %v1011
      %v1115 = vmax.f32 %v1113, %v1017
      %v1116 = vmax.f32 %v1114, %v1023
      %v1117 = vmax.f32 %v1115, %v1029
      %v1118 = vmax.f32 %v1116, %v1035
      %v1119 = vmax.f32 %v1117, %v1041
      %v1120 = vmax.f32 %v1118, %v1047
      %v1121 = vmax.f32 %v1119, %v1053
      %v1122 = vmax.f32 %v1120, %v1121
      %v1123 = vrot.slane %v1122, 4
      %v1124 = vmax.f32 %v1122, %v1123
      %v1125 = vrot.slane %v1124, 2
      %v1126 = vmax.f32 %v1124, %v1125
      %v1127 = vrot.slane %v1126, 1
      %v1128 = vmax.f32 %v1126, %v1127
      %v1129 = vsub.f32 %v865, %v1091
      %v1130 = vsub.f32 %v867, %v1128
      %v1131 = vsub.f32 %v871, %v1091
      %v1132 = vsub.f32 %v873, %v1128
      %v1133 = vsub.f32 %v877, %v1091
      %v1134 = vsub.f32 %v879, %v1128
      %v1135 = vsub.f32 %v883, %v1091
      %v1136 = vsub.f32 %v885, %v1128
      %v1137 = vsub.f32 %v889, %v1091
      %v1138 = vsub.f32 %v891, %v1128
      %v1139 = vsub.f32 %v895, %v1091
      %v1140 = vsub.f32 %v897, %v1128
      %v1141 = vsub.f32 %v901, %v1091
      %v1142 = vsub.f32 %v903, %v1128
      %v1143 = vsub.f32 %v907, %v1091
      %v1144 = vsub.f32 %v909, %v1128
      %v1145 = vsub.f32 %v913, %v1091
      %v1146 = vsub.f32 %v915, %v1128
      %v1147 = vsub.f32 %v919, %v1091
      %v1148 = vsub.f32 %v921, %v1128
      %v1149 = vsub.f32 %v925, %v1091
      %v1150 = vsub.f32 %v927, %v1128
      %v1151 = vsub.f32 %v931, %v1091
      %v1152 = vsub.f32 %v933, %v1128
      %v1153 = vsub.f32 %v937, %v1091
      %v1154 = vsub.f32 %v939, %v1128
      %v1155 = vsub.f32 %v943, %v1091
      %v1156 = vsub.f32 %v945, %v1128
      %v1157 = vsub.f32 %v949, %v1091
      %v1158 = vsub.f32 %v951, %v1128
      %v1159 = vsub.f32 %v955, %v1091
      %v1160 = vsub.f32 %v957, %v1128
      %v1161 = vsub.f32 %v961, %v1091
      %v1162 = vsub.f32 %v963, %v1128
      %v1163 = vsub.f32 %v967, %v1091
      %v1164 = vsub.f32 %v969, %v1128
      %v1165 = vsub.f32 %v973, %v1091
      %v1166 = vsub.f32 %v975, %v1128
      %v1167 = vsub.f32 %v979, %v1091
      %v1168 = vsub.f32 %v981, %v1128
      %v1169 = vsub.f32 %v985, %v1091
      %v1170 = vsub.f32 %v987, %v1128
      %v1171 = vsub.f32 %v991, %v1091
      %v1172 = vsub.f32 %v993, %v1128
      %v1173 = vsub.f32 %v997, %v1091
      %v1174 = vsub.f32 %v999, %v1128
      %v1175 = vsub.f32 %v1003, %v1091
      %v1176 = vsub.f32 %v1005, %v1128
      %v1177 = vsub.f32 %v1009, %v1091
      %v1178 = vsub.f32 %v1011, %v1128
      %v1179 = vsub.f32 %v1015, %v1091
      %v1180 = vsub.f32 %v1017, %v1128
      %v1181 = vsub.f32 %v1021, %v1091
      %v1182 = vsub.f32 %v1023, %v1128
      %v1183 = vsub.f32 %v1027, %v1091
      %v1184 = vsub.f32 %v1029, %v1128
      %v1185 = vsub.f32 %v1033, %v1091
      %v1186 = vsub.f32 %v1035, %v1128
      %v1187 = vsub.f32 %v1039, %v1091
      %v1188 = vsub.f32 %v1041, %v1128
      %v1189 = vsub.f32 %v1045, %v1091
      %v1190 = vsub.f32 %v1047, %v1128
      %v1191 = vsub.f32 %v1051, %v1091
      %v1192 = vsub.f32 %v1053, %v1128
      %v1193 = vmul.f32 %v1129, 1.442695
      %v1194 = vpow.pop %v1193
      %v1195 = vmul.f32 %v1130, 1.442695
      %v1196 = vpow.pop %v1195
      %v1197 = vmul.f32 %v1131, 1.442695
      %v1198 = vpow.pop %v1197
      %v1199 = vmul.f32 %v1132, 1.442695
      %v1200 = vpow.pop %v1199
      %v1201 = vmul.f32 %v1133, 1.442695
      %v1202 = vpow.pop %v1201
      %v1203 = vmul.f32 %v1134, 1.442695
      %v1204 = vpow.pop %v1203
      %v1205 = vmul.f32 %v1135, 1.442695
      %v1206 = vpow.pop %v1205
      %v1207 = vmul.f32 %v1136, 1.442695
      %v1208 = vpow.pop %v1207
      %v1209 = vmul.f32 %v1137, 1.442695
      %v1210 = vpow.pop %v1209
      %v1211 = vmul.f32 %v1138, 1.442695
      %v1212 = vpow.pop %v1211
      %v1213 = vmul.f32 %v1139, 1.442695
      %v1214 = vpow.pop %v1213
      %v1215 = vmul.f32 %v1140, 1.442695
      %v1216 = vpow.pop %v1215
      %v1217 = vmul.f32 %v1141, 1.442695
      %v1218 = vpow.pop %v1217
      %v1219 = vmul.f32 %v1142, 1.442695
      %v1220 = vpow.pop %v1219
      %v1221 = vmul.f32 %v1143, 1.442695
      %v1222 = vpow.pop %v1221
      %v1223 = vmul.f32 %v1144, 1.442695
      %v1224 = vpow.pop %v1223
      %v1225 = vmul.f32 %v1145, 1.442695
      %v1226 = vpow.pop %v1225
      %v1227 = vmul.f32 %v1146, 1.442695
      %v1228 = vpow.pop %v1227
      %v1229 = vmul.f32 %v1147, 1.442695
      %v1230 = vpow.pop %v1229
      %v1231 = vmul.f32 %v1148, 1.442695
      %v1232 = vpow.pop %v1231
      %v1233 = vmul.f32 %v1149, 1.442695
      %v1234 = vpow.pop %v1233
      %v1235 = vmul.f32 %v1150, 1.442695
      %v1236 = vpow.pop %v1235
      %v1237 = vmul.f32 %v1151, 1.442695
      %v1238 = vpow.pop %v1237
      %v1239 = vmul.f32 %v1152, 1.442695
      %v1240 = vpow.pop %v1239
      %v1241 = vmul.f32 %v1153, 1.442695
      %v1242 = vpow.pop %v1241
      %v1243 = vmul.f32 %v1154, 1.442695
      %v1244 = vpow.pop %v1243
      %v1245 = vmul.f32 %v1155, 1.442695
      %v1246 = vpow.pop %v1245
      %v1247 = vmul.f32 %v1156, 1.442695
      %v1248 = vpow.pop %v1247
      %v1249 = vmul.f32 %v1157, 1.442695
      %v1250 = vpow.pop %v1249
      %v1251 = vmul.f32 %v1158, 1.442695
      %v1252 = vpow.pop %v1251
      %v1253 = vmul.f32 %v1159, 1.442695
      %v1254 = vpow.pop %v1253
      %v1255 = vmul.f32 %v1160, 1.442695
      %v1256 = vpow.pop %v1255
      %v1257 = vmul.f32 %v1161, 1.442695
      %v1258 = vpow.pop %v1257
      %v1259 = vmul.f32 %v1162, 1.442695
      %v1260 = vpow.pop %v1259
      %v1261 = vmul.f32 %v1163, 1.442695
      %v1262 = vpow.pop %v1261
      %v1263 = vmul.f32 %v1164, 1.442695
      %v1264 = vpow.pop %v1263
      %v1265 = vmul.f32 %v1165, 1.442695
      %v1266 = vpow.pop %v1265
      %v1267 = vmul.f32 %v1166, 1.442695
      %v1268 = vpow.pop %v1267
      %v1269 = vmul.f32 %v1167, 1.442695
      %v1270 = vpow.pop %v1269
      %v1271 = vmul.f32 %v1168, 1.442695
      %v1272 = vpow.pop %v1271
      %v1273 = vmul.f32 %v1169, 1.442695
      %v1274 = vpow.pop %v1273
      %v1275 = vmul.f32 %v1170, 1.442695
      %v1276 = vpow.pop %v1275
      %v1277 = vmul.f32 %v1171, 1.442695
      %v1278 = vpow.pop %v1277
      %v1279 = vmul.f32 %v1172, 1.442695
      %v1280 = vpow.pop %v1279
      %v1281 = vmul.f32 %v1173, 1.442695
      %v1282 = vpow.pop %v1281
      %v1283 = vmul.f32 %v1174, 1.442695
      %v1284 = vpow.pop %v1283
      %v1285 = vmul.f32 %v1175, 1.442695
      %v1286 = vpow.pop %v1285
      %v1287 = vmul.f32 %v1176, 1.442695
      %v1288 = vpow.pop %v1287
      %v1289 = vmul.f32 %v1177, 1.442695
      %v1290 = vpow.pop %v1289
      %v1291 = vmul.f32 %v1178, 1.442695
      %v1292 = vpow.pop %v1291
      %v1293 = vmul.f32 %v1179, 1.442695
      %v1294 = vpow.pop %v1293
      %v1295 = vmul.f32 %v1180, 1.442695
      %v1296 = vpow.pop %v1295
      %v1297 = vmul.f32 %v1181, 1.442695
      %v1298 = vpow.pop %v1297
      %v1299 = vmul.f32 %v1182, 1.442695
      %v1300 = vpow.pop %v1299
      %v1301 = vmul.f32 %v1183, 1.442695
      %v1302 = vpow.pop %v1301
      %v1303 = vmul.f32 %v1184, 1.442695
      %v1304 = vpow.pop %v1303
      %v1305 = vmul.f32 %v1185, 1.442695
      %v1306 = vpow.pop %v1305
      %v1307 = vmul.f32 %v1186, 1.442695
      %v1308 = vpow.pop %v1307
      %v1309 = vmul.f32 %v1187, 1.442695
      %v1310 = vpow.pop %v1309
      %v1311 = vmul.f32 %v1188, 1.442695
      %v1312 = vpow.pop %v1311
      %v1313 = vmul.f32 %v1189, 1.442695
      %v1314 = vpow.pop %v1313
      %v1315 = vmul.f32 %v1190, 1.442695
      %v1316 = vpow.pop %v1315
      %v1317 = vmul.f32 %v1191, 1.442695
      %v1318 = vpow.pop %v1317
      %v1319 = vmul.f32 %v1192, 1.442695
      %v1320 = vpow.pop %v1319
      %v1321 = vadd.f32 %v1194, %v1198
      %v1322 = vadd.f32 %v1321, %v1202
      %v1323 = vadd.f32 %v1322, %v1206
      %v1324 = vadd.f32 %v1323, %v1210
      %v1325 = vadd.f32 %v1324, %v1214
      %v1326 = vadd.f32 %v1325, %v1218
      %v1327 = vadd.f32 %v1326, %v1222
      %v1328 = vadd.f32 %v1327, %v1226
      %v1329 = vadd.f32 %v1328, %v1230
      %v1330 = vadd.f32 %v1329, %v1234
      %v1331 = vadd.f32 %v1330, %v1238
      %v1332 = vadd.f32 %v1331, %v1242
      %v1333 = vadd.f32 %v1332, %v1246
      %v1334 = vadd.f32 %v1333, %v1250
      %v1335 = vadd.f32 %v1334, %v1254
      %v1336 = vadd.f32 %v1335, %v1258
      %v1337 = vadd.f32 %v1336, %v1262
      %v1338 = vadd.f32 %v1337, %v1266
      %v1339 = vadd.f32 %v1338, %v1270
      %v1340 = vadd.f32 %v1339, %v1274
      %v1341 = vadd.f32 %v1340, %v1278
      %v1342 = vadd.f32 %v1341, %v1282
      %v1343 = vadd.f32 %v1342, %v1286
      %v1344 = vadd.f32 %v1343, %v1290
      %v1345 = vadd.f32 %v1344, %v1294
      %v1346 = vadd.f32 %v1345, %v1298
      %v1347 = vadd.f32 %v1346, %v1302
      %v1348 = vadd.f32 %v1347, %v1306
      %v1349 = vadd.f32 %v1348, %v1310
      %v1350 = vadd.f32 %v1349, %v1314
      %v1351 = vadd.f32 %v1350, %v1318
      %v1352 = vrot.slane %v1351, 4
      %v1353 = vadd.f32 %v1351, %v1352
      %v1354 = vrot.slane %v1353, 2
      %v1355 = vadd.f32 %v1353, %v1354
      %v1356 = vrot.slane %v1355, 1
      %v1357 = vadd.f32 %v1355, %v1356
      %v1358 = vadd.f32 %v1196, %v1200
      %v1359 = vadd.f32 %v1358, %v1204
      %v1360 = vadd.f32 %v1359, %v1208
      %v1361 = vadd.f32 %v1360, %v1212
      %v1362 = vadd.f32 %v1361, %v1216
      %v1363 = vadd.f32 %v1362, %v1220
      %v1364 = vadd.f32 %v1363, %v1224
      %v1365 = vadd.f32 %v1364, %v1228
      %v1366 = vadd.f32 %v1365, %v1232
      %v1367 = vadd.f32 %v1366, %v1236
      %v1368 = vadd.f32 %v1367, %v1240
      %v1369 = vadd.f32 %v1368, %v1244
      %v1370 = vadd.f32 %v1369, %v1248
      %v1371 = vadd.f32 %v1370, %v1252
      %v1372 = vadd.f32 %v1371, %v1256
      %v1373 = vadd.f32 %v1372, %v1260
      %v1374 = vadd.f32 %v1373, %v1264
      %v1375 = vadd.f32 %v1374, %v1268
      %v1376 = vadd.f32 %v1375, %v1272
      %v1377 = vadd.f32 %v1376, %v1276
      %v1378 = vadd.f32 %v1377, %v1280
      %v1379 = vadd.f32 %v1378, %v1284
      %v1380 = vadd.f32 %v1379, %v1288
      %v1381 = vadd.f32 %v1380, %v1292
      %v1382 = vadd.f32 %v1381, %v1296
      %v1383 = vadd.f32 %v1382, %v1300
      %v1384 = vadd.f32 %v1383, %v1304
      %v1385 = vadd.f32 %v1384, %v1308
      %v1386 = vadd.f32 %v1385, %v1312
      %v1387 = vadd.f32 %v1386, %v1316
      %v1388 = vadd.f32 %v1387, %v1320
      %v1389 = vrot.slane %v1388, 4
      %v1390 = vadd.f32 %v1388, %v1389
      %v1391 = vrot.slane %v1390, 2
      %v1392 = vadd.f32 %v1390, %v1391
      %v1393 = vrot.slane %v1392, 1
      %v1394 = vadd.f32 %v1392, %v1393
      %v1395 = vrcp.pop %v1357
      %v1396 = vmul.f32 1.0, %v1395
      %v1397 = vrcp.pop %v1394
      %v1398 = vmul.f32 1.0, %v1397
      %1399 = vmatprep.subr.mxu0 %v1196
      %1400 = vmatpush1.msra.mxu0 %v1194
      %1401 = vmatprep.subr.mxu0 %v1200
      %1402 = vmatpush1.msra.mxu0 %v1198
      %1403 = vmatprep.subr.mxu0 %v1204
      %1404 = vmatpush1.msra.mxu0 %v1202
      %1405 = vmatprep.subr.mxu0 %v1208
      %1406 = vmatpush1.msra.mxu0 %v1206
      %1407 = vmatprep.subr.mxu0 %v1212
      %1408 = vmatpush1.msra.mxu0 %v1210
      %1409 = vmatprep.subr.mxu0 %v1216
      %1410 = vmatpush1.msra.mxu0 %v1214
      %1411 = vmatprep.subr.mxu0 %v1220
      %1412 = vmatpush1.msra.mxu0 %v1218
      %1413 = vmatprep.subr.mxu0 %v1224
      %1414 = vmatpush1.msra.mxu0 %v1222
      %1415 = vmatprep.subr.mxu0 %v1228
      %1416 = vmatpush1.msra.mxu0 %v1226
      %1417 = vmatprep.subr.mxu0 %v1232
      %1418 = vmatpush1.msra.mxu0 %v1230
      %1419 = vmatprep.subr.mxu0 %v1236
      %1420 = vmatpush1.msra.mxu0 %v1234
      %1421 = vmatprep.subr.mxu0 %v1240
      %1422 = vmatpush1.msra.mxu0 %v1238
      %1423 = vmatprep.subr.mxu0 %v1244
      %1424 = vmatpush1.msra.mxu0 %v1242
      %1425 = vmatprep.subr.mxu0 %v1248
      %1426 = vmatpush1.msra.mxu0 %v1246
      %1427 = vmatprep.subr.mxu0 %v1252
      %1428 = vmatpush1.msra.mxu0 %v1250
      %1429 = vmatprep.subr.mxu0 %v1256
      %1430 = vmatpush1.msra.mxu0 %v1254
      %1431 = vmatprep.subr.mxu0 %v1260
      %1432 = vmatpush1.msra.mxu0 %v1258
      %1433 = vmatprep.subr.mxu0 %v1264
      %1434 = vmatpush1.msra.mxu0 %v1262
      %1435 = vmatprep.subr.mxu0 %v1268
      %1436 = vmatpush1.msra.mxu0 %v1266
      %1437 = vmatprep.subr.mxu0 %v1272
      %1438 = vmatpush1.msra.mxu0 %v1270
      %1439 = vmatprep.subr.mxu0 %v1276
      %1440 = vmatpush1.msra.mxu0 %v1274
      %1441 = vmatprep.subr.mxu0 %v1280
      %1442 = vmatpush1.msra.mxu0 %v1278
      %1443 = vmatprep.subr.mxu0 %v1284
      %1444 = vmatpush1.msra.mxu0 %v1282
      %1445 = vmatprep.subr.mxu0 %v1288
      %1446 = vmatpush1.msra.mxu0 %v1286
      %1447 = vmatprep.subr.mxu0 %v1292
      %1448 = vmatpush1.msra.mxu0 %v1290
      %1449 = vmatprep.subr.mxu0 %v1296
      %1450 = vmatpush1.msra.mxu0 %v1294
      %1451 = vmatprep.subr.mxu0 %v1300
      %1452 = vmatpush1.msra.mxu0 %v1298
      %1453 = vmatprep.subr.mxu0 %v1304
      %1454 = vmatpush1.msra.mxu0 %v1302
      %1455 = vmatprep.subr.mxu0 %v1308
      %1456 = vmatpush1.msra.mxu0 %v1306
      %1457 = vmatprep.subr.mxu0 %v1312
      %1458 = vmatpush1.msra.mxu0 %v1310
      %1459 = vmatprep.subr.mxu0 %v1316
      %1460 = vmatpush1.msra.mxu0 %v1314
      %1461 = vmatprep.subr.mxu0 %v1320
      %1462 = vmatpush1.msra.mxu0 %v1318
      %1463 = vmatprep.mubr.f32.mxu0 %v628
      %1464 = vmatmul.mubr.f32.gmra.mrb[0].mxu0 %v627
      %v1465 = vpop.f32.mrb[0].mxu0
      %v1466 = vadd.f32 0.0, %v1465
      %v1467 = vpop.f32.mrb[0].mxu0
      %v1468 = vadd.f32 0.0, %v1467
      %1469 = vdwg.mxu0
      %v1470 = vmul.f32 %v1466, %v1396
      %v1471 = vmul.f32 %v1468, %v1398
      %1472 = vxpose.xlu0.b32.start [1/16] %v615, 128
      %1473 = vxpose.xlu0.b32.cont [2/16] 0.0, 128
      %1474 = vxpose.xlu0.b32.cont [3/16] 0.0, 128
      %1475 = vxpose.xlu0.b32.cont [4/16] 0.0, 128
      %1476 = vxpose.xlu0.b32.cont [5/16] 0.0, 128
      %1477 = vxpose.xlu0.b32.cont [6/16] 0.0, 128
      %1478 = vxpose.xlu0.b32.cont [7/16] 0.0, 128
      %1479 = vxpose.xlu0.b32.cont [8/16] 0.0, 128
      %1480 = vxpose.xlu0.b32.cont [9/16] 0.0, 128
      %1481 = vxpose.xlu0.b32.cont [10/16] 0.0, 128
      %1482 = vxpose.xlu0.b32.cont [11/16] 0.0, 128
      %1483 = vxpose.xlu0.b32.cont [12/16] 0.0, 128
      %1484 = vxpose.xlu0.b32.cont [13/16] 0.0, 128
      %1485 = vxpose.xlu0.b32.cont [14/16] 0.0, 128
      %1486 = vxpose.xlu0.b32.cont [15/16] 0.0, 128
      %1487 = vxpose.xlu0.b32.end [16/16] 0.0, 128
      %v1488 = vpop.trf.xlu0
      %v1489 = vpop.trf.xlu0
      %v1490 = vpop.trf.xlu0
      %v1491 = vpop.trf.xlu0
      %v1492 = vpop.trf.xlu0
      %v1493 = vpop.trf.xlu0
      %v1494 = vpop.trf.xlu0
      %v1495 = vpop.trf.xlu0
      %v1496 = vpop.trf.xlu0
      %v1497 = vpop.trf.xlu0
      %v1498 = vpop.trf.xlu0
      %v1499 = vpop.trf.xlu0
      %v1500 = vpop.trf.xlu0
      %v1501 = vpop.trf.xlu0
      %v1502 = vpop.trf.xlu0
      %v1503 = vpop.trf.xlu0
      %1504 = vxpose.xlu0.b32.start [1/16] %v616, 128
      %1505 = vxpose.xlu0.b32.cont [2/16] 0.0, 128
      %1506 = vxpose.xlu0.b32.cont [3/16] 0.0, 128
      %1507 = vxpose.xlu0.b32.cont [4/16] 0.0, 128
      %1508 = vxpose.xlu0.b32.cont [5/16] 0.0, 128
      %1509 = vxpose.xlu0.b32.cont [6/16] 0.0, 128
      %1510 = vxpose.xlu0.b32.cont [7/16] 0.0, 128
      %1511 = vxpose.xlu0.b32.cont [8/16] 0.0, 128
      %1512 = vxpose.xlu0.b32.cont [9/16] 0.0, 128
      %1513 = vxpose.xlu0.b32.cont [10/16] 0.0, 128
      %1514 = vxpose.xlu0.b32.cont [11/16] 0.0, 128
      %1515 = vxpose.xlu0.b32.cont [12/16] 0.0, 128
      %1516 = vxpose.xlu0.b32.cont [13/16] 0.0, 128
      %1517 = vxpose.xlu0.b32.cont [14/16] 0.0, 128
      %1518 = vxpose.xlu0.b32.cont [15/16] 0.0, 128
      %1519 = vxpose.xlu0.b32.end [16/16] 0.0, 128
      %v1520 = vpop.trf.xlu0
      %v1521 = vpop.trf.xlu0
      %v1522 = vpop.trf.xlu0
      %v1523 = vpop.trf.xlu0
      %v1524 = vpop.trf.xlu0
      %v1525 = vpop.trf.xlu0
      %v1526 = vpop.trf.xlu0
      %v1527 = vpop.trf.xlu0
      %v1528 = vpop.trf.xlu0
      %v1529 = vpop.trf.xlu0
      %v1530 = vpop.trf.xlu0
      %v1531 = vpop.trf.xlu0
      %v1532 = vpop.trf.xlu0
      %v1533 = vpop.trf.xlu0
      %v1534 = vpop.trf.xlu0
      %v1535 = vpop.trf.xlu0
      %v1537 = vsel %vm701, %v1488, 0
      %v1540 = vsel %vm701, %v1489, 0
      %v1543 = vsel %vm701, %v1490, 0
      %v1546 = vsel %vm701, %v1491, 0
      %v1549 = vsel %vm701, %v1492, 0
      %v1552 = vsel %vm701, %v1493, 0
      %v1555 = vsel %vm701, %v1494, 0
      %v1558 = vsel %vm701, %v1495, 0
      %v1561 = vsel %vm701, %v1496, 0
      %v1564 = vsel %vm701, %v1497, 0
      %v1567 = vsel %vm701, %v1498, 0
      %v1570 = vsel %vm701, %v1499, 0
      %v1573 = vsel %vm701, %v1500, 0
      %v1576 = vsel %vm701, %v1501, 0
      %v1579 = vsel %vm701, %v1502, 0
      %v1582 = vsel %vm701, %v1503, 0
      %v1585 = vsel %vm701, %v1520, 0
      %v1588 = vsel %vm701, %v1521, 0
      %v1591 = vsel %vm701, %v1522, 0
      %v1594 = vsel %vm701, %v1523, 0
      %v1597 = vsel %vm701, %v1524, 0
      %v1600 = vsel %vm701, %v1525, 0
      %v1603 = vsel %vm701, %v1526, 0
      %v1606 = vsel %vm701, %v1527, 0
      %v1609 = vsel %vm701, %v1528, 0
      %v1612 = vsel %vm701, %v1529, 0
      %v1615 = vsel %vm701, %v1530, 0
      %v1618 = vsel %vm701, %v1531, 0
      %v1621 = vsel %vm701, %v1532, 0
      %v1624 = vsel %vm701, %v1533, 0
      %v1627 = vsel %vm701, %v1534, 0
      %v1630 = vsel %vm701, %v1535, 0
      %1632 = vmatprep.subr.mxu0 %v600
      %1633 = vmatpush1.msra.mxu0 %v599
      %1634 = vmatprep.subr.mxu0 0.0
      %1635 = vmatpush1.msra.mxu0 0.0
      %1636 = vmatprep.subr.mxu0 0.0
      %1637 = vmatpush1.msra.mxu0 0.0
      %1638 = vmatprep.subr.mxu0 0.0
      %1639 = vmatpush1.msra.mxu0 0.0
      %1640 = vmatprep.subr.mxu0 0.0
      %1641 = vmatpush1.msra.mxu0 0.0
      %1642 = vmatprep.subr.mxu0 0.0
      %1643 = vmatpush1.msra.mxu0 0.0
      %1644 = vmatprep.subr.mxu0 0.0
      %1645 = vmatpush1.msra.mxu0 0.0
      %1646 = vmatprep.subr.mxu0 0.0
      %1647 = vmatpush1.msra.mxu0 0.0
      %1648 = vmatprep.subr.mxu0 0.0
      %1649 = vmatpush1.msra.mxu0 0.0
      %1650 = vmatprep.subr.mxu0 0.0
      %1651 = vmatpush1.msra.mxu0 0.0
      %1652 = vmatprep.subr.mxu0 0.0
      %1653 = vmatpush1.msra.mxu0 0.0
      %1654 = vmatprep.subr.mxu0 0.0
      %1655 = vmatpush1.msra.mxu0 0.0
      %1656 = vmatprep.subr.mxu0 0.0
      %1657 = vmatpush1.msra.mxu0 0.0
      %1658 = vmatprep.subr.mxu0 0.0
      %1659 = vmatpush1.msra.mxu0 0.0
      %1660 = vmatprep.subr.mxu0 0.0
      %1661 = vmatpush1.msra.mxu0 0.0
      %1662 = vmatprep.subr.mxu0 0.0
      %1663 = vmatpush1.msra.mxu0 0.0
      %1664 = vmatprep.subr.mxu0 0.0
      %1665 = vmatpush1.msra.mxu0 0.0
      %1666 = vmatprep.subr.mxu0 0.0
      %1667 = vmatpush1.msra.mxu0 0.0
      %1668 = vmatprep.subr.mxu0 0.0
      %1669 = vmatpush1.msra.mxu0 0.0
      %1670 = vmatprep.subr.mxu0 0.0
      %1671 = vmatpush1.msra.mxu0 0.0
      %1672 = vmatprep.subr.mxu0 0.0
      %1673 = vmatpush1.msra.mxu0 0.0
      %1674 = vmatprep.subr.mxu0 0.0
      %1675 = vmatpush1.msra.mxu0 0.0
      %1676 = vmatprep.subr.mxu0 0.0
      %1677 = vmatpush1.msra.mxu0 0.0
      %1678 = vmatprep.subr.mxu0 0.0
      %1679 = vmatpush1.msra.mxu0 0.0
      %1680 = vmatprep.subr.mxu0 0.0
      %1681 = vmatpush1.msra.mxu0 0.0
      %1682 = vmatprep.subr.mxu0 0.0
      %1683 = vmatpush1.msra.mxu0 0.0
      %1684 = vmatprep.subr.mxu0 0.0
      %1685 = vmatpush1.msra.mxu0 0.0
      %1686 = vmatprep.subr.mxu0 0.0
      %1687 = vmatpush1.msra.mxu0 0.0
      %1688 = vmatprep.subr.mxu0 0.0
      %1689 = vmatpush1.msra.mxu0 0.0
      %1690 = vmatprep.subr.mxu0 0.0
      %1691 = vmatpush1.msra.mxu0 0.0
      %1692 = vmatprep.subr.mxu0 0.0
      %1693 = vmatpush1.msra.mxu0 0.0
      %1694 = vmatprep.subr.mxu0 0.0
      %1695 = vmatpush1.msra.mxu0 0.0
      %1696 = vmatprep.mubr.f32.mxu0 0.0
      %1697 = vmatmul.mubr.f32.gmra.mrb[0].mxu0 %v1537
      %v1698 = vpop.f32.mrb[0].mxu0
      %v1699 = vadd.f32 0.0, %v1698
      %v1700 = vpop.f32.mrb[0].mxu0
      %v1701 = vadd.f32 0.0, %v1700
      %1702 = vmatprep.mubr.f32.mxu0 0.0
      %1703 = vmatmul.mubr.f32.gmra.mrb[0].mxu0 %v1540
      %v1704 = vpop.f32.mrb[0].mxu0
      %v1705 = vadd.f32 0.0, %v1704
      %v1706 = vpop.f32.mrb[0].mxu0
      %v1707 = vadd.f32 0.0, %v1706
      %1708 = vmatprep.mubr.f32.mxu0 0.0
      %1709 = vmatmul.mubr.f32.gmra.mrb[0].mxu0 %v1543
      %v1710 = vpop.f32.mrb[0].mxu0
      %v1711 = vadd.f32 0.0, %v1710
      %v1712 = vpop.f32.mrb[0].mxu0
      %v1713 = vadd.f32 0.0, %v1712
      %1714 = vmatprep.mubr.f32.mxu0 0.0
      %1715 = vmatmul.mubr.f32.gmra.mrb[0].mxu0 %v1546
      %v1716 = vpop.f32.mrb[0].mxu0
      %v1717 = vadd.f32 0.0, %v1716
      %v1718 = vpop.f32.mrb[0].mxu0
      %v1719 = vadd.f32 0.0, %v1718
      %1720 = vmatprep.mubr.f32.mxu0 0.0
      %1721 = vmatmul.mubr.f32.gmra.mrb[0].mxu0 %v1549
      %v1722 = vpop.f32.mrb[0].mxu0
      %v1723 = vadd.f32 0.0, %v1722
      %v1724 = vpop.f32.mrb[0].mxu0
      %v1725 = vadd.f32 0.0, %v1724
      %1726 = vmatprep.mubr.f32.mxu0 0.0
      %1727 = vmatmul.mubr.f32.gmra.mrb[0].mxu0 %v1552
      %v1728 = vpop.f32.mrb[0].mxu0
      %v1729 = vadd.f32 0.0, %v1728
      %v1730 = vpop.f32.mrb[0].mxu0
      %v1731 = vadd.f32 0.0, %v1730
      %1732 = vmatprep.mubr.f32.mxu0 0.0
      %1733 = vmatmul.mubr.f32.gmra.mrb[0].mxu0 %v1555
      %v1734 = vpop.f32.mrb[0].mxu0
      %v1735 = vadd.f32 0.0, %v1734
      %v1736 = vpop.f32.mrb[0].mxu0
      %v1737 = vadd.f32 0.0, %v1736
      %1738 = vmatprep.mubr.f32.mxu0 0.0
      %1739 = vmatmul.mubr.f32.gmra.mrb[0].mxu0 %v1558
      %v1740 = vpop.f32.mrb[0].mxu0
      %v1741 = vadd.f32 0.0, %v1740
      %v1742 = vpop.f32.mrb[0].mxu0
      %v1743 = vadd.f32 0.0, %v1742
      %1744 = vmatprep.mubr.f32.mxu0 0.0
      %1745 = vmatmul.mubr.f32.gmra.mrb[0].mxu0 %v1561
      %v1746 = vpop.f32.mrb[0].mxu0
      %v1747 = vadd.f32 0.0, %v1746
      %v1748 = vpop.f32.mrb[0].mxu0
      %v1749 = vadd.f32 0.0, %v1748
      %1750 = vmatprep.mubr.f32.mxu0 0.0
      %1751 = vmatmul.mubr.f32.gmra.mrb[0].mxu0 %v1564
      %v1752 = vpop.f32.mrb[0].mxu0
      %v1753 = vadd.f32 0.0, %v1752
      %v1754 = vpop.f32.mrb[0].mxu0
      %v1755 = vadd.f32 0.0, %v1754
      %1756 = vmatprep.mubr.f32.mxu0 0.0
      %1757 = vmatmul.mubr.f32.gmra.mrb[0].mxu0 %v1567
      %v1758 = vpop.f32.mrb[0].mxu0
      %v1759 = vadd.f32 0.0, %v1758
      %v1760 = vpop.f32.mrb[0].mxu0
      %v1761 = vadd.f32 0.0, %v1760
      %1762 = vmatprep.mubr.f32.mxu0 0.0
      %1763 = vmatmul.mubr.f32.gmra.mrb[0].mxu0 %v1570
      %v1764 = vpop.f32.mrb[0].mxu0
      %v1765 = vadd.f32 0.0, %v1764
      %v1766 = vpop.f32.mrb[0].mxu0
      %v1767 = vadd.f32 0.0, %v1766
      %1768 = vmatprep.mubr.f32.mxu0 0.0
      %1769 = vmatmul.mubr.f32.gmra.mrb[0].mxu0 %v1573
      %v1770 = vpop.f32.mrb[0].mxu0
      %v1771 = vadd.f32 0.0, %v1770
      %v1772 = vpop.f32.mrb[0].mxu0
      %v1773 = vadd.f32 0.0, %v1772
      %1774 = vmatprep.mubr.f32.mxu0 0.0
      %1775 = vmatmul.mubr.f32.gmra.mrb[0].mxu0 %v1576
      %v1776 = vpop.f32.mrb[0].mxu0
      %v1777 = vadd.f32 0.0, %v1776
      %v1778 = vpop.f32.mrb[0].mxu0
      %v1779 = vadd.f32 0.0, %v1778
      %1780 = vmatprep.mubr.f32.mxu0 0.0
      %1781 = vmatmul.mubr.f32.gmra.mrb[0].mxu0 %v1579
      %v1782 = vpop.f32.mrb[0].mxu0
      %v1783 = vadd.f32 0.0, %v1782
      %v1784 = vpop.f32.mrb[0].mxu0
      %v1785 = vadd.f32 0.0, %v1784
      %1786 = vmatprep.mubr.f32.mxu0 0.0
      %1787 = vmatmul.mubr.f32.gmra.mrb[0].mxu0 %v1582
      %v1788 = vpop.f32.mrb[0].mxu0
      %v1789 = vadd.f32 0.0, %v1788
      %v1790 = vpop.f32.mrb[0].mxu0
      %v1791 = vadd.f32 0.0, %v1790
      %1792 = vmatprep.mubr.f32.mxu0 0.0
      %1793 = vmatmul.mubr.f32.gmra.mrb[0].mxu0 %v1585
      %v1794 = vpop.f32.mrb[0].mxu0
      %v1795 = vadd.f32 0.0, %v1794
      %v1796 = vpop.f32.mrb[0].mxu0
      %v1797 = vadd.f32 0.0, %v1796
      %1798 = vmatprep.mubr.f32.mxu0 0.0
      %1799 = vmatmul.mubr.f32.gmra.mrb[0].mxu0 %v1588
      %v1800 = vpop.f32.mrb[0].mxu0
      %v1801 = vadd.f32 0.0, %v1800
      %v1802 = vpop.f32.mrb[0].mxu0
      %v1803 = vadd.f32 0.0, %v1802
      %1804 = vmatprep.mubr.f32.mxu0 0.0
      %1805 = vmatmul.mubr.f32.gmra.mrb[0].mxu0 %v1591
      %v1806 = vpop.f32.mrb[0].mxu0
      %v1807 = vadd.f32 0.0, %v1806
      %v1808 = vpop.f32.mrb[0].mxu0
      %v1809 = vadd.f32 0.0, %v1808
      %1810 = vmatprep.mubr.f32.mxu0 0.0
      %1811 = vmatmul.mubr.f32.gmra.mrb[0].mxu0 %v1594
      %v1812 = vpop.f32.mrb[0].mxu0
      %v1813 = vadd.f32 0.0, %v1812
      %v1814 = vpop.f32.mrb[0].mxu0
      %v1815 = vadd.f32 0.0, %v1814
      %1816 = vmatprep.mubr.f32.mxu0 0.0
      %1817 = vmatmul.mubr.f32.gmra.mrb[0].mxu0 %v1597
      %v1818 = vpop.f32.mrb[0].mxu0
      %v1819 = vadd.f32 0.0, %v1818
      %v1820 = vpop.f32.mrb[0].mxu0
      %v1821 = vadd.f32 0.0, %v1820
      %1822 = vmatprep.mubr.f32.mxu0 0.0
      %1823 = vmatmul.mubr.f32.gmra.mrb[0].mxu0 %v1600
      %v1824 = vpop.f32.mrb[0].mxu0
      %v1825 = vadd.f32 0.0, %v1824
      %v1826 = vpop.f32.mrb[0].mxu0
      %v1827 = vadd.f32 0.0, %v1826
      %1828 = vmatprep.mubr.f32.mxu0 0.0
      %1829 = vmatmul.mubr.f32.gmra.mrb[0].mxu0 %v1603
      %v1830 = vpop.f32.mrb[0].mxu0
      %v1831 = vadd.f32 0.0, %v1830
      %v1832 = vpop.f32.mrb[0].mxu0
      %v1833 = vadd.f32 0.0, %v1832
      %1834 = vmatprep.mubr.f32.mxu0 0.0
      %1835 = vmatmul.mubr.f32.gmra.mrb[0].mxu0 %v1606
      %v1836 = vpop.f32.mrb[0].mxu0
      %v1837 = vadd.f32 0.0, %v1836
      %v1838 = vpop.f32.mrb[0].mxu0
      %v1839 = vadd.f32 0.0, %v1838
      %1840 = vmatprep.mubr.f32.mxu0 0.0
      %1841 = vmatmul.mubr.f32.gmra.mrb[0].mxu0 %v1609
      %v1842 = vpop.f32.mrb[0].mxu0
      %v1843 = vadd.f32 0.0, %v1842
      %v1844 = vpop.f32.mrb[0].mxu0
      %v1845 = vadd.f32 0.0, %v1844
      %1846 = vmatprep.mubr.f32.mxu0 0.0
      %1847 = vmatmul.mubr.f32.gmra.mrb[0].mxu0 %v1612
      %v1848 = vpop.f32.mrb[0].mxu0
      %v1849 = vadd.f32 0.0, %v1848
      %v1850 = vpop.f32.mrb[0].mxu0
      %v1851 = vadd.f32 0.0, %v1850
      %1852 = vmatprep.mubr.f32.mxu0 0.0
      %1853 = vmatmul.mubr.f32.gmra.mrb[0].mxu0 %v1615
      %v1854 = vpop.f32.mrb[0].mxu0
      %v1855 = vadd.f32 0.0, %v1854
      %v1856 = vpop.f32.mrb[0].mxu0
      %v1857 = vadd.f32 0.0, %v1856
      %1858 = vmatprep.mubr.f32.mxu0 0.0
      %1859 = vmatmul.mubr.f32.gmra.mrb[0].mxu0 %v1618
      %v1860 = vpop.f32.mrb[0].mxu0
      %v1861 = vadd.f32 0.0, %v1860
      %v1862 = vpop.f32.mrb[0].mxu0
      %v1863 = vadd.f32 0.0, %v1862
      %1864 = vmatprep.mubr.f32.mxu0 0.0
      %1865 = vmatmul.mubr.f32.gmra.mrb[0].mxu0 %v1621
      %v1866 = vpop.f32.mrb[0].mxu0
      %v1867 = vadd.f32 0.0, %v1866
      %v1868 = vpop.f32.mrb[0].mxu0
      %v1869 = vadd.f32 0.0, %v1868
      %1870 = vmatprep.mubr.f32.mxu0 0.0
      %1871 = vmatmul.mubr.f32.gmra.mrb[0].mxu0 %v1624
      %v1872 = vpop.f32.mrb[0].mxu0
      %v1873 = vadd.f32 0.0, %v1872
      %v1874 = vpop.f32.mrb[0].mxu0
      %v1875 = vadd.f32 0.0, %v1874
      %1876 = vmatprep.mubr.f32.mxu0 0.0
      %1877 = vmatmul.mubr.f32.gmra.mrb[0].mxu0 %v1627
      %v1878 = vpop.f32.mrb[0].mxu0
      %v1879 = vadd.f32 0.0, %v1878
      %v1880 = vpop.f32.mrb[0].mxu0
      %v1881 = vadd.f32 0.0, %v1880
      %1882 = vmatprep.mubr.f32.mxu0 0.0
      %1883 = vmatmul.mubr.f32.gmra.mrb[0].mxu0 %v1630
      %v1884 = vpop.f32.mrb[0].mxu0
      %v1885 = vadd.f32 0.0, %v1884
      %v1886 = vpop.f32.mrb[0].mxu0
      %v1887 = vadd.f32 0.0, %v1886
      %1888 = vdwg.mxu0
      %v1889 = vmax.f32 %v1699, %v1711
      %v1890 = vmax.f32 %v1705, %v1717
      %v1891 = vmax.f32 %v1889, %v1723
      %v1892 = vmax.f32 %v1890, %v1729
      %v1893 = vmax.f32 %v1891, %v1735
      %v1894 = vmax.f32 %v1892, %v1741
      %v1895 = vmax.f32 %v1893, %v1747
      %v1896 = vmax.f32 %v1894, %v1753
      %v1897 = vmax.f32 %v1895, %v1759
      %v1898 = vmax.f32 %v1896, %v1765
      %v1899 = vmax.f32 %v1897, %v1771
      %v1900 = vmax.f32 %v1898, %v1777
      %v1901 = vmax.f32 %v1899, %v1783
      %v1902 = vmax.f32 %v1900, %v1789
      %v1903 = vmax.f32 %v1901, %v1795
      %v1904 = vmax.f32 %v1902, %v1801
      %v1905 = vmax.f32 %v1903, %v1807
      %v1906 = vmax.f32 %v1904, %v1813
      %v1907 = vmax.f32 %v1905, %v1819
      %v1908 = vmax.f32 %v1906, %v1825
      %v1909 = vmax.f32 %v1907, %v1831
      %v1910 = vmax.f32 %v1908, %v1837
      %v1911 = vmax.f32 %v1909, %v1843
      %v1912 = vmax.f32 %v1910, %v1849
      %v1913 = vmax.f32 %v1911, %v1855
      %v1914 = vmax.f32 %v1912, %v1861
      %v1915 = vmax.f32 %v1913, %v1867
      %v1916 = vmax.f32 %v1914, %v1873
      %v1917 = vmax.f32 %v1915, %v1879
      %v1918 = vmax.f32 %v1916, %v1885
      %v1919 = vmax.f32 %v1917, %v1918
      %v1920 = vrot.slane %v1919, 4
      %v1921 = vmax.f32 %v1919, %v1920
      %v1922 = vrot.slane %v1921, 2
      %v1923 = vmax.f32 %v1921, %v1922
      %v1924 = vrot.slane %v1923, 1
      %v1925 = vmax.f32 %v1923, %v1924
      %v1926 = vmax.f32 %v1701, %v1713
      %v1927 = vmax.f32 %v1707, %v1719
      %v1928 = vmax.f32 %v1926, %v1725
      %v1929 = vmax.f32 %v1927, %v1731
      %v1930 = vmax.f32 %v1928, %v1737
      %v1931 = vmax.f32 %v1929, %v1743
      %v1932 = vmax.f32 %v1930, %v1749
      %v1933 = vmax.f32 %v1931, %v1755
      %v1934 = vmax.f32 %v1932, %v1761
      %v1935 = vmax.f32 %v1933, %v1767
      %v1936 = vmax.f32 %v1934, %v1773
      %v1937 = vmax.f32 %v1935, %v1779
      %v1938 = vmax.f32 %v1936, %v1785
      %v1939 = vmax.f32 %v1937, %v1791
      %v1940 = vmax.f32 %v1938, %v1797
      %v1941 = vmax.f32 %v1939, %v1803
      %v1942 = vmax.f32 %v1940, %v1809
      %v1943 = vmax.f32 %v1941, %v1815
      %v1944 = vmax.f32 %v1942, %v1821
      %v1945 = vmax.f32 %v1943, %v1827
      %v1946 = vmax.f32 %v1944, %v1833
      %v1947 = vmax.f32 %v1945, %v1839
      %v1948 = vmax.f32 %v1946, %v1845
      %v1949 = vmax.f32 %v1947, %v1851
      %v1950 = vmax.f32 %v1948, %v1857
      %v1951 = vmax.f32 %v1949, %v1863
      %v1952 = vmax.f32 %v1950, %v1869
      %v1953 = vmax.f32 %v1951, %v1875
      %v1954 = vmax.f32 %v1952, %v1881
      %v1955 = vmax.f32 %v1953, %v1887
      %v1956 = vmax.f32 %v1954, %v1955
      %v1957 = vrot.slane %v1956, 4
      %v1958 = vmax.f32 %v1956, %v1957
      %v1959 = vrot.slane %v1958, 2
      %v1960 = vmax.f32 %v1958, %v1959
      %v1961 = vrot.slane %v1960, 1
      %v1962 = vmax.f32 %v1960, %v1961
      %v1963 = vsub.f32 %v1699, %v1925
      %v1964 = vsub.f32 %v1701, %v1962
      %v1965 = vsub.f32 %v1705, %v1925
      %v1966 = vsub.f32 %v1707, %v1962
      %v1967 = vsub.f32 %v1711, %v1925
      %v1968 = vsub.f32 %v1713, %v1962
      %v1969 = vsub.f32 %v1717, %v1925
      %v1970 = vsub.f32 %v1719, %v1962
      %v1971 = vsub.f32 %v1723, %v1925
      %v1972 = vsub.f32 %v1725, %v1962
      %v1973 = vsub.f32 %v1729, %v1925
      %v1974 = vsub.f32 %v1731, %v1962
      %v1975 = vsub.f32 %v1735, %v1925
      %v1976 = vsub.f32 %v1737, %v1962
      %v1977 = vsub.f32 %v1741, %v1925
      %v1978 = vsub.f32 %v1743, %v1962
      %v1979 = vsub.f32 %v1747, %v1925
      %v1980 = vsub.f32 %v1749, %v1962
      %v1981 = vsub.f32 %v1753, %v1925
      %v1982 = vsub.f32 %v1755, %v1962
      %v1983 = vsub.f32 %v1759, %v1925
      %v1984 = vsub.f32 %v1761, %v1962
      %v1985 = vsub.f32 %v1765, %v1925
      %v1986 = vsub.f32 %v1767, %v1962
      %v1987 = vsub.f32 %v1771, %v1925
      %v1988 = vsub.f32 %v1773, %v1962
      %v1989 = vsub.f32 %v1777, %v1925
      %v1990 = vsub.f32 %v1779, %v1962
      %v1991 = vsub.f32 %v1783, %v1925
      %v1992 = vsub.f32 %v1785, %v1962
      %v1993 = vsub.f32 %v1789, %v1925
      %v1994 = vsub.f32 %v1791, %v1962
      %v1995 = vsub.f32 %v1795, %v1925
      %v1996 = vsub.f32 %v1797, %v1962
      %v1997 = vsub.f32 %v1801, %v1925
      %v1998 = vsub.f32 %v1803, %v1962
      %v1999 = vsub.f32 %v1807, %v1925
      %v2000 = vsub.f32 %v1809, %v1962
      %v2001 = vsub.f32 %v1813, %v1925
      %v2002 = vsub.f32 %v1815, %v1962
      %v2003 = vsub.f32 %v1819, %v1925
      %v2004 = vsub.f32 %v1821, %v1962
      %v2005 = vsub.f32 %v1825, %v1925
      %v2006 = vsub.f32 %v1827, %v1962
      %v2007 = vsub.f32 %v1831, %v1925
      %v2008 = vsub.f32 %v1833, %v1962
      %v2009 = vsub.f32 %v1837, %v1925
      %v2010 = vsub.f32 %v1839, %v1962
      %v2011 = vsub.f32 %v1843, %v1925
      %v2012 = vsub.f32 %v1845, %v1962
      %v2013 = vsub.f32 %v1849, %v1925
      %v2014 = vsub.f32 %v1851, %v1962
      %v2015 = vsub.f32 %v1855, %v1925
      %v2016 = vsub.f32 %v1857, %v1962
      %v2017 = vsub.f32 %v1861, %v1925
      %v2018 = vsub.f32 %v1863, %v1962
      %v2019 = vsub.f32 %v1867, %v1925
      %v2020 = vsub.f32 %v1869, %v1962
      %v2021 = vsub.f32 %v1873, %v1925
      %v2022 = vsub.f32 %v1875, %v1962
      %v2023 = vsub.f32 %v1879, %v1925
      %v2024 = vsub.f32 %v1881, %v1962
      %v2025 = vsub.f32 %v1885, %v1925
      %v2026 = vsub.f32 %v1887, %v1962
      %v2027 = vmul.f32 %v1963, 1.442695
      %v2028 = vpow.pop %v2027
      %v2029 = vmul.f32 %v1964, 1.442695
      %v2030 = vpow.pop %v2029
      %v2031 = vmul.f32 %v1965, 1.442695
      %v2032 = vpow.pop %v2031
      %v2033 = vmul.f32 %v1966, 1.442695
      %v2034 = vpow.pop %v2033
      %v2035 = vmul.f32 %v1967, 1.442695
      %v2036 = vpow.pop %v2035
      %v2037 = vmul.f32 %v1968, 1.442695
      %v2038 = vpow.pop %v2037
      %v2039 = vmul.f32 %v1969, 1.442695
      %v2040 = vpow.pop %v2039
      %v2041 = vmul.f32 %v1970, 1.442695
      %v2042 = vpow.pop %v2041
      %v2043 = vmul.f32 %v1971, 1.442695
      %v2044 = vpow.pop %v2043
      %v2045 = vmul.f32 %v1972, 1.442695
      %v2046 = vpow.pop %v2045
      %v2047 = vmul.f32 %v1973, 1.442695
      %v2048 = vpow.pop %v2047
      %v2049 = vmul.f32 %v1974, 1.442695
      %v2050 = vpow.pop %v2049
      %v2051 = vmul.f32 %v1975, 1.442695
      %v2052 = vpow.pop %v2051
      %v2053 = vmul.f32 %v1976, 1.442695
      %v2054 = vpow.pop %v2053
      %v2055 = vmul.f32 %v1977, 1.442695
      %v2056 = vpow.pop %v2055
      %v2057 = vmul.f32 %v1978, 1.442695
      %v2058 = vpow.pop %v2057
      %v2059 = vmul.f32 %v1979, 1.442695
      %v2060 = vpow.pop %v2059
      %v2061 = vmul.f32 %v1980, 1.442695
      %v2062 = vpow.pop %v2061
      %v2063 = vmul.f32 %v1981, 1.442695
      %v2064 = vpow.pop %v2063
      %v2065 = vmul.f32 %v1982, 1.442695
      %v2066 = vpow.pop %v2065
      %v2067 = vmul.f32 %v1983, 1.442695
      %v2068 = vpow.pop %v2067
      %v2069 = vmul.f32 %v1984, 1.442695
      %v2070 = vpow.pop %v2069
      %v2071 = vmul.f32 %v1985, 1.442695
      %v2072 = vpow.pop %v2071
      %v2073 = vmul.f32 %v1986, 1.442695
      %v2074 = vpow.pop %v2073
      %v2075 = vmul.f32 %v1987, 1.442695
      %v2076 = vpow.pop %v2075
      %v2077 = vmul.f32 %v1988, 1.442695
      %v2078 = vpow.pop %v2077
      %v2079 = vmul.f32 %v1989, 1.442695
      %v2080 = vpow.pop %v2079
      %v2081 = vmul.f32 %v1990, 1.442695
      %v2082 = vpow.pop %v2081
      %v2083 = vmul.f32 %v1991, 1.442695
      %v2084 = vpow.pop %v2083
      %v2085 = vmul.f32 %v1992, 1.442695
      %v2086 = vpow.pop %v2085
      %v2087 = vmul.f32 %v1993, 1.442695
      %v2088 = vpow.pop %v2087
      %v2089 = vmul.f32 %v1994, 1.442695
      %v2090 = vpow.pop %v2089
      %v2091 = vmul.f32 %v1995, 1.442695
      %v2092 = vpow.pop %v2091
      %v2093 = vmul.f32 %v1996, 1.442695
      %v2094 = vpow.pop %v2093
      %v2095 = vmul.f32 %v1997, 1.442695
      %v2096 = vpow.pop %v2095
      %v2097 = vmul.f32 %v1998, 1.442695
      %v2098 = vpow.pop %v2097
      %v2099 = vmul.f32 %v1999, 1.442695
      %v2100 = vpow.pop %v2099
      %v2101 = vmul.f32 %v2000, 1.442695
      %v2102 = vpow.pop %v2101
      %v2103 = vmul.f32 %v2001, 1.442695
      %v2104 = vpow.pop %v2103
      %v2105 = vmul.f32 %v2002, 1.442695
      %v2106 = vpow.pop %v2105
      %v2107 = vmul.f32 %v2003, 1.442695
      %v2108 = vpow.pop %v2107
      %v2109 = vmul.f32 %v2004, 1.442695
      %v2110 = vpow.pop %v2109
      %v2111 = vmul.f32 %v2005, 1.442695
      %v2112 = vpow.pop %v2111
      %v2113 = vmul.f32 %v2006, 1.442695
      %v2114 = vpow.pop %v2113
      %v2115 = vmul.f32 %v2007, 1.442695
      %v2116 = vpow.pop %v2115
      %v2117 = vmul.f32 %v2008, 1.442695
      %v2118 = vpow.pop %v2117
      %v2119 = vmul.f32 %v2009, 1.442695
      %v2120 = vpow.pop %v2119
      %v2121 = vmul.f32 %v2010, 1.442695
      %v2122 = vpow.pop %v2121
      %v2123 = vmul.f32 %v2011, 1.442695
      %v2124 = vpow.pop %v2123
      %v2125 = vmul.f32 %v2012, 1.442695
      %v2126 = vpow.pop %v2125
      %v2127 = vmul.f32 %v2013, 1.442695
      %v2128 = vpow.pop %v2127
      %v2129 = vmul.f32 %v2014, 1.442695
      %v2130 = vpow.pop %v2129
      %v2131 = vmul.f32 %v2015, 1.442695
      %v2132 = vpow.pop %v2131
      %v2133 = vmul.f32 %v2016, 1.442695
      %v2134 = vpow.pop %v2133
      %v2135 = vmul.f32 %v2017, 1.442695
      %v2136 = vpow.pop %v2135
      %v2137 = vmul.f32 %v2018, 1.442695
      %v2138 = vpow.pop %v2137
      %v2139 = vmul.f32 %v2019, 1.442695
      %v2140 = vpow.pop %v2139
      %v2141 = vmul.f32 %v2020, 1.442695
      %v2142 = vpow.pop %v2141
      %v2143 = vmul.f32 %v2021, 1.442695
      %v2144 = vpow.pop %v2143
      %v2145 = vmul.f32 %v2022, 1.442695
      %v2146 = vpow.pop %v2145
      %v2147 = vmul.f32 %v2023, 1.442695
      %v2148 = vpow.pop %v2147
      %v2149 = vmul.f32 %v2024, 1.442695
      %v2150 = vpow.pop %v2149
      %v2151 = vmul.f32 %v2025, 1.442695
      %v2152 = vpow.pop %v2151
      %v2153 = vmul.f32 %v2026, 1.442695
      %v2154 = vpow.pop %v2153
      %v2155 = vadd.f32 %v2028, %v2032
      %v2156 = vadd.f32 %v2155, %v2036
      %v2157 = vadd.f32 %v2156, %v2040
      %v2158 = vadd.f32 %v2157, %v2044
      %v2159 = vadd.f32 %v2158, %v2048
      %v2160 = vadd.f32 %v2159, %v2052
      %v2161 = vadd.f32 %v2160, %v2056
      %v2162 = vadd.f32 %v2161, %v2060
      %v2163 = vadd.f32 %v2162, %v2064
      %v2164 = vadd.f32 %v2163, %v2068
      %v2165 = vadd.f32 %v2164, %v2072
      %v2166 = vadd.f32 %v2165, %v2076
      %v2167 = vadd.f32 %v2166, %v2080
      %v2168 = vadd.f32 %v2167, %v2084
      %v2169 = vadd.f32 %v2168, %v2088
      %v2170 = vadd.f32 %v2169, %v2092
      %v2171 = vadd.f32 %v2170, %v2096
      %v2172 = vadd.f32 %v2171, %v2100
      %v2173 = vadd.f32 %v2172, %v2104
      %v2174 = vadd.f32 %v2173, %v2108
      %v2175 = vadd.f32 %v2174, %v2112
      %v2176 = vadd.f32 %v2175, %v2116
      %v2177 = vadd.f32 %v2176, %v2120
      %v2178 = vadd.f32 %v2177, %v2124
      %v2179 = vadd.f32 %v2178, %v2128
      %v2180 = vadd.f32 %v2179, %v2132
      %v2181 = vadd.f32 %v2180, %v2136
      %v2182 = vadd.f32 %v2181, %v2140
      %v2183 = vadd.f32 %v2182, %v2144
      %v2184 = vadd.f32 %v2183, %v2148
      %v2185 = vadd.f32 %v2184, %v2152
      %v2186 = vrot.slane %v2185, 4
      %v2187 = vadd.f32 %v2185, %v2186
      %v2188 = vrot.slane %v2187, 2
      %v2189 = vadd.f32 %v2187, %v2188
      %v2190 = vrot.slane %v2189, 1
      %v2191 = vadd.f32 %v2189, %v2190
      %v2192 = vadd.f32 %v2030, %v2034
      %v2193 = vadd.f32 %v2192, %v2038
      %v2194 = vadd.f32 %v2193, %v2042
      %v2195 = vadd.f32 %v2194, %v2046
      %v2196 = vadd.f32 %v2195, %v2050
      %v2197 = vadd.f32 %v2196, %v2054
      %v2198 = vadd.f32 %v2197, %v2058
      %v2199 = vadd.f32 %v2198, %v2062
      %v2200 = vadd.f32 %v2199, %v2066
      %v2201 = vadd.f32 %v2200, %v2070
      %v2202 = vadd.f32 %v2201, %v2074
      %v2203 = vadd.f32 %v2202, %v2078
      %v2204 = vadd.f32 %v2203, %v2082
      %v2205 = vadd.f32 %v2204, %v2086
      %v2206 = vadd.f32 %v2205, %v2090
      %v2207 = vadd.f32 %v2206, %v2094
      %v2208 = vadd.f32 %v2207, %v2098
      %v2209 = vadd.f32 %v2208, %v2102
      %v2210 = vadd.f32 %v2209, %v2106
      %v2211 = vadd.f32 %v2210, %v2110
      %v2212 = vadd.f32 %v2211, %v2114
      %v2213 = vadd.f32 %v2212, %v2118
      %v2214 = vadd.f32 %v2213, %v2122
      %v2215 = vadd.f32 %v2214, %v2126
      %v2216 = vadd.f32 %v2215, %v2130
      %v2217 = vadd.f32 %v2216, %v2134
      %v2218 = vadd.f32 %v2217, %v2138
      %v2219 = vadd.f32 %v2218, %v2142
      %v2220 = vadd.f32 %v2219, %v2146
      %v2221 = vadd.f32 %v2220, %v2150
      %v2222 = vadd.f32 %v2221, %v2154
      %v2223 = vrot.slane %v2222, 4
      %v2224 = vadd.f32 %v2222, %v2223
      %v2225 = vrot.slane %v2224, 2
      %v2226 = vadd.f32 %v2224, %v2225
      %v2227 = vrot.slane %v2226, 1
      %v2228 = vadd.f32 %v2226, %v2227
      %v2229 = vrcp.pop %v2191
      %v2230 = vmul.f32 1.0, %v2229
      %v2231 = vrcp.pop %v2228
      %v2232 = vmul.f32 1.0, %v2231
      %2233 = vmatprep.subr.mxu0 %v2030
      %2234 = vmatpush1.msra.mxu0 %v2028
      %2235 = vmatprep.subr.mxu0 %v2034
      %2236 = vmatpush1.msra.mxu0 %v2032
      %2237 = vmatprep.subr.mxu0 %v2038
      %2238 = vmatpush1.msra.mxu0 %v2036
      %2239 = vmatprep.subr.mxu0 %v2042
      %2240 = vmatpush1.msra.mxu0 %v2040
      %2241 = vmatprep.subr.mxu0 %v2046
      %2242 = vmatpush1.msra.mxu0 %v2044
      %2243 = vmatprep.subr.mxu0 %v2050
      %2244 = vmatpush1.msra.mxu0 %v2048
      %2245 = vmatprep.subr.mxu0 %v2054
      %2246 = vmatpush1.msra.mxu0 %v2052
      %2247 = vmatprep.subr.mxu0 %v2058
      %2248 = vmatpush1.msra.mxu0 %v2056
      %2249 = vmatprep.subr.mxu0 %v2062
      %2250 = vmatpush1.msra.mxu0 %v2060
      %2251 = vmatprep.subr.mxu0 %v2066
      %2252 = vmatpush1.msra.mxu0 %v2064
      %2253 = vmatprep.subr.mxu0 %v2070
      %2254 = vmatpush1.msra.mxu0 %v2068
      %2255 = vmatprep.subr.mxu0 %v2074
      %2256 = vmatpush1.msra.mxu0 %v2072
      %2257 = vmatprep.subr.mxu0 %v2078
      %2258 = vmatpush1.msra.mxu0 %v2076
      %2259 = vmatprep.subr.mxu0 %v2082
      %2260 = vmatpush1.msra.mxu0 %v2080
      %2261 = vmatprep.subr.mxu0 %v2086
      %2262 = vmatpush1.msra.mxu0 %v2084
      %2263 = vmatprep.subr.mxu0 %v2090
      %2264 = vmatpush1.msra.mxu0 %v2088
      %2265 = vmatprep.subr.mxu0 %v2094
      %2266 = vmatpush1.msra.mxu0 %v2092
      %2267 = vmatprep.subr.mxu0 %v2098
      %2268 = vmatpush1.msra.mxu0 %v2096
      %2269 = vmatprep.subr.mxu0 %v2102
      %2270 = vmatpush1.msra.mxu0 %v2100
      %2271 = vmatprep.subr.mxu0 %v2106
      %2272 = vmatpush1.msra.mxu0 %v2104
      %2273 = vmatprep.subr.mxu0 %v2110
      %2274 = vmatpush1.msra.mxu0 %v2108
      %2275 = vmatprep.subr.mxu0 %v2114
      %2276 = vmatpush1.msra.mxu0 %v2112
      %2277 = vmatprep.subr.mxu0 %v2118
      %2278 = vmatpush1.msra.mxu0 %v2116
      %2279 = vmatprep.subr.mxu0 %v2122
      %2280 = vmatpush1.msra.mxu0 %v2120
      %2281 = vmatprep.subr.mxu0 %v2126
      %2282 = vmatpush1.msra.mxu0 %v2124
      %2283 = vmatprep.subr.mxu0 %v2130
      %2284 = vmatpush1.msra.mxu0 %v2128
      %2285 = vmatprep.subr.mxu0 %v2134
      %2286 = vmatpush1.msra.mxu0 %v2132
      %2287 = vmatprep.subr.mxu0 %v2138
      %2288 = vmatpush1.msra.mxu0 %v2136
      %2289 = vmatprep.subr.mxu0 %v2142
      %2290 = vmatpush1.msra.mxu0 %v2140
      %2291 = vmatprep.subr.mxu0 %v2146
      %2292 = vmatpush1.msra.mxu0 %v2144
      %2293 = vmatprep.subr.mxu0 %v2150
      %2294 = vmatpush1.msra.mxu0 %v2148
      %2295 = vmatprep.subr.mxu0 %v2154
      %2296 = vmatpush1.msra.mxu0 %v2152
      %2297 = vmatprep.mubr.f32.mxu0 %v632
      %2298 = vmatmul.mubr.f32.gmra.mrb[0].mxu0 %v631
      %v2299 = vpop.f32.mrb[0].mxu0
      %v2300 = vadd.f32 0.0, %v2299
      %v2301 = vpop.f32.mrb[0].mxu0
      %v2302 = vadd.f32 0.0, %v2301
      %2303 = vdwg.mxu0
      %v2304 = vmul.f32 %v2300, %v2230
      %v2305 = vmul.f32 %v2302, %v2232
      %2308 = vrot.lane.b32.xlu0 %v635, 120
      %v2309 = vpop.permute.xlu0 %2308
      %2310 = vrot.lane.b32.xlu0 %v636, 120
      %v2311 = vpop.permute.xlu0 %2310
      %v2312 = vsel %vm701, %v2309, 0
      %v2314 = vsel %vm701, %v2311, 0
      %2316 = vmatprep.subr.mxu0 %v2305
      %2317 = vmatpush1.msra.mxu0 %v2304
      %2318 = vmatprep.subr.mxu0 0.0
      %2319 = vmatpush1.msra.mxu0 0.0
      %2320 = vmatprep.subr.mxu0 0.0
      %2321 = vmatpush1.msra.mxu0 0.0
      %2322 = vmatprep.subr.mxu0 0.0
      %2323 = vmatpush1.msra.mxu0 0.0
      %2324 = vmatprep.subr.mxu0 0.0
      %2325 = vmatpush1.msra.mxu0 0.0
      %2326 = vmatprep.subr.mxu0 0.0
      %2327 = vmatpush1.msra.mxu0 0.0
      %2328 = vmatprep.subr.mxu0 0.0
      %2329 = vmatpush1.msra.mxu0 0.0
      %2330 = vmatprep.subr.mxu0 0.0
      %2331 = vmatpush1.msra.mxu0 0.0
      %2332 = vmatprep.subr.mxu0 0.0
      %2333 = vmatpush1.msra.mxu0 0.0
      %2334 = vmatprep.subr.mxu0 0.0
      %2335 = vmatpush1.msra.mxu0 0.0
      %2336 = vmatprep.subr.mxu0 0.0
      %2337 = vmatpush1.msra.mxu0 0.0
      %2338 = vmatprep.subr.mxu0 0.0
      %2339 = vmatpush1.msra.mxu0 0.0
      %2340 = vmatprep.subr.mxu0 0.0
      %2341 = vmatpush1.msra.mxu0 0.0
      %2342 = vmatprep.subr.mxu0 0.0
      %2343 = vmatpush1.msra.mxu0 0.0
      %2344 = vmatprep.subr.mxu0 0.0
      %2345 = vmatpush1.msra.mxu0 0.0
      %2346 = vmatprep.subr.mxu0 0.0
      %2347 = vmatpush1.msra.mxu0 0.0
      %2348 = vmatprep.subr.mxu0 0.0
      %2349 = vmatpush1.msra.mxu0 0.0
      %2350 = vmatprep.subr.mxu0 0.0
      %2351 = vmatpush1.msra.mxu0 0.0
      %2352 = vmatprep.subr.mxu0 0.0
      %2353 = vmatpush1.msra.mxu0 0.0
      %2354 = vmatprep.subr.mxu0 0.0
      %2355 = vmatpush1.msra.mxu0 0.0
      %2356 = vmatprep.subr.mxu0 0.0
      %2357 = vmatpush1.msra.mxu0 0.0
      %2358 = vmatprep.subr.mxu0 0.0
      %2359 = vmatpush1.msra.mxu0 0.0
      %2360 = vmatprep.subr.mxu0 0.0
      %2361 = vmatpush1.msra.mxu0 0.0
      %2362 = vmatprep.subr.mxu0 0.0
      %2363 = vmatpush1.msra.mxu0 0.0
      %2364 = vmatprep.subr.mxu0 0.0
      %2365 = vmatpush1.msra.mxu0 0.0
      %2366 = vmatprep.subr.mxu0 0.0
      %2367 = vmatpush1.msra.mxu0 0.0
      %2368 = vmatprep.subr.mxu0 0.0
      %2369 = vmatpush1.msra.mxu0 0.0
      %2370 = vmatprep.subr.mxu0 0.0
      %2371 = vmatpush1.msra.mxu0 0.0
      %2372 = vmatprep.subr.mxu0 0.0
      %2373 = vmatpush1.msra.mxu0 0.0
      %2374 = vmatprep.subr.mxu0 0.0
      %2375 = vmatpush1.msra.mxu0 0.0
      %2376 = vmatprep.subr.mxu0 0.0
      %2377 = vmatpush1.msra.mxu0 0.0
      %2378 = vmatprep.subr.mxu0 0.0
      %2379 = vmatpush1.msra.mxu0 0.0
      %2380 = vmatprep.mubr.f32.mxu0 0.0
      %2381 = vmatmul.mubr.f32.gmra.mrb[0].mxu0 %v2312
      %v2382 = vpop.f32.mrb[0].mxu0
      %v2383 = vadd.f32 0.0, %v2382
      %v2384 = vpop.f32.mrb[0].mxu0
      %v2385 = vadd.f32 0.0, %v2384
      %2386 = vmatprep.mubr.f32.mxu0 0.0
      %2387 = vmatmul.mubr.f32.gmra.mrb[0].mxu0 %v2314
      %v2388 = vpop.f32.mrb[0].mxu0
      %v2389 = vadd.f32 0.0, %v2388
      %v2390 = vpop.f32.mrb[0].mxu0
      %v2391 = vadd.f32 0.0, %v2390
      %2392 = vdwg.mxu0
      %v2393 = vsel %vm701, %v635, 0
      %v2395 = vsel %vm701, %v636, 0
      %2397 = vmatprep.subr.mxu0 %v1471
      %2398 = vmatpush1.msra.mxu0 %v1470
      %2399 = vmatprep.subr.mxu0 0.0
      %2400 = vmatpush1.msra.mxu0 0.0
      %2401 = vmatprep.subr.mxu0 0.0
      %2402 = vmatpush1.msra.mxu0 0.0
      %2403 = vmatprep.subr.mxu0 0.0
      %2404 = vmatpush1.msra.mxu0 0.0
      %2405 = vmatprep.subr.mxu0 0.0
      %2406 = vmatpush1.msra.mxu0 0.0
      %2407 = vmatprep.subr.mxu0 0.0
      %2408 = vmatpush1.msra.mxu0 0.0
      %2409 = vmatprep.subr.mxu0 0.0
      %2410 = vmatpush1.msra.mxu0 0.0
      %2411 = vmatprep.subr.mxu0 0.0
      %2412 = vmatpush1.msra.mxu0 0.0
      %2413 = vmatprep.subr.mxu0 0.0
      %2414 = vmatpush1.msra.mxu0 0.0
      %2415 = vmatprep.subr.mxu0 0.0
      %2416 = vmatpush1.msra.mxu0 0.0
      %2417 = vmatprep.subr.mxu0 0.0
      %2418 = vmatpush1.msra.mxu0 0.0
      %2419 = vmatprep.subr.mxu0 0.0
      %2420 = vmatpush1.msra.mxu0 0.0
      %2421 = vmatprep.subr.mxu0 0.0
      %2422 = vmatpush1.msra.mxu0 0.0
      %2423 = vmatprep.subr.mxu0 0.0
      %2424 = vmatpush1.msra.mxu0 0.0
      %2425 = vmatprep.subr.mxu0 0.0
      %2426 = vmatpush1.msra.mxu0 0.0
      %2427 = vmatprep.subr.mxu0 0.0
      %2428 = vmatpush1.msra.mxu0 0.0
      %2429 = vmatprep.subr.mxu0 0.0
      %2430 = vmatpush1.msra.mxu0 0.0
      %2431 = vmatprep.subr.mxu0 0.0
      %2432 = vmatpush1.msra.mxu0 0.0
      %2433 = vmatprep.subr.mxu0 0.0
      %2434 = vmatpush1.msra.mxu0 0.0
      %2435 = vmatprep.subr.mxu0 0.0
      %2436 = vmatpush1.msra.mxu0 0.0
      %2437 = vmatprep.subr.mxu0 0.0
      %2438 = vmatpush1.msra.mxu0 0.0
      %2439 = vmatprep.subr.mxu0 0.0
      %2440 = vmatpush1.msra.mxu0 0.0
      %2441 = vmatprep.subr.mxu0 0.0
      %2442 = vmatpush1.msra.mxu0 0.0
      %2443 = vmatprep.subr.mxu0 0.0
      %2444 = vmatpush1.msra.mxu0 0.0
      %2445 = vmatprep.subr.mxu0 0.0
      %2446 = vmatpush1.msra.mxu0 0.0
      %2447 = vmatprep.subr.mxu0 0.0
      %2448 = vmatpush1.msra.mxu0 0.0
      %2449 = vmatprep.subr.mxu0 0.0
      %2450 = vmatpush1.msra.mxu0 0.0
      %2451 = vmatprep.subr.mxu0 0.0
      %2452 = vmatpush1.msra.mxu0 0.0
      %2453 = vmatprep.subr.mxu0 0.0
      %2454 = vmatpush1.msra.mxu0 0.0
      %2455 = vmatprep.subr.mxu0 0.0
      %2456 = vmatpush1.msra.mxu0 0.0
      %2457 = vmatprep.subr.mxu0 0.0
      %2458 = vmatpush1.msra.mxu0 0.0
      %2459 = vmatprep.subr.mxu0 0.0
      %2460 = vmatpush1.msra.mxu0 0.0
      %2461 = vmatprep.mubr.f32.mxu0 0.0
      %2462 = vmatmul.mubr.f32.gmra.mrb[0].mxu0 %v2393
      %v2463 = vpop.f32.mrb[0].mxu0
      %v2464 = vadd.f32 %v2383, %v2463
      %v2465 = vpop.f32.mrb[0].mxu0
      %v2466 = vadd.f32 %v2385, %v2465
      %2467 = vmatprep.mubr.f32.mxu0 0.0
      %2468 = vmatmul.mubr.f32.gmra.mrb[0].mxu0 %v2395
      %v2469 = vpop.f32.mrb[0].mxu0
      %v2470 = vadd.f32 %v2389, %v2469
      %v2471 = vpop.f32.mrb[0].mxu0
      %v2472 = vadd.f32 %v2391, %v2471
      %2473 = vdwg.mxu0
      %2474 = vxpose.xlu0.b32.start [1/16] %v613, 128
      %2475 = vxpose.xlu0.b32.cont [2/16] 0.0, 128
      %2476 = vxpose.xlu0.b32.cont [3/16] 0.0, 128
      %2477 = vxpose.xlu0.b32.cont [4/16] 0.0, 128
      %2478 = vxpose.xlu0.b32.cont [5/16] 0.0, 128
      %2479 = vxpose.xlu0.b32.cont [6/16] 0.0, 128
      %2480 = vxpose.xlu0.b32.cont [7/16] 0.0, 128
      %2481 = vxpose.xlu0.b32.cont [8/16] 0.0, 128
      %2482 = vxpose.xlu0.b32.cont [9/16] 0.0, 128
      %2483 = vxpose.xlu0.b32.cont [10/16] 0.0, 128
      %2484 = vxpose.xlu0.b32.cont [11/16] 0.0, 128
      %2485 = vxpose.xlu0.b32.cont [12/16] 0.0, 128
      %2486 = vxpose.xlu0.b32.cont [13/16] 0.0, 128
      %2487 = vxpose.xlu0.b32.cont [14/16] 0.0, 128
      %2488 = vxpose.xlu0.b32.cont [15/16] 0.0, 128
      %2489 = vxpose.xlu0.b32.end [16/16] 0.0, 128
      %v2490 = vpop.trf.xlu0
      %v2491 = vpop.trf.xlu0
      %v2492 = vpop.trf.xlu0
      %v2493 = vpop.trf.xlu0
      %v2494 = vpop.trf.xlu0
      %v2495 = vpop.trf.xlu0
      %v2496 = vpop.trf.xlu0
      %v2497 = vpop.trf.xlu0
      %v2498 = vpop.trf.xlu0
      %v2499 = vpop.trf.xlu0
      %v2500 = vpop.trf.xlu0
      %v2501 = vpop.trf.xlu0
      %v2502 = vpop.trf.xlu0
      %v2503 = vpop.trf.xlu0
      %v2504 = vpop.trf.xlu0
      %v2505 = vpop.trf.xlu0
      %2506 = vxpose.xlu0.b32.start [1/16] %v614, 128
      %2507 = vxpose.xlu0.b32.cont [2/16] 0.0, 128
      %2508 = vxpose.xlu0.b32.cont [3/16] 0.0, 128
      %2509 = vxpose.xlu0.b32.cont [4/16] 0.0, 128
      %2510 = vxpose.xlu0.b32.cont [5/16] 0.0, 128
      %2511 = vxpose.xlu0.b32.cont [6/16] 0.0, 128
      %2512 = vxpose.xlu0.b32.cont [7/16] 0.0, 128
      %2513 = vxpose.xlu0.b32.cont [8/16] 0.0, 128
      %2514 = vxpose.xlu0.b32.cont [9/16] 0.0, 128
      %2515 = vxpose.xlu0.b32.cont [10/16] 0.0, 128
      %2516 = vxpose.xlu0.b32.cont [11/16] 0.0, 128
      %2517 = vxpose.xlu0.b32.cont [12/16] 0.0, 128
      %2518 = vxpose.xlu0.b32.cont [13/16] 0.0, 128
      %2519 = vxpose.xlu0.b32.cont [14/16] 0.0, 128
      %2520 = vxpose.xlu0.b32.cont [15/16] 0.0, 128
      %2521 = vxpose.xlu0.b32.end [16/16] 0.0, 128
      %v2522 = vpop.trf.xlu0
      %v2523 = vpop.trf.xlu0
      %v2524 = vpop.trf.xlu0
      %v2525 = vpop.trf.xlu0
      %v2526 = vpop.trf.xlu0
      %v2527 = vpop.trf.xlu0
      %v2528 = vpop.trf.xlu0
      %v2529 = vpop.trf.xlu0
      %v2530 = vpop.trf.xlu0
      %v2531 = vpop.trf.xlu0
      %v2532 = vpop.trf.xlu0
      %v2533 = vpop.trf.xlu0
      %v2534 = vpop.trf.xlu0
      %v2535 = vpop.trf.xlu0
      %v2536 = vpop.trf.xlu0
      %v2537 = vpop.trf.xlu0
      %v2539 = vsel %vm701, %v2490, 0
      %v2542 = vsel %vm701, %v2491, 0
      %v2545 = vsel %vm701, %v2492, 0
      %v2548 = vsel %vm701, %v2493, 0
      %v2551 = vsel %vm701, %v2494, 0
      %v2554 = vsel %vm701, %v2495, 0
      %v2557 = vsel %vm701, %v2496, 0
      %v2560 = vsel %vm701, %v2497, 0
      %v2563 = vsel %vm701, %v2498, 0
      %v2566 = vsel %vm701, %v2499, 0
      %v2569 = vsel %vm701, %v2500, 0
      %v2572 = vsel %vm701, %v2501, 0
      %v2575 = vsel %vm701, %v2502, 0
      %v2578 = vsel %vm701, %v2503, 0
      %v2581 = vsel %vm701, %v2504, 0
      %v2584 = vsel %vm701, %v2505, 0
      %v2587 = vsel %vm701, %v2522, 0
      %v2590 = vsel %vm701, %v2523, 0
      %v2593 = vsel %vm701, %v2524, 0
      %v2596 = vsel %vm701, %v2525, 0
      %v2599 = vsel %vm701, %v2526, 0
      %v2602 = vsel %vm701, %v2527, 0
      %v2605 = vsel %vm701, %v2528, 0
      %v2608 = vsel %vm701, %v2529, 0
      %v2611 = vsel %vm701, %v2530, 0
      %v2614 = vsel %vm701, %v2531, 0
      %v2617 = vsel %vm701, %v2532, 0
      %v2620 = vsel %vm701, %v2533, 0
      %v2623 = vsel %vm701, %v2534, 0
      %v2626 = vsel %vm701, %v2535, 0
      %v2629 = vsel %vm701, %v2536, 0
      %v2632 = vsel %vm701, %v2537, 0
      %2634 = vmatprep.subr.mxu0 %v598
      %2635 = vmatpush1.msra.mxu0 %v597
      %2636 = vmatprep.subr.mxu0 0.0
      %2637 = vmatpush1.msra.mxu0 0.0
      %2638 = vmatprep.subr.mxu0 0.0
      %2639 = vmatpush1.msra.mxu0 0.0
      %2640 = vmatprep.subr.mxu0 0.0
      %2641 = vmatpush1.msra.mxu0 0.0
      %2642 = vmatprep.subr.mxu0 0.0
      %2643 = vmatpush1.msra.mxu0 0.0
      %2644 = vmatprep.subr.mxu0 0.0
      %2645 = vmatpush1.msra.mxu0 0.0
      %2646 = vmatprep.subr.mxu0 0.0
      %2647 = vmatpush1.msra.mxu0 0.0
      %2648 = vmatprep.subr.mxu0 0.0
      %2649 = vmatpush1.msra.mxu0 0.0
      %2650 = vmatprep.subr.mxu0 0.0
      %2651 = vmatpush1.msra.mxu0 0.0
      %2652 = vmatprep.subr.mxu0 0.0
      %2653 = vmatpush1.msra.mxu0 0.0
      %2654 = vmatprep.subr.mxu0 0.0
      %2655 = vmatpush1.msra.mxu0 0.0
      %2656 = vmatprep.subr.mxu0 0.0
      %2657 = vmatpush1.msra.mxu0 0.0
      %2658 = vmatprep.subr.mxu0 0.0
      %2659 = vmatpush1.msra.mxu0 0.0
      %2660 = vmatprep.subr.mxu0 0.0
      %2661 = vmatpush1.msra.mxu0 0.0
      %2662 = vmatprep.subr.mxu0 0.0
      %2663 = vmatpush1.msra.mxu0 0.0
      %2664 = vmatprep.subr.mxu0 0.0
      %2665 = vmatpush1.msra.mxu0 0.0
      %2666 = vmatprep.subr.mxu0 0.0
      %2667 = vmatpush1.msra.mxu0 0.0
      %2668 = vmatprep.subr.mxu0 0.0
      %2669 = vmatpush1.msra.mxu0 0.0
      %2670 = vmatprep.subr.mxu0 0.0
      %2671 = vmatpush1.msra.mxu0 0.0
      %2672 = vmatprep.subr.mxu0 0.0
      %2673 = vmatpush1.msra.mxu0 0.0
      %2674 = vmatprep.subr.mxu0 0.0
      %2675 = vmatpush1.msra.mxu0 0.0
      %2676 = vmatprep.subr.mxu0 0.0
      %2677 = vmatpush1.msra.mxu0 0.0
      %2678 = vmatprep.subr.mxu0 0.0
      %2679 = vmatpush1.msra.mxu0 0.0
      %2680 = vmatprep.subr.mxu0 0.0
      %2681 = vmatpush1.msra.mxu0 0.0
      %2682 = vmatprep.subr.mxu0 0.0
      %2683 = vmatpush1.msra.mxu0 0.0
      %2684 = vmatprep.subr.mxu0 0.0
      %2685 = vmatpush1.msra.mxu0 0.0
      %2686 = vmatprep.subr.mxu0 0.0
      %2687 = vmatpush1.msra.mxu0 0.0
      %2688 = vmatprep.subr.mxu0 0.0
      %2689 = vmatpush1.msra.mxu0 0.0
      %2690 = vmatprep.subr.mxu0 0.0
      %2691 = vmatpush1.msra.mxu0 0.0
      %2692 = vmatprep.subr.mxu0 0.0
      %2693 = vmatpush1.msra.mxu0 0.0
      %2694 = vmatprep.subr.mxu0 0.0
      %2695 = vmatpush1.msra.mxu0 0.0
      %2696 = vmatprep.subr.mxu0 0.0
      %2697 = vmatpush1.msra.mxu0 0.0
      %2698 = vmatprep.mubr.f32.mxu0 0.0
      %2699 = vmatmul.mubr.f32.gmra.mrb[0].mxu0 %v2539
      %v2700 = vpop.f32.mrb[0].mxu0
      %v2701 = vadd.f32 0.0, %v2700
      %v2702 = vpop.f32.mrb[0].mxu0
      %v2703 = vadd.f32 0.0, %v2702
      %2704 = vmatprep.mubr.f32.mxu0 0.0
      %2705 = vmatmul.mubr.f32.gmra.mrb[0].mxu0 %v2542
      %v2706 = vpop.f32.mrb[0].mxu0
      %v2707 = vadd.f32 0.0, %v2706
      %v2708 = vpop.f32.mrb[0].mxu0
      %v2709 = vadd.f32 0.0, %v2708
      %2710 = vmatprep.mubr.f32.mxu0 0.0
      %2711 = vmatmul.mubr.f32.gmra.mrb[0].mxu0 %v2545
      %v2712 = vpop.f32.mrb[0].mxu0
      %v2713 = vadd.f32 0.0, %v2712
      %v2714 = vpop.f32.mrb[0].mxu0
      %v2715 = vadd.f32 0.0, %v2714
      %2716 = vmatprep.mubr.f32.mxu0 0.0
      %2717 = vmatmul.mubr.f32.gmra.mrb[0].mxu0 %v2548
      %v2718 = vpop.f32.mrb[0].mxu0
      %v2719 = vadd.f32 0.0, %v2718
      %v2720 = vpop.f32.mrb[0].mxu0
      %v2721 = vadd.f32 0.0, %v2720
      %2722 = vmatprep.mubr.f32.mxu0 0.0
      %2723 = vmatmul.mubr.f32.gmra.mrb[0].mxu0 %v2551
      %v2724 = vpop.f32.mrb[0].mxu0
      %v2725 = vadd.f32 0.0, %v2724
      %v2726 = vpop.f32.mrb[0].mxu0
      %v2727 = vadd.f32 0.0, %v2726
      %2728 = vmatprep.mubr.f32.mxu0 0.0
      %2729 = vmatmul.mubr.f32.gmra.mrb[0].mxu0 %v2554
      %v2730 = vpop.f32.mrb[0].mxu0
      %v2731 = vadd.f32 0.0, %v2730
      %v2732 = vpop.f32.mrb[0].mxu0
      %v2733 = vadd.f32 0.0, %v2732
      %2734 = vmatprep.mubr.f32.mxu0 0.0
      %2735 = vmatmul.mubr.f32.gmra.mrb[0].mxu0 %v2557
      %v2736 = vpop.f32.mrb[0].mxu0
      %v2737 = vadd.f32 0.0, %v2736
      %v2738 = vpop.f32.mrb[0].mxu0
      %v2739 = vadd.f32 0.0, %v2738
      %2740 = vmatprep.mubr.f32.mxu0 0.0
      %2741 = vmatmul.mubr.f32.gmra.mrb[0].mxu0 %v2560
      %v2742 = vpop.f32.mrb[0].mxu0
      %v2743 = vadd.f32 0.0, %v2742
      %v2744 = vpop.f32.mrb[0].mxu0
      %v2745 = vadd.f32 0.0, %v2744
      %2746 = vmatprep.mubr.f32.mxu0 0.0
      %2747 = vmatmul.mubr.f32.gmra.mrb[0].mxu0 %v2563
      %v2748 = vpop.f32.mrb[0].mxu0
      %v2749 = vadd.f32 0.0, %v2748
      %v2750 = vpop.f32.mrb[0].mxu0
      %v2751 = vadd.f32 0.0, %v2750
      %2752 = vmatprep.mubr.f32.mxu0 0.0
      %2753 = vmatmul.mubr.f32.gmra.mrb[0].mxu0 %v2566
      %v2754 = vpop.f32.mrb[0].mxu0
      %v2755 = vadd.f32 0.0, %v2754
      %v2756 = vpop.f32.mrb[0].mxu0
      %v2757 = vadd.f32 0.0, %v2756
      %2758 = vmatprep.mubr.f32.mxu0 0.0
      %2759 = vmatmul.mubr.f32.gmra.mrb[0].mxu0 %v2569
      %v2760 = vpop.f32.mrb[0].mxu0
      %v2761 = vadd.f32 0.0, %v2760
      %v2762 = vpop.f32.mrb[0].mxu0
      %v2763 = vadd.f32 0.0, %v2762
      %2764 = vmatprep.mubr.f32.mxu0 0.0
      %2765 = vmatmul.mubr.f32.gmra.mrb[0].mxu0 %v2572
      %v2766 = vpop.f32.mrb[0].mxu0
      %v2767 = vadd.f32 0.0, %v2766
      %v2768 = vpop.f32.mrb[0].mxu0
      %v2769 = vadd.f32 0.0, %v2768
      %2770 = vmatprep.mubr.f32.mxu0 0.0
      %2771 = vmatmul.mubr.f32.gmra.mrb[0].mxu0 %v2575
      %v2772 = vpop.f32.mrb[0].mxu0
      %v2773 = vadd.f32 0.0, %v2772
      %v2774 = vpop.f32.mrb[0].mxu0
      %v2775 = vadd.f32 0.0, %v2774
      %2776 = vmatprep.mubr.f32.mxu0 0.0
      %2777 = vmatmul.mubr.f32.gmra.mrb[0].mxu0 %v2578
      %v2778 = vpop.f32.mrb[0].mxu0
      %v2779 = vadd.f32 0.0, %v2778
      %v2780 = vpop.f32.mrb[0].mxu0
      %v2781 = vadd.f32 0.0, %v2780
      %2782 = vmatprep.mubr.f32.mxu0 0.0
      %2783 = vmatmul.mubr.f32.gmra.mrb[0].mxu0 %v2581
      %v2784 = vpop.f32.mrb[0].mxu0
      %v2785 = vadd.f32 0.0, %v2784
      %v2786 = vpop.f32.mrb[0].mxu0
      %v2787 = vadd.f32 0.0, %v2786
      %2788 = vmatprep.mubr.f32.mxu0 0.0
      %2789 = vmatmul.mubr.f32.gmra.mrb[0].mxu0 %v2584
      %v2790 = vpop.f32.mrb[0].mxu0
      %v2791 = vadd.f32 0.0, %v2790
      %v2792 = vpop.f32.mrb[0].mxu0
      %v2793 = vadd.f32 0.0, %v2792
      %2794 = vmatprep.mubr.f32.mxu0 0.0
      %2795 = vmatmul.mubr.f32.gmra.mrb[0].mxu0 %v2587
      %v2796 = vpop.f32.mrb[0].mxu0
      %v2797 = vadd.f32 0.0, %v2796
      %v2798 = vpop.f32.mrb[0].mxu0
      %v2799 = vadd.f32 0.0, %v2798
      %2800 = vmatprep.mubr.f32.mxu0 0.0
      %2801 = vmatmul.mubr.f32.gmra.mrb[0].mxu0 %v2590
      %v2802 = vpop.f32.mrb[0].mxu0
      %v2803 = vadd.f32 0.0, %v2802
      %v2804 = vpop.f32.mrb[0].mxu0
      %v2805 = vadd.f32 0.0, %v2804
      %2806 = vmatprep.mubr.f32.mxu0 0.0
      %2807 = vmatmul.mubr.f32.gmra.mrb[0].mxu0 %v2593
      %v2808 = vpop.f32.mrb[0].mxu0
      %v2809 = vadd.f32 0.0, %v2808
      %v2810 = vpop.f32.mrb[0].mxu0
      %v2811 = vadd.f32 0.0, %v2810
      %2812 = vmatprep.mubr.f32.mxu0 0.0
      %2813 = vmatmul.mubr.f32.gmra.mrb[0].mxu0 %v2596
      %v2814 = vpop.f32.mrb[0].mxu0
      %v2815 = vadd.f32 0.0, %v2814
      %v2816 = vpop.f32.mrb[0].mxu0
      %v2817 = vadd.f32 0.0, %v2816
      %2818 = vmatprep.mubr.f32.mxu0 0.0
      %2819 = vmatmul.mubr.f32.gmra.mrb[0].mxu0 %v2599
      %v2820 = vpop.f32.mrb[0].mxu0
      %v2821 = vadd.f32 0.0, %v2820
      %v2822 = vpop.f32.mrb[0].mxu0
      %v2823 = vadd.f32 0.0, %v2822
      %2824 = vmatprep.mubr.f32.mxu0 0.0
      %2825 = vmatmul.mubr.f32.gmra.mrb[0].mxu0 %v2602
      %v2826 = vpop.f32.mrb[0].mxu0
      %v2827 = vadd.f32 0.0, %v2826
      %v2828 = vpop.f32.mrb[0].mxu0
      %v2829 = vadd.f32 0.0, %v2828
      %2830 = vmatprep.mubr.f32.mxu0 0.0
      %2831 = vmatmul.mubr.f32.gmra.mrb[0].mxu0 %v2605
      %v2832 = vpop.f32.mrb[0].mxu0
      %v2833 = vadd.f32 0.0, %v2832
      %v2834 = vpop.f32.mrb[0].mxu0
      %v2835 = vadd.f32 0.0, %v2834
      %2836 = vmatprep.mubr.f32.mxu0 0.0
      %2837 = vmatmul.mubr.f32.gmra.mrb[0].mxu0 %v2608
      %v2838 = vpop.f32.mrb[0].mxu0
      %v2839 = vadd.f32 0.0, %v2838
      %v2840 = vpop.f32.mrb[0].mxu0
      %v2841 = vadd.f32 0.0, %v2840
      %2842 = vmatprep.mubr.f32.mxu0 0.0
      %2843 = vmatmul.mubr.f32.gmra.mrb[0].mxu0 %v2611
      %v2844 = vpop.f32.mrb[0].mxu0
      %v2845 = vadd.f32 0.0, %v2844
      %v2846 = vpop.f32.mrb[0].mxu0
      %v2847 = vadd.f32 0.0, %v2846
      %2848 = vmatprep.mubr.f32.mxu0 0.0
      %2849 = vmatmul.mubr.f32.gmra.mrb[0].mxu0 %v2614
      %v2850 = vpop.f32.mrb[0].mxu0
      %v2851 = vadd.f32 0.0, %v2850
      %v2852 = vpop.f32.mrb[0].mxu0
      %v2853 = vadd.f32 0.0, %v2852
      %2854 = vmatprep.mubr.f32.mxu0 0.0
      %2855 = vmatmul.mubr.f32.gmra.mrb[0].mxu0 %v2617
      %v2856 = vpop.f32.mrb[0].mxu0
      %v2857 = vadd.f32 0.0, %v2856
      %v2858 = vpop.f32.mrb[0].mxu0
      %v2859 = vadd.f32 0.0, %v2858
      %2860 = vmatprep.mubr.f32.mxu0 0.0
      %2861 = vmatmul.mubr.f32.gmra.mrb[0].mxu0 %v2620
      %v2862 = vpop.f32.mrb[0].mxu0
      %v2863 = vadd.f32 0.0, %v2862
      %v2864 = vpop.f32.mrb[0].mxu0
      %v2865 = vadd.f32 0.0, %v2864
      %2866 = vmatprep.mubr.f32.mxu0 0.0
      %2867 = vmatmul.mubr.f32.gmra.mrb[0].mxu0 %v2623
      %v2868 = vpop.f32.mrb[0].mxu0
      %v2869 = vadd.f32 0.0, %v2868
      %v2870 = vpop.f32.mrb[0].mxu0
      %v2871 = vadd.f32 0.0, %v2870
      %2872 = vmatprep.mubr.f32.mxu0 0.0
      %2873 = vmatmul.mubr.f32.gmra.mrb[0].mxu0 %v2626
      %v2874 = vpop.f32.mrb[0].mxu0
      %v2875 = vadd.f32 0.0, %v2874
      %v2876 = vpop.f32.mrb[0].mxu0
      %v2877 = vadd.f32 0.0, %v2876
      %2878 = vmatprep.mubr.f32.mxu0 0.0
      %2879 = vmatmul.mubr.f32.gmra.mrb[0].mxu0 %v2629
      %v2880 = vpop.f32.mrb[0].mxu0
      %v2881 = vadd.f32 0.0, %v2880
      %v2882 = vpop.f32.mrb[0].mxu0
      %v2883 = vadd.f32 0.0, %v2882
      %2884 = vmatprep.mubr.f32.mxu0 0.0
      %2885 = vmatmul.mubr.f32.gmra.mrb[0].mxu0 %v2632
      %v2886 = vpop.f32.mrb[0].mxu0
      %v2887 = vadd.f32 0.0, %v2886
      %v2888 = vpop.f32.mrb[0].mxu0
      %v2889 = vadd.f32 0.0, %v2888
      %2890 = vdwg.mxu0
      %v2891 = vmax.f32 %v2701, %v2713
      %v2892 = vmax.f32 %v2707, %v2719
      %v2893 = vmax.f32 %v2891, %v2725
      %v2894 = vmax.f32 %v2892, %v2731
      %v2895 = vmax.f32 %v2893, %v2737
      %v2896 = vmax.f32 %v2894, %v2743
      %v2897 = vmax.f32 %v2895, %v2749
      %v2898 = vmax.f32 %v2896, %v2755
      %v2899 = vmax.f32 %v2897, %v2761
      %v2900 = vmax.f32 %v2898, %v2767
      %v2901 = vmax.f32 %v2899, %v2773
      %v2902 = vmax.f32 %v2900, %v2779
      %v2903 = vmax.f32 %v2901, %v2785
      %v2904 = vmax.f32 %v2902, %v2791
      %v2905 = vmax.f32 %v2903, %v2797
      %v2906 = vmax.f32 %v2904, %v2803
      %v2907 = vmax.f32 %v2905, %v2809
      %v2908 = vmax.f32 %v2906, %v2815
      %v2909 = vmax.f32 %v2907, %v2821
      %v2910 = vmax.f32 %v2908, %v2827
      %v2911 = vmax.f32 %v2909, %v2833
      %v2912 = vmax.f32 %v2910, %v2839
      %v2913 = vmax.f32 %v2911, %v2845
      %v2914 = vmax.f32 %v2912, %v2851
      %v2915 = vmax.f32 %v2913, %v2857
      %v2916 = vmax.f32 %v2914, %v2863
      %v2917 = vmax.f32 %v2915, %v2869
      %v2918 = vmax.f32 %v2916, %v2875
      %v2919 = vmax.f32 %v2917, %v2881
      %v2920 = vmax.f32 %v2918, %v2887
      %v2921 = vmax.f32 %v2919, %v2920
      %v2922 = vrot.slane %v2921, 4
      %v2923 = vmax.f32 %v2921, %v2922
      %v2924 = vrot.slane %v2923, 2
      %v2925 = vmax.f32 %v2923, %v2924
      %v2926 = vrot.slane %v2925, 1
      %v2927 = vmax.f32 %v2925, %v2926
      %v2928 = vmax.f32 %v2703, %v2715
      %v2929 = vmax.f32 %v2709, %v2721
      %v2930 = vmax.f32 %v2928, %v2727
      %v2931 = vmax.f32 %v2929, %v2733
      %v2932 = vmax.f32 %v2930, %v2739
      %v2933 = vmax.f32 %v2931, %v2745
      %v2934 = vmax.f32 %v2932, %v2751
      %v2935 = vmax.f32 %v2933, %v2757
      %v2936 = vmax.f32 %v2934, %v2763
      %v2937 = vmax.f32 %v2935, %v2769
      %v2938 = vmax.f32 %v2936, %v2775
      %v2939 = vmax.f32 %v2937, %v2781
      %v2940 = vmax.f32 %v2938, %v2787
      %v2941 = vmax.f32 %v2939, %v2793
      %v2942 = vmax.f32 %v2940, %v2799
      %v2943 = vmax.f32 %v2941, %v2805
      %v2944 = vmax.f32 %v2942, %v2811
      %v2945 = vmax.f32 %v2943, %v2817
      %v2946 = vmax.f32 %v2944, %v2823
      %v2947 = vmax.f32 %v2945, %v2829
      %v2948 = vmax.f32 %v2946, %v2835
      %v2949 = vmax.f32 %v2947, %v2841
      %v2950 = vmax.f32 %v2948, %v2847
      %v2951 = vmax.f32 %v2949, %v2853
      %v2952 = vmax.f32 %v2950, %v2859
      %v2953 = vmax.f32 %v2951, %v2865
      %v2954 = vmax.f32 %v2952, %v2871
      %v2955 = vmax.f32 %v2953, %v2877
      %v2956 = vmax.f32 %v2954, %v2883
      %v2957 = vmax.f32 %v2955, %v2889
      %v2958 = vmax.f32 %v2956, %v2957
      %v2959 = vrot.slane %v2958, 4
      %v2960 = vmax.f32 %v2958, %v2959
      %v2961 = vrot.slane %v2960, 2
      %v2962 = vmax.f32 %v2960, %v2961
      %v2963 = vrot.slane %v2962, 1
      %v2964 = vmax.f32 %v2962, %v2963
      %v2965 = vsub.f32 %v2701, %v2927
      %v2966 = vsub.f32 %v2703, %v2964
      %v2967 = vsub.f32 %v2707, %v2927
      %v2968 = vsub.f32 %v2709, %v2964
      %v2969 = vsub.f32 %v2713, %v2927
      %v2970 = vsub.f32 %v2715, %v2964
      %v2971 = vsub.f32 %v2719, %v2927
      %v2972 = vsub.f32 %v2721, %v2964
      %v2973 = vsub.f32 %v2725, %v2927
      %v2974 = vsub.f32 %v2727, %v2964
      %v2975 = vsub.f32 %v2731, %v2927
      %v2976 = vsub.f32 %v2733, %v2964
      %v2977 = vsub.f32 %v2737, %v2927
      %v2978 = vsub.f32 %v2739, %v2964
      %v2979 = vsub.f32 %v2743, %v2927
      %v2980 = vsub.f32 %v2745, %v2964
      %v2981 = vsub.f32 %v2749, %v2927
      %v2982 = vsub.f32 %v2751, %v2964
      %v2983 = vsub.f32 %v2755, %v2927
      %v2984 = vsub.f32 %v2757, %v2964
      %v2985 = vsub.f32 %v2761, %v2927
      %v2986 = vsub.f32 %v2763, %v2964
      %v2987 = vsub.f32 %v2767, %v2927
      %v2988 = vsub.f32 %v2769, %v2964
      %v2989 = vsub.f32 %v2773, %v2927
      %v2990 = vsub.f32 %v2775, %v2964
      %v2991 = vsub.f32 %v2779, %v2927
      %v2992 = vsub.f32 %v2781, %v2964
      %v2993 = vsub.f32 %v2785, %v2927
      %v2994 = vsub.f32 %v2787, %v2964
      %v2995 = vsub.f32 %v2791, %v2927
      %v2996 = vsub.f32 %v2793, %v2964
      %v2997 = vsub.f32 %v2797, %v2927
      %v2998 = vsub.f32 %v2799, %v2964
      %v2999 = vsub.f32 %v2803, %v2927
      %v3000 = vsub.f32 %v2805, %v2964
      %v3001 = vsub.f32 %v2809, %v2927
      %v3002 = vsub.f32 %v2811, %v2964
      %v3003 = vsub.f32 %v2815, %v2927
      %v3004 = vsub.f32 %v2817, %v2964
      %v3005 = vsub.f32 %v2821, %v2927
      %v3006 = vsub.f32 %v2823, %v2964
      %v3007 = vsub.f32 %v2827, %v2927
      %v3008 = vsub.f32 %v2829, %v2964
      %v3009 = vsub.f32 %v2833, %v2927
      %v3010 = vsub.f32 %v2835, %v2964
      %v3011 = vsub.f32 %v2839, %v2927
      %v3012 = vsub.f32 %v2841, %v2964
      %v3013 = vsub.f32 %v2845, %v2927
      %v3014 = vsub.f32 %v2847, %v2964
      %v3015 = vsub.f32 %v2851, %v2927
      %v3016 = vsub.f32 %v2853, %v2964
      %v3017 = vsub.f32 %v2857, %v2927
      %v3018 = vsub.f32 %v2859, %v2964
      %v3019 = vsub.f32 %v2863, %v2927
      %v3020 = vsub.f32 %v2865, %v2964
      %v3021 = vsub.f32 %v2869, %v2927
      %v3022 = vsub.f32 %v2871, %v2964
      %v3023 = vsub.f32 %v2875, %v2927
      %v3024 = vsub.f32 %v2877, %v2964
      %v3025 = vsub.f32 %v2881, %v2927
      %v3026 = vsub.f32 %v2883, %v2964
      %v3027 = vsub.f32 %v2887, %v2927
      %v3028 = vsub.f32 %v2889, %v2964
      %v3029 = vmul.f32 %v2965, 1.442695
      %v3030 = vpow.pop %v3029
      %v3031 = vmul.f32 %v2966, 1.442695
      %v3032 = vpow.pop %v3031
      %v3033 = vmul.f32 %v2967, 1.442695
      %v3034 = vpow.pop %v3033
      %v3035 = vmul.f32 %v2968, 1.442695
      %v3036 = vpow.pop %v3035
      %v3037 = vmul.f32 %v2969, 1.442695
      %v3038 = vpow.pop %v3037
      %v3039 = vmul.f32 %v2970, 1.442695
      %v3040 = vpow.pop %v3039
      %v3041 = vmul.f32 %v2971, 1.442695
      %v3042 = vpow.pop %v3041
      %v3043 = vmul.f32 %v2972, 1.442695
      %v3044 = vpow.pop %v3043
      %v3045 = vmul.f32 %v2973, 1.442695
      %v3046 = vpow.pop %v3045
      %v3047 = vmul.f32 %v2974, 1.442695
      %v3048 = vpow.pop %v3047
      %v3049 = vmul.f32 %v2975, 1.442695
      %v3050 = vpow.pop %v3049
      %v3051 = vmul.f32 %v2976, 1.442695
      %v3052 = vpow.pop %v3051
      %v3053 = vmul.f32 %v2977, 1.442695
      %v3054 = vpow.pop %v3053
      %v3055 = vmul.f32 %v2978, 1.442695
      %v3056 = vpow.pop %v3055
      %v3057 = vmul.f32 %v2979, 1.442695
      %v3058 = vpow.pop %v3057
      %v3059 = vmul.f32 %v2980, 1.442695
      %v3060 = vpow.pop %v3059
      %v3061 = vmul.f32 %v2981, 1.442695
      %v3062 = vpow.pop %v3061
      %v3063 = vmul.f32 %v2982, 1.442695
      %v3064 = vpow.pop %v3063
      %v3065 = vmul.f32 %v2983, 1.442695
      %v3066 = vpow.pop %v3065
      %v3067 = vmul.f32 %v2984, 1.442695
      %v3068 = vpow.pop %v3067
      %v3069 = vmul.f32 %v2985, 1.442695
      %v3070 = vpow.pop %v3069
      %v3071 = vmul.f32 %v2986, 1.442695
      %v3072 = vpow.pop %v3071
      %v3073 = vmul.f32 %v2987, 1.442695
      %v3074 = vpow.pop %v3073
      %v3075 = vmul.f32 %v2988, 1.442695
      %v3076 = vpow.pop %v3075
      %v3077 = vmul.f32 %v2989, 1.442695
      %v3078 = vpow.pop %v3077
      %v3079 = vmul.f32 %v2990, 1.442695
      %v3080 = vpow.pop %v3079
      %v3081 = vmul.f32 %v2991, 1.442695
      %v3082 = vpow.pop %v3081
      %v3083 = vmul.f32 %v2992, 1.442695
      %v3084 = vpow.pop %v3083
      %v3085 = vmul.f32 %v2993, 1.442695
      %v3086 = vpow.pop %v3085
      %v3087 = vmul.f32 %v2994, 1.442695
      %v3088 = vpow.pop %v3087
      %v3089 = vmul.f32 %v2995, 1.442695
      %v3090 = vpow.pop %v3089
      %v3091 = vmul.f32 %v2996, 1.442695
      %v3092 = vpow.pop %v3091
      %v3093 = vmul.f32 %v2997, 1.442695
      %v3094 = vpow.pop %v3093
      %v3095 = vmul.f32 %v2998, 1.442695
      %v3096 = vpow.pop %v3095
      %v3097 = vmul.f32 %v2999, 1.442695
      %v3098 = vpow.pop %v3097
      %v3099 = vmul.f32 %v3000, 1.442695
      %v3100 = vpow.pop %v3099
      %v3101 = vmul.f32 %v3001, 1.442695
      %v3102 = vpow.pop %v3101
      %v3103 = vmul.f32 %v3002, 1.442695
      %v3104 = vpow.pop %v3103
      %v3105 = vmul.f32 %v3003, 1.442695
      %v3106 = vpow.pop %v3105
      %v3107 = vmul.f32 %v3004, 1.442695
      %v3108 = vpow.pop %v3107
      %v3109 = vmul.f32 %v3005, 1.442695
      %v3110 = vpow.pop %v3109
      %v3111 = vmul.f32 %v3006, 1.442695
      %v3112 = vpow.pop %v3111
      %v3113 = vmul.f32 %v3007, 1.442695
      %v3114 = vpow.pop %v3113
      %v3115 = vmul.f32 %v3008, 1.442695
      %v3116 = vpow.pop %v3115
      %v3117 = vmul.f32 %v3009, 1.442695
      %v3118 = vpow.pop %v3117
      %v3119 = vmul.f32 %v3010, 1.442695
      %v3120 = vpow.pop %v3119
      %v3121 = vmul.f32 %v3011, 1.442695
      %v3122 = vpow.pop %v3121
      %v3123 = vmul.f32 %v3012, 1.442695
      %v3124 = vpow.pop %v3123
      %v3125 = vmul.f32 %v3013, 1.442695
      %v3126 = vpow.pop %v3125
      %v3127 = vmul.f32 %v3014, 1.442695
      %v3128 = vpow.pop %v3127
      %v3129 = vmul.f32 %v3015, 1.442695
      %v3130 = vpow.pop %v3129
      %v3131 = vmul.f32 %v3016, 1.442695
      %v3132 = vpow.pop %v3131
      %v3133 = vmul.f32 %v3017, 1.442695
      %v3134 = vpow.pop %v3133
      %v3135 = vmul.f32 %v3018, 1.442695
      %v3136 = vpow.pop %v3135
      %v3137 = vmul.f32 %v3019, 1.442695
      %v3138 = vpow.pop %v3137
      %v3139 = vmul.f32 %v3020, 1.442695
      %v3140 = vpow.pop %v3139
      %v3141 = vmul.f32 %v3021, 1.442695
      %v3142 = vpow.pop %v3141
      %v3143 = vmul.f32 %v3022, 1.442695
      %v3144 = vpow.pop %v3143
      %v3145 = vmul.f32 %v3023, 1.442695
      %v3146 = vpow.pop %v3145
      %v3147 = vmul.f32 %v3024, 1.442695
      %v3148 = vpow.pop %v3147
      %v3149 = vmul.f32 %v3025, 1.442695
      %v3150 = vpow.pop %v3149
      %v3151 = vmul.f32 %v3026, 1.442695
      %v3152 = vpow.pop %v3151
      %v3153 = vmul.f32 %v3027, 1.442695
      %v3154 = vpow.pop %v3153
      %v3155 = vmul.f32 %v3028, 1.442695
      %v3156 = vpow.pop %v3155
      %v3157 = vadd.f32 %v3030, %v3034
      %v3158 = vadd.f32 %v3157, %v3038
      %v3159 = vadd.f32 %v3158, %v3042
      %v3160 = vadd.f32 %v3159, %v3046
      %v3161 = vadd.f32 %v3160, %v3050
      %v3162 = vadd.f32 %v3161, %v3054
      %v3163 = vadd.f32 %v3162, %v3058
      %v3164 = vadd.f32 %v3163, %v3062
      %v3165 = vadd.f32 %v3164, %v3066
      %v3166 = vadd.f32 %v3165, %v3070
      %v3167 = vadd.f32 %v3166, %v3074
      %v3168 = vadd.f32 %v3167, %v3078
      %v3169 = vadd.f32 %v3168, %v3082
      %v3170 = vadd.f32 %v3169, %v3086
      %v3171 = vadd.f32 %v3170, %v3090
      %v3172 = vadd.f32 %v3171, %v3094
      %v3173 = vadd.f32 %v3172, %v3098
      %v3174 = vadd.f32 %v3173, %v3102
      %v3175 = vadd.f32 %v3174, %v3106
      %v3176 = vadd.f32 %v3175, %v3110
      %v3177 = vadd.f32 %v3176, %v3114
      %v3178 = vadd.f32 %v3177, %v3118
      %v3179 = vadd.f32 %v3178, %v3122
      %v3180 = vadd.f32 %v3179, %v3126
      %v3181 = vadd.f32 %v3180, %v3130
      %v3182 = vadd.f32 %v3181, %v3134
      %v3183 = vadd.f32 %v3182, %v3138
      %v3184 = vadd.f32 %v3183, %v3142
      %v3185 = vadd.f32 %v3184, %v3146
      %v3186 = vadd.f32 %v3185, %v3150
      %v3187 = vadd.f32 %v3186, %v3154
      %v3188 = vrot.slane %v3187, 4
      %v3189 = vadd.f32 %v3187, %v3188
      %v3190 = vrot.slane %v3189, 2
      %v3191 = vadd.f32 %v3189, %v3190
      %v3192 = vrot.slane %v3191, 1
      %v3193 = vadd.f32 %v3191, %v3192
      %v3194 = vadd.f32 %v3032, %v3036
      %v3195 = vadd.f32 %v3194, %v3040
      %v3196 = vadd.f32 %v3195, %v3044
      %v3197 = vadd.f32 %v3196, %v3048
      %v3198 = vadd.f32 %v3197, %v3052
      %v3199 = vadd.f32 %v3198, %v3056
      %v3200 = vadd.f32 %v3199, %v3060
      %v3201 = vadd.f32 %v3200, %v3064
      %v3202 = vadd.f32 %v3201, %v3068
      %v3203 = vadd.f32 %v3202, %v3072
      %v3204 = vadd.f32 %v3203, %v3076
      %v3205 = vadd.f32 %v3204, %v3080
      %v3206 = vadd.f32 %v3205, %v3084
      %v3207 = vadd.f32 %v3206, %v3088
      %v3208 = vadd.f32 %v3207, %v3092
      %v3209 = vadd.f32 %v3208, %v3096
      %v3210 = vadd.f32 %v3209, %v3100
      %v3211 = vadd.f32 %v3210, %v3104
      %v3212 = vadd.f32 %v3211, %v3108
      %v3213 = vadd.f32 %v3212, %v3112
      %v3214 = vadd.f32 %v3213, %v3116
      %v3215 = vadd.f32 %v3214, %v3120
      %v3216 = vadd.f32 %v3215, %v3124
      %v3217 = vadd.f32 %v3216, %v3128
      %v3218 = vadd.f32 %v3217, %v3132
      %v3219 = vadd.f32 %v3218, %v3136
      %v3220 = vadd.f32 %v3219, %v3140
      %v3221 = vadd.f32 %v3220, %v3144
      %v3222 = vadd.f32 %v3221, %v3148
      %v3223 = vadd.f32 %v3222, %v3152
      %v3224 = vadd.f32 %v3223, %v3156
      %v3225 = vrot.slane %v3224, 4
      %v3226 = vadd.f32 %v3224, %v3225
      %v3227 = vrot.slane %v3226, 2
      %v3228 = vadd.f32 %v3226, %v3227
      %v3229 = vrot.slane %v3228, 1
      %v3230 = vadd.f32 %v3228, %v3229
      %v3231 = vrcp.pop %v3193
      %v3232 = vmul.f32 1.0, %v3231
      %v3233 = vrcp.pop %v3230
      %v3234 = vmul.f32 1.0, %v3233
      %3235 = vmatprep.subr.mxu0 %v3032
      %3236 = vmatpush1.msra.mxu0 %v3030
      %3237 = vmatprep.subr.mxu0 %v3036
      %3238 = vmatpush1.msra.mxu0 %v3034
      %3239 = vmatprep.subr.mxu0 %v3040
      %3240 = vmatpush1.msra.mxu0 %v3038
      %3241 = vmatprep.subr.mxu0 %v3044
      %3242 = vmatpush1.msra.mxu0 %v3042
      %3243 = vmatprep.subr.mxu0 %v3048
      %3244 = vmatpush1.msra.mxu0 %v3046
      %3245 = vmatprep.subr.mxu0 %v3052
      %3246 = vmatpush1.msra.mxu0 %v3050
      %3247 = vmatprep.subr.mxu0 %v3056
      %3248 = vmatpush1.msra.mxu0 %v3054
      %3249 = vmatprep.subr.mxu0 %v3060
      %3250 = vmatpush1.msra.mxu0 %v3058
      %3251 = vmatprep.subr.mxu0 %v3064
      %3252 = vmatpush1.msra.mxu0 %v3062
      %3253 = vmatprep.subr.mxu0 %v3068
      %3254 = vmatpush1.msra.mxu0 %v3066
      %3255 = vmatprep.subr.mxu0 %v3072
      %3256 = vmatpush1.msra.mxu0 %v3070
      %3257 = vmatprep.subr.mxu0 %v3076
      %3258 = vmatpush1.msra.mxu0 %v3074
      %3259 = vmatprep.subr.mxu0 %v3080
      %3260 = vmatpush1.msra.mxu0 %v3078
      %3261 = vmatprep.subr.mxu0 %v3084
      %3262 = vmatpush1.msra.mxu0 %v3082
      %3263 = vmatprep.subr.mxu0 %v3088
      %3264 = vmatpush1.msra.mxu0 %v3086
      %3265 = vmatprep.subr.mxu0 %v3092
      %3266 = vmatpush1.msra.mxu0 %v3090
      %3267 = vmatprep.subr.mxu0 %v3096
      %3268 = vmatpush1.msra.mxu0 %v3094
      %3269 = vmatprep.subr.mxu0 %v3100
      %3270 = vmatpush1.msra.mxu0 %v3098
      %3271 = vmatprep.subr.mxu0 %v3104
      %3272 = vmatpush1.msra.mxu0 %v3102
      %3273 = vmatprep.subr.mxu0 %v3108
      %3274 = vmatpush1.msra.mxu0 %v3106
      %3275 = vmatprep.subr.mxu0 %v3112
      %3276 = vmatpush1.msra.mxu0 %v3110
      %3277 = vmatprep.subr.mxu0 %v3116
      %3278 = vmatpush1.msra.mxu0 %v3114
      %3279 = vmatprep.subr.mxu0 %v3120
      %3280 = vmatpush1.msra.mxu0 %v3118
      %3281 = vmatprep.subr.mxu0 %v3124
      %3282 = vmatpush1.msra.mxu0 %v3122
      %3283 = vmatprep.subr.mxu0 %v3128
      %3284 = vmatpush1.msra.mxu0 %v3126
      %3285 = vmatprep.subr.mxu0 %v3132
      %3286 = vmatpush1.msra.mxu0 %v3130
      %3287 = vmatprep.subr.mxu0 %v3136
      %3288 = vmatpush1.msra.mxu0 %v3134
      %3289 = vmatprep.subr.mxu0 %v3140
      %3290 = vmatpush1.msra.mxu0 %v3138
      %3291 = vmatprep.subr.mxu0 %v3144
      %3292 = vmatpush1.msra.mxu0 %v3142
      %3293 = vmatprep.subr.mxu0 %v3148
      %3294 = vmatpush1.msra.mxu0 %v3146
      %3295 = vmatprep.subr.mxu0 %v3152
      %3296 = vmatpush1.msra.mxu0 %v3150
      %3297 = vmatprep.subr.mxu0 %v3156
      %3298 = vmatpush1.msra.mxu0 %v3154
      %3299 = vmatprep.mubr.f32.mxu0 %v630
      %3300 = vmatmul.mubr.f32.gmra.mrb[0].mxu0 %v629
      %v3301 = vpop.f32.mrb[0].mxu0
      %v3302 = vadd.f32 0.0, %v3301
      %v3303 = vpop.f32.mrb[0].mxu0
      %v3304 = vadd.f32 0.0, %v3303
      %3305 = vdwg.mxu0
      %v3306 = vmul.f32 %v3302, %v3232
      %v3307 = vmul.f32 %v3304, %v3234
      %3308 = vxpose.xlu0.b32.start [1/16] %v617, 128
      %3309 = vxpose.xlu0.b32.cont [2/16] 0.0, 128
      %3310 = vxpose.xlu0.b32.cont [3/16] 0.0, 128
      %3311 = vxpose.xlu0.b32.cont [4/16] 0.0, 128
      %3312 = vxpose.xlu0.b32.cont [5/16] 0.0, 128
      %3313 = vxpose.xlu0.b32.cont [6/16] 0.0, 128
      %3314 = vxpose.xlu0.b32.cont [7/16] 0.0, 128
      %3315 = vxpose.xlu0.b32.cont [8/16] 0.0, 128
      %3316 = vxpose.xlu0.b32.cont [9/16] 0.0, 128
      %3317 = vxpose.xlu0.b32.cont [10/16] 0.0, 128
      %3318 = vxpose.xlu0.b32.cont [11/16] 0.0, 128
      %3319 = vxpose.xlu0.b32.cont [12/16] 0.0, 128
      %3320 = vxpose.xlu0.b32.cont [13/16] 0.0, 128
      %3321 = vxpose.xlu0.b32.cont [14/16] 0.0, 128
      %3322 = vxpose.xlu0.b32.cont [15/16] 0.0, 128
      %3323 = vxpose.xlu0.b32.end [16/16] 0.0, 128
      %v3324 = vpop.trf.xlu0
      %v3325 = vpop.trf.xlu0
      %v3326 = vpop.trf.xlu0
      %v3327 = vpop.trf.xlu0
      %v3328 = vpop.trf.xlu0
      %v3329 = vpop.trf.xlu0
      %v3330 = vpop.trf.xlu0
      %v3331 = vpop.trf.xlu0
      %v3332 = vpop.trf.xlu0
      %v3333 = vpop.trf.xlu0
      %v3334 = vpop.trf.xlu0
      %v3335 = vpop.trf.xlu0
      %v3336 = vpop.trf.xlu0
      %v3337 = vpop.trf.xlu0
      %v3338 = vpop.trf.xlu0
      %v3339 = vpop.trf.xlu0
      %3340 = vxpose.xlu0.b32.start [1/16] %v618, 128
      %3341 = vxpose.xlu0.b32.cont [2/16] 0.0, 128
      %3342 = vxpose.xlu0.b32.cont [3/16] 0.0, 128
      %3343 = vxpose.xlu0.b32.cont [4/16] 0.0, 128
      %3344 = vxpose.xlu0.b32.cont [5/16] 0.0, 128
      %3345 = vxpose.xlu0.b32.cont [6/16] 0.0, 128
      %3346 = vxpose.xlu0.b32.cont [7/16] 0.0, 128
      %3347 = vxpose.xlu0.b32.cont [8/16] 0.0, 128
      %3348 = vxpose.xlu0.b32.cont [9/16] 0.0, 128
      %3349 = vxpose.xlu0.b32.cont [10/16] 0.0, 128
      %3350 = vxpose.xlu0.b32.cont [11/16] 0.0, 128
      %3351 = vxpose.xlu0.b32.cont [12/16] 0.0, 128
      %3352 = vxpose.xlu0.b32.cont [13/16] 0.0, 128
      %3353 = vxpose.xlu0.b32.cont [14/16] 0.0, 128
      %3354 = vxpose.xlu0.b32.cont [15/16] 0.0, 128
      %3355 = vxpose.xlu0.b32.end [16/16] 0.0, 128
      %v3356 = vpop.trf.xlu0
      %v3357 = vpop.trf.xlu0
      %v3358 = vpop.trf.xlu0
      %v3359 = vpop.trf.xlu0
      %v3360 = vpop.trf.xlu0
      %v3361 = vpop.trf.xlu0
      %v3362 = vpop.trf.xlu0
      %v3363 = vpop.trf.xlu0
      %v3364 = vpop.trf.xlu0
      %v3365 = vpop.trf.xlu0
      %v3366 = vpop.trf.xlu0
      %v3367 = vpop.trf.xlu0
      %v3368 = vpop.trf.xlu0
      %v3369 = vpop.trf.xlu0
      %v3370 = vpop.trf.xlu0
      %v3371 = vpop.trf.xlu0
      %v3373 = vsel %vm701, %v3324, 0
      %v3376 = vsel %vm701, %v3325, 0
      %v3379 = vsel %vm701, %v3326, 0
      %v3382 = vsel %vm701, %v3327, 0
      %v3385 = vsel %vm701, %v3328, 0
      %v3388 = vsel %vm701, %v3329, 0
      %v3391 = vsel %vm701, %v3330, 0
      %v3394 = vsel %vm701, %v3331, 0
      %v3397 = vsel %vm701, %v3332, 0
      %v3400 = vsel %vm701, %v3333, 0
      %v3403 = vsel %vm701, %v3334, 0
      %v3406 = vsel %vm701, %v3335, 0
      %v3409 = vsel %vm701, %v3336, 0
      %v3412 = vsel %vm701, %v3337, 0
      %v3415 = vsel %vm701, %v3338, 0
      %v3418 = vsel %vm701, %v3339, 0
      %v3421 = vsel %vm701, %v3356, 0
      %v3424 = vsel %vm701, %v3357, 0
      %v3427 = vsel %vm701, %v3358, 0
      %v3430 = vsel %vm701, %v3359, 0
      %v3433 = vsel %vm701, %v3360, 0
      %v3436 = vsel %vm701, %v3361, 0
      %v3439 = vsel %vm701, %v3362, 0
      %v3442 = vsel %vm701, %v3363, 0
      %v3445 = vsel %vm701, %v3364, 0
      %v3448 = vsel %vm701, %v3365, 0
      %v3451 = vsel %vm701, %v3366, 0
      %v3454 = vsel %vm701, %v3367, 0
      %v3457 = vsel %vm701, %v3368, 0
      %v3460 = vsel %vm701, %v3369, 0
      %v3463 = vsel %vm701, %v3370, 0
      %v3466 = vsel %vm701, %v3371, 0
      %3468 = vmatprep.subr.mxu0 %v602
      %3469 = vmatpush1.msra.mxu0 %v601
      %3470 = vmatprep.subr.mxu0 0.0
      %3471 = vmatpush1.msra.mxu0 0.0
      %3472 = vmatprep.subr.mxu0 0.0
      %3473 = vmatpush1.msra.mxu0 0.0
      %3474 = vmatprep.subr.mxu0 0.0
      %3475 = vmatpush1.msra.mxu0 0.0
      %3476 = vmatprep.subr.mxu0 0.0
      %3477 = vmatpush1.msra.mxu0 0.0
      %3478 = vmatprep.subr.mxu0 0.0
      %3479 = vmatpush1.msra.mxu0 0.0
      %3480 = vmatprep.subr.mxu0 0.0
      %3481 = vmatpush1.msra.mxu0 0.0
      %3482 = vmatprep.subr.mxu0 0.0
      %3483 = vmatpush1.msra.mxu0 0.0
      %3484 = vmatprep.subr.mxu0 0.0
      %3485 = vmatpush1.msra.mxu0 0.0
      %3486 = vmatprep.subr.mxu0 0.0
      %3487 = vmatpush1.msra.mxu0 0.0
      %3488 = vmatprep.subr.mxu0 0.0
      %3489 = vmatpush1.msra.mxu0 0.0
      %3490 = vmatprep.subr.mxu0 0.0
      %3491 = vmatpush1.msra.mxu0 0.0
      %3492 = vmatprep.subr.mxu0 0.0
      %3493 = vmatpush1.msra.mxu0 0.0
      %3494 = vmatprep.subr.mxu0 0.0
      %3495 = vmatpush1.msra.mxu0 0.0
      %3496 = vmatprep.subr.mxu0 0.0
      %3497 = vmatpush1.msra.mxu0 0.0
      %3498 = vmatprep.subr.mxu0 0.0
      %3499 = vmatpush1.msra.mxu0 0.0
      %3500 = vmatprep.subr.mxu0 0.0
      %3501 = vmatpush1.msra.mxu0 0.0
      %3502 = vmatprep.subr.mxu0 0.0
      %3503 = vmatpush1.msra.mxu0 0.0
      %3504 = vmatprep.subr.mxu0 0.0
      %3505 = vmatpush1.msra.mxu0 0.0
      %3506 = vmatprep.subr.mxu0 0.0
      %3507 = vmatpush1.msra.mxu0 0.0
      %3508 = vmatprep.subr.mxu0 0.0
      %3509 = vmatpush1.msra.mxu0 0.0
      %3510 = vmatprep.subr.mxu0 0.0
      %3511 = vmatpush1.msra.mxu0 0.0
      %3512 = vmatprep.subr.mxu0 0.0
      %3513 = vmatpush1.msra.mxu0 0.0
      %3514 = vmatprep.subr.mxu0 0.0
      %3515 = vmatpush1.msra.mxu0 0.0
      %3516 = vmatprep.subr.mxu0 0.0
      %3517 = vmatpush1.msra.mxu0 0.0
      %3518 = vmatprep.subr.mxu0 0.0
      %3519 = vmatpush1.msra.mxu0 0.0
      %3520 = vmatprep.subr.mxu0 0.0
      %3521 = vmatpush1.msra.mxu0 0.0
      %3522 = vmatprep.subr.mxu0 0.0
      %3523 = vmatpush1.msra.mxu0 0.0
      %3524 = vmatprep.subr.mxu0 0.0
      %3525 = vmatpush1.msra.mxu0 0.0
      %3526 = vmatprep.subr.mxu0 0.0
      %3527 = vmatpush1.msra.mxu0 0.0
      %3528 = vmatprep.subr.mxu0 0.0
      %3529 = vmatpush1.msra.mxu0 0.0
      %3530 = vmatprep.subr.mxu0 0.0
      %3531 = vmatpush1.msra.mxu0 0.0
      %3532 = vmatprep.mubr.f32.mxu0 0.0
      %3533 = vmatmul.mubr.f32.gmra.mrb[0].mxu0 %v3373
      %v3534 = vpop.f32.mrb[0].mxu0
      %v3535 = vadd.f32 0.0, %v3534
      %v3536 = vpop.f32.mrb[0].mxu0
      %v3537 = vadd.f32 0.0, %v3536
      %3538 = vmatprep.mubr.f32.mxu0 0.0
      %3539 = vmatmul.mubr.f32.gmra.mrb[0].mxu0 %v3376
      %v3540 = vpop.f32.mrb[0].mxu0
      %v3541 = vadd.f32 0.0, %v3540
      %v3542 = vpop.f32.mrb[0].mxu0
      %v3543 = vadd.f32 0.0, %v3542
      %3544 = vmatprep.mubr.f32.mxu0 0.0
      %3545 = vmatmul.mubr.f32.gmra.mrb[0].mxu0 %v3379
      %v3546 = vpop.f32.mrb[0].mxu0
      %v3547 = vadd.f32 0.0, %v3546
      %v3548 = vpop.f32.mrb[0].mxu0
      %v3549 = vadd.f32 0.0, %v3548
      %3550 = vmatprep.mubr.f32.mxu0 0.0
      %3551 = vmatmul.mubr.f32.gmra.mrb[0].mxu0 %v3382
      %v3552 = vpop.f32.mrb[0].mxu0
      %v3553 = vadd.f32 0.0, %v3552
      %v3554 = vpop.f32.mrb[0].mxu0
      %v3555 = vadd.f32 0.0, %v3554
      %3556 = vmatprep.mubr.f32.mxu0 0.0
      %3557 = vmatmul.mubr.f32.gmra.mrb[0].mxu0 %v3385
      %v3558 = vpop.f32.mrb[0].mxu0
      %v3559 = vadd.f32 0.0, %v3558
      %v3560 = vpop.f32.mrb[0].mxu0
      %v3561 = vadd.f32 0.0, %v3560
      %3562 = vmatprep.mubr.f32.mxu0 0.0
      %3563 = vmatmul.mubr.f32.gmra.mrb[0].mxu0 %v3388
      %v3564 = vpop.f32.mrb[0].mxu0
      %v3565 = vadd.f32 0.0, %v3564
      %v3566 = vpop.f32.mrb[0].mxu0
      %v3567 = vadd.f32 0.0, %v3566
      %3568 = vmatprep.mubr.f32.mxu0 0.0
      %3569 = vmatmul.mubr.f32.gmra.mrb[0].mxu0 %v3391
      %v3570 = vpop.f32.mrb[0].mxu0
      %v3571 = vadd.f32 0.0, %v3570
      %v3572 = vpop.f32.mrb[0].mxu0
      %v3573 = vadd.f32 0.0, %v3572
      %3574 = vmatprep.mubr.f32.mxu0 0.0
      %3575 = vmatmul.mubr.f32.gmra.mrb[0].mxu0 %v3394
      %v3576 = vpop.f32.mrb[0].mxu0
      %v3577 = vadd.f32 0.0, %v3576
      %v3578 = vpop.f32.mrb[0].mxu0
      %v3579 = vadd.f32 0.0, %v3578
      %3580 = vmatprep.mubr.f32.mxu0 0.0
      %3581 = vmatmul.mubr.f32.gmra.mrb[0].mxu0 %v3397
      %v3582 = vpop.f32.mrb[0].mxu0
      %v3583 = vadd.f32 0.0, %v3582
      %v3584 = vpop.f32.mrb[0].mxu0
      %v3585 = vadd.f32 0.0, %v3584
      %3586 = vmatprep.mubr.f32.mxu0 0.0
      %3587 = vmatmul.mubr.f32.gmra.mrb[0].mxu0 %v3400
      %v3588 = vpop.f32.mrb[0].mxu0
      %v3589 = vadd.f32 0.0, %v3588
      %v3590 = vpop.f32.mrb[0].mxu0
      %v3591 = vadd.f32 0.0, %v3590
      %3592 = vmatprep.mubr.f32.mxu0 0.0
      %3593 = vmatmul.mubr.f32.gmra.mrb[0].mxu0 %v3403
      %v3594 = vpop.f32.mrb[0].mxu0
      %v3595 = vadd.f32 0.0, %v3594
      %v3596 = vpop.f32.mrb[0].mxu0
      %v3597 = vadd.f32 0.0, %v3596
      %3598 = vmatprep.mubr.f32.mxu0 0.0
      %3599 = vmatmul.mubr.f32.gmra.mrb[0].mxu0 %v3406
      %v3600 = vpop.f32.mrb[0].mxu0
      %v3601 = vadd.f32 0.0, %v3600
      %v3602 = vpop.f32.mrb[0].mxu0
      %v3603 = vadd.f32 0.0, %v3602
      %3604 = vmatprep.mubr.f32.mxu0 0.0
      %3605 = vmatmul.mubr.f32.gmra.mrb[0].mxu0 %v3409
      %v3606 = vpop.f32.mrb[0].mxu0
      %v3607 = vadd.f32 0.0, %v3606
      %v3608 = vpop.f32.mrb[0].mxu0
      %v3609 = vadd.f32 0.0, %v3608
      %3610 = vmatprep.mubr.f32.mxu0 0.0
      %3611 = vmatmul.mubr.f32.gmra.mrb[0].mxu0 %v3412
      %v3612 = vpop.f32.mrb[0].mxu0
      %v3613 = vadd.f32 0.0, %v3612
      %v3614 = vpop.f32.mrb[0].mxu0
      %v3615 = vadd.f32 0.0, %v3614
      %3616 = vmatprep.mubr.f32.mxu0 0.0
      %3617 = vmatmul.mubr.f32.gmra.mrb[0].mxu0 %v3415
      %v3618 = vpop.f32.mrb[0].mxu0
      %v3619 = vadd.f32 0.0, %v3618
      %v3620 = vpop.f32.mrb[0].mxu0
      %v3621 = vadd.f32 0.0, %v3620
      %3622 = vmatprep.mubr.f32.mxu0 0.0
      %3623 = vmatmul.mubr.f32.gmra.mrb[0].mxu0 %v3418
      %v3624 = vpop.f32.mrb[0].mxu0
      %v3625 = vadd.f32 0.0, %v3624
      %v3626 = vpop.f32.mrb[0].mxu0
      %v3627 = vadd.f32 0.0, %v3626
      %3628 = vmatprep.mubr.f32.mxu0 0.0
      %3629 = vmatmul.mubr.f32.gmra.mrb[0].mxu0 %v3421
      %v3630 = vpop.f32.mrb[0].mxu0
      %v3631 = vadd.f32 0.0, %v3630
      %v3632 = vpop.f32.mrb[0].mxu0
      %v3633 = vadd.f32 0.0, %v3632
      %3634 = vmatprep.mubr.f32.mxu0 0.0
      %3635 = vmatmul.mubr.f32.gmra.mrb[0].mxu0 %v3424
      %v3636 = vpop.f32.mrb[0].mxu0
      %v3637 = vadd.f32 0.0, %v3636
      %v3638 = vpop.f32.mrb[0].mxu0
      %v3639 = vadd.f32 0.0, %v3638
      %3640 = vmatprep.mubr.f32.mxu0 0.0
      %3641 = vmatmul.mubr.f32.gmra.mrb[0].mxu0 %v3427
      %v3642 = vpop.f32.mrb[0].mxu0
      %v3643 = vadd.f32 0.0, %v3642
      %v3644 = vpop.f32.mrb[0].mxu0
      %v3645 = vadd.f32 0.0, %v3644
      %3646 = vmatprep.mubr.f32.mxu0 0.0
      %3647 = vmatmul.mubr.f32.gmra.mrb[0].mxu0 %v3430
      %v3648 = vpop.f32.mrb[0].mxu0
      %v3649 = vadd.f32 0.0, %v3648
      %v3650 = vpop.f32.mrb[0].mxu0
      %v3651 = vadd.f32 0.0, %v3650
      %3652 = vmatprep.mubr.f32.mxu0 0.0
      %3653 = vmatmul.mubr.f32.gmra.mrb[0].mxu0 %v3433
      %v3654 = vpop.f32.mrb[0].mxu0
      %v3655 = vadd.f32 0.0, %v3654
      %v3656 = vpop.f32.mrb[0].mxu0
      %v3657 = vadd.f32 0.0, %v3656
      %3658 = vmatprep.mubr.f32.mxu0 0.0
      %3659 = vmatmul.mubr.f32.gmra.mrb[0].mxu0 %v3436
      %v3660 = vpop.f32.mrb[0].mxu0
      %v3661 = vadd.f32 0.0, %v3660
      %v3662 = vpop.f32.mrb[0].mxu0
      %v3663 = vadd.f32 0.0, %v3662
      %3664 = vmatprep.mubr.f32.mxu0 0.0
      %3665 = vmatmul.mubr.f32.gmra.mrb[0].mxu0 %v3439
      %v3666 = vpop.f32.mrb[0].mxu0
      %v3667 = vadd.f32 0.0, %v3666
      %v3668 = vpop.f32.mrb[0].mxu0
      %v3669 = vadd.f32 0.0, %v3668
      %3670 = vmatprep.mubr.f32.mxu0 0.0
      %3671 = vmatmul.mubr.f32.gmra.mrb[0].mxu0 %v3442
      %v3672 = vpop.f32.mrb[0].mxu0
      %v3673 = vadd.f32 0.0, %v3672
      %v3674 = vpop.f32.mrb[0].mxu0
      %v3675 = vadd.f32 0.0, %v3674
      %3676 = vmatprep.mubr.f32.mxu0 0.0
      %3677 = vmatmul.mubr.f32.gmra.mrb[0].mxu0 %v3445
      %v3678 = vpop.f32.mrb[0].mxu0
      %v3679 = vadd.f32 0.0, %v3678
      %v3680 = vpop.f32.mrb[0].mxu0
      %v3681 = vadd.f32 0.0, %v3680
      %3682 = vmatprep.mubr.f32.mxu0 0.0
      %3683 = vmatmul.mubr.f32.gmra.mrb[0].mxu0 %v3448
      %v3684 = vpop.f32.mrb[0].mxu0
      %v3685 = vadd.f32 0.0, %v3684
      %v3686 = vpop.f32.mrb[0].mxu0
      %v3687 = vadd.f32 0.0, %v3686
      %3688 = vmatprep.mubr.f32.mxu0 0.0
      %3689 = vmatmul.mubr.f32.gmra.mrb[0].mxu0 %v3451
      %v3690 = vpop.f32.mrb[0].mxu0
      %v3691 = vadd.f32 0.0, %v3690
      %v3692 = vpop.f32.mrb[0].mxu0
      %v3693 = vadd.f32 0.0, %v3692
      %3694 = vmatprep.mubr.f32.mxu0 0.0
      %3695 = vmatmul.mubr.f32.gmra.mrb[0].mxu0 %v3454
      %v3696 = vpop.f32.mrb[0].mxu0
      %v3697 = vadd.f32 0.0, %v3696
      %v3698 = vpop.f32.mrb[0].mxu0
      %v3699 = vadd.f32 0.0, %v3698
      %3700 = vmatprep.mubr.f32.mxu0 0.0
      %3701 = vmatmul.mubr.f32.gmra.mrb[0].mxu0 %v3457
      %v3702 = vpop.f32.mrb[0].mxu0
      %v3703 = vadd.f32 0.0, %v3702
      %v3704 = vpop.f32.mrb[0].mxu0
      %v3705 = vadd.f32 0.0, %v3704
      %3706 = vmatprep.mubr.f32.mxu0 0.0
      %3707 = vmatmul.mubr.f32.gmra.mrb[0].mxu0 %v3460
      %v3708 = vpop.f32.mrb[0].mxu0
      %v3709 = vadd.f32 0.0, %v3708
      %v3710 = vpop.f32.mrb[0].mxu0
      %v3711 = vadd.f32 0.0, %v3710
      %3712 = vmatprep.mubr.f32.mxu0 0.0
      %3713 = vmatmul.mubr.f32.gmra.mrb[0].mxu0 %v3463
      %v3714 = vpop.f32.mrb[0].mxu0
      %v3715 = vadd.f32 0.0, %v3714
      %v3716 = vpop.f32.mrb[0].mxu0
      %v3717 = vadd.f32 0.0, %v3716
      %3718 = vmatprep.mubr.f32.mxu0 0.0
      %3719 = vmatmul.mubr.f32.gmra.mrb[0].mxu0 %v3466
      %v3720 = vpop.f32.mrb[0].mxu0
      %v3721 = vadd.f32 0.0, %v3720
      %v3722 = vpop.f32.mrb[0].mxu0
      %v3723 = vadd.f32 0.0, %v3722
      %3724 = vdwg.mxu0
      %v3725 = vmax.f32 %v3535, %v3547
      %v3726 = vmax.f32 %v3541, %v3553
      %v3727 = vmax.f32 %v3725, %v3559
      %v3728 = vmax.f32 %v3726, %v3565
      %v3729 = vmax.f32 %v3727, %v3571
      %v3730 = vmax.f32 %v3728, %v3577
      %v3731 = vmax.f32 %v3729, %v3583
      %v3732 = vmax.f32 %v3730, %v3589
      %v3733 = vmax.f32 %v3731, %v3595
      %v3734 = vmax.f32 %v3732, %v3601
      %v3735 = vmax.f32 %v3733, %v3607
      %v3736 = vmax.f32 %v3734, %v3613
      %v3737 = vmax.f32 %v3735, %v3619
      %v3738 = vmax.f32 %v3736, %v3625
      %v3739 = vmax.f32 %v3737, %v3631
      %v3740 = vmax.f32 %v3738, %v3637
      %v3741 = vmax.f32 %v3739, %v3643
      %v3742 = vmax.f32 %v3740, %v3649
      %v3743 = vmax.f32 %v3741, %v3655
      %v3744 = vmax.f32 %v3742, %v3661
      %v3745 = vmax.f32 %v3743, %v3667
      %v3746 = vmax.f32 %v3744, %v3673
      %v3747 = vmax.f32 %v3745, %v3679
      %v3748 = vmax.f32 %v3746, %v3685
      %v3749 = vmax.f32 %v3747, %v3691
      %v3750 = vmax.f32 %v3748, %v3697
      %v3751 = vmax.f32 %v3749, %v3703
      %v3752 = vmax.f32 %v3750, %v3709
      %v3753 = vmax.f32 %v3751, %v3715
      %v3754 = vmax.f32 %v3752, %v3721
      %v3755 = vmax.f32 %v3753, %v3754
      %v3756 = vrot.slane %v3755, 4
      %v3757 = vmax.f32 %v3755, %v3756
      %v3758 = vrot.slane %v3757, 2
      %v3759 = vmax.f32 %v3757, %v3758
      %v3760 = vrot.slane %v3759, 1
      %v3761 = vmax.f32 %v3759, %v3760
      %v3762 = vmax.f32 %v3537, %v3549
      %v3763 = vmax.f32 %v3543, %v3555
      %v3764 = vmax.f32 %v3762, %v3561
      %v3765 = vmax.f32 %v3763, %v3567
      %v3766 = vmax.f32 %v3764, %v3573
      %v3767 = vmax.f32 %v3765, %v3579
      %v3768 = vmax.f32 %v3766, %v3585
      %v3769 = vmax.f32 %v3767, %v3591
      %v3770 = vmax.f32 %v3768, %v3597
      %v3771 = vmax.f32 %v3769, %v3603
      %v3772 = vmax.f32 %v3770, %v3609
      %v3773 = vmax.f32 %v3771, %v3615
      %v3774 = vmax.f32 %v3772, %v3621
      %v3775 = vmax.f32 %v3773, %v3627
      %v3776 = vmax.f32 %v3774, %v3633
      %v3777 = vmax.f32 %v3775, %v3639
      %v3778 = vmax.f32 %v3776, %v3645
      %v3779 = vmax.f32 %v3777, %v3651
      %v3780 = vmax.f32 %v3778, %v3657
      %v3781 = vmax.f32 %v3779, %v3663
      %v3782 = vmax.f32 %v3780, %v3669
      %v3783 = vmax.f32 %v3781, %v3675
      %v3784 = vmax.f32 %v3782, %v3681
      %v3785 = vmax.f32 %v3783, %v3687
      %v3786 = vmax.f32 %v3784, %v3693
      %v3787 = vmax.f32 %v3785, %v3699
      %v3788 = vmax.f32 %v3786, %v3705
      %v3789 = vmax.f32 %v3787, %v3711
      %v3790 = vmax.f32 %v3788, %v3717
      %v3791 = vmax.f32 %v3789, %v3723
      %v3792 = vmax.f32 %v3790, %v3791
      %v3793 = vrot.slane %v3792, 4
      %v3794 = vmax.f32 %v3792, %v3793
      %v3795 = vrot.slane %v3794, 2
      %v3796 = vmax.f32 %v3794, %v3795
      %v3797 = vrot.slane %v3796, 1
      %v3798 = vmax.f32 %v3796, %v3797
      %v3799 = vsub.f32 %v3535, %v3761
      %v3800 = vsub.f32 %v3537, %v3798
      %v3801 = vsub.f32 %v3541, %v3761
      %v3802 = vsub.f32 %v3543, %v3798
      %v3803 = vsub.f32 %v3547, %v3761
      %v3804 = vsub.f32 %v3549, %v3798
      %v3805 = vsub.f32 %v3553, %v3761
      %v3806 = vsub.f32 %v3555, %v3798
      %v3807 = vsub.f32 %v3559, %v3761
      %v3808 = vsub.f32 %v3561, %v3798
      %v3809 = vsub.f32 %v3565, %v3761
      %v3810 = vsub.f32 %v3567, %v3798
      %v3811 = vsub.f32 %v3571, %v3761
      %v3812 = vsub.f32 %v3573, %v3798
      %v3813 = vsub.f32 %v3577, %v3761
      %v3814 = vsub.f32 %v3579, %v3798
      %v3815 = vsub.f32 %v3583, %v3761
      %v3816 = vsub.f32 %v3585, %v3798
      %v3817 = vsub.f32 %v3589, %v3761
      %v3818 = vsub.f32 %v3591, %v3798
      %v3819 = vsub.f32 %v3595, %v3761
      %v3820 = vsub.f32 %v3597, %v3798
      %v3821 = vsub.f32 %v3601, %v3761
      %v3822 = vsub.f32 %v3603, %v3798
      %v3823 = vsub.f32 %v3607, %v3761
      %v3824 = vsub.f32 %v3609, %v3798
      %v3825 = vsub.f32 %v3613, %v3761
      %v3826 = vsub.f32 %v3615, %v3798
      %v3827 = vsub.f32 %v3619, %v3761
      %v3828 = vsub.f32 %v3621, %v3798
      %v3829 = vsub.f32 %v3625, %v3761
      %v3830 = vsub.f32 %v3627, %v3798
      %v3831 = vsub.f32 %v3631, %v3761
      %v3832 = vsub.f32 %v3633, %v3798
      %v3833 = vsub.f32 %v3637, %v3761
      %v3834 = vsub.f32 %v3639, %v3798
      %v3835 = vsub.f32 %v3643, %v3761
      %v3836 = vsub.f32 %v3645, %v3798
      %v3837 = vsub.f32 %v3649, %v3761
      %v3838 = vsub.f32 %v3651, %v3798
      %v3839 = vsub.f32 %v3655, %v3761
      %v3840 = vsub.f32 %v3657, %v3798
      %v3841 = vsub.f32 %v3661, %v3761
      %v3842 = vsub.f32 %v3663, %v3798
      %v3843 = vsub.f32 %v3667, %v3761
      %v3844 = vsub.f32 %v3669, %v3798
      %v3845 = vsub.f32 %v3673, %v3761
      %v3846 = vsub.f32 %v3675, %v3798
      %v3847 = vsub.f32 %v3679, %v3761
      %v3848 = vsub.f32 %v3681, %v3798
      %v3849 = vsub.f32 %v3685, %v3761
      %v3850 = vsub.f32 %v3687, %v3798
      %v3851 = vsub.f32 %v3691, %v3761
      %v3852 = vsub.f32 %v3693, %v3798
      %v3853 = vsub.f32 %v3697, %v3761
      %v3854 = vsub.f32 %v3699, %v3798
      %v3855 = vsub.f32 %v3703, %v3761
      %v3856 = vsub.f32 %v3705, %v3798
      %v3857 = vsub.f32 %v3709, %v3761
      %v3858 = vsub.f32 %v3711, %v3798
      %v3859 = vsub.f32 %v3715, %v3761
      %v3860 = vsub.f32 %v3717, %v3798
      %v3861 = vsub.f32 %v3721, %v3761
      %v3862 = vsub.f32 %v3723, %v3798
      %v3863 = vmul.f32 %v3799, 1.442695
      %v3864 = vpow.pop %v3863
      %v3865 = vmul.f32 %v3800, 1.442695
      %v3866 = vpow.pop %v3865
      %v3867 = vmul.f32 %v3801, 1.442695
      %v3868 = vpow.pop %v3867
      %v3869 = vmul.f32 %v3802, 1.442695
      %v3870 = vpow.pop %v3869
      %v3871 = vmul.f32 %v3803, 1.442695
      %v3872 = vpow.pop %v3871
      %v3873 = vmul.f32 %v3804, 1.442695
      %v3874 = vpow.pop %v3873
      %v3875 = vmul.f32 %v3805, 1.442695
      %v3876 = vpow.pop %v3875
      %v3877 = vmul.f32 %v3806, 1.442695
      %v3878 = vpow.pop %v3877
      %v3879 = vmul.f32 %v3807, 1.442695
      %v3880 = vpow.pop %v3879
      %v3881 = vmul.f32 %v3808, 1.442695
      %v3882 = vpow.pop %v3881
      %v3883 = vmul.f32 %v3809, 1.442695
      %v3884 = vpow.pop %v3883
      %v3885 = vmul.f32 %v3810, 1.442695
      %v3886 = vpow.pop %v3885
      %v3887 = vmul.f32 %v3811, 1.442695
      %v3888 = vpow.pop %v3887
      %v3889 = vmul.f32 %v3812, 1.442695
      %v3890 = vpow.pop %v3889
      %v3891 = vmul.f32 %v3813, 1.442695
      %v3892 = vpow.pop %v3891
      %v3893 = vmul.f32 %v3814, 1.442695
      %v3894 = vpow.pop %v3893
      %v3895 = vmul.f32 %v3815, 1.442695
      %v3896 = vpow.pop %v3895
      %v3897 = vmul.f32 %v3816, 1.442695
      %v3898 = vpow.pop %v3897
      %v3899 = vmul.f32 %v3817, 1.442695
      %v3900 = vpow.pop %v3899
      %v3901 = vmul.f32 %v3818, 1.442695
      %v3902 = vpow.pop %v3901
      %v3903 = vmul.f32 %v3819, 1.442695
      %v3904 = vpow.pop %v3903
      %v3905 = vmul.f32 %v3820, 1.442695
      %v3906 = vpow.pop %v3905
      %v3907 = vmul.f32 %v3821, 1.442695
      %v3908 = vpow.pop %v3907
      %v3909 = vmul.f32 %v3822, 1.442695
      %v3910 = vpow.pop %v3909
      %v3911 = vmul.f32 %v3823, 1.442695
      %v3912 = vpow.pop %v3911
      %v3913 = vmul.f32 %v3824, 1.442695
      %v3914 = vpow.pop %v3913
      %v3915 = vmul.f32 %v3825, 1.442695
      %v3916 = vpow.pop %v3915
      %v3917 = vmul.f32 %v3826, 1.442695
      %v3918 = vpow.pop %v3917
      %v3919 = vmul.f32 %v3827, 1.442695
      %v3920 = vpow.pop %v3919
      %v3921 = vmul.f32 %v3828, 1.442695
      %v3922 = vpow.pop %v3921
      %v3923 = vmul.f32 %v3829, 1.442695
      %v3924 = vpow.pop %v3923
      %v3925 = vmul.f32 %v3830, 1.442695
      %v3926 = vpow.pop %v3925
      %v3927 = vmul.f32 %v3831, 1.442695
      %v3928 = vpow.pop %v3927
      %v3929 = vmul.f32 %v3832, 1.442695
      %v3930 = vpow.pop %v3929
      %v3931 = vmul.f32 %v3833, 1.442695
      %v3932 = vpow.pop %v3931
      %v3933 = vmul.f32 %v3834, 1.442695
      %v3934 = vpow.pop %v3933
      %v3935 = vmul.f32 %v3835, 1.442695
      %v3936 = vpow.pop %v3935
      %v3937 = vmul.f32 %v3836, 1.442695
      %v3938 = vpow.pop %v3937
      %v3939 = vmul.f32 %v3837, 1.442695
      %v3940 = vpow.pop %v3939
      %v3941 = vmul.f32 %v3838, 1.442695
      %v3942 = vpow.pop %v3941
      %v3943 = vmul.f32 %v3839, 1.442695
      %v3944 = vpow.pop %v3943
      %v3945 = vmul.f32 %v3840, 1.442695
      %v3946 = vpow.pop %v3945
      %v3947 = vmul.f32 %v3841, 1.442695
      %v3948 = vpow.pop %v3947
      %v3949 = vmul.f32 %v3842, 1.442695
      %v3950 = vpow.pop %v3949
      %v3951 = vmul.f32 %v3843, 1.442695
      %v3952 = vpow.pop %v3951
      %v3953 = vmul.f32 %v3844, 1.442695
      %v3954 = vpow.pop %v3953
      %v3955 = vmul.f32 %v3845, 1.442695
      %v3956 = vpow.pop %v3955
      %v3957 = vmul.f32 %v3846, 1.442695
      %v3958 = vpow.pop %v3957
      %v3959 = vmul.f32 %v3847, 1.442695
      %v3960 = vpow.pop %v3959
      %v3961 = vmul.f32 %v3848, 1.442695
      %v3962 = vpow.pop %v3961
      %v3963 = vmul.f32 %v3849, 1.442695
      %v3964 = vpow.pop %v3963
      %v3965 = vmul.f32 %v3850, 1.442695
      %v3966 = vpow.pop %v3965
      %v3967 = vmul.f32 %v3851, 1.442695
      %v3968 = vpow.pop %v3967
      %v3969 = vmul.f32 %v3852, 1.442695
      %v3970 = vpow.pop %v3969
      %v3971 = vmul.f32 %v3853, 1.442695
      %v3972 = vpow.pop %v3971
      %v3973 = vmul.f32 %v3854, 1.442695
      %v3974 = vpow.pop %v3973
      %v3975 = vmul.f32 %v3855, 1.442695
      %v3976 = vpow.pop %v3975
      %v3977 = vmul.f32 %v3856, 1.442695
      %v3978 = vpow.pop %v3977
      %v3979 = vmul.f32 %v3857, 1.442695
      %v3980 = vpow.pop %v3979
      %v3981 = vmul.f32 %v3858, 1.442695
      %v3982 = vpow.pop %v3981
      %v3983 = vmul.f32 %v3859, 1.442695
      %v3984 = vpow.pop %v3983
      %v3985 = vmul.f32 %v3860, 1.442695
      %v3986 = vpow.pop %v3985
      %v3987 = vmul.f32 %v3861, 1.442695
      %v3988 = vpow.pop %v3987
      %v3989 = vmul.f32 %v3862, 1.442695
      %v3990 = vpow.pop %v3989
      %v3991 = vadd.f32 %v3864, %v3868
      %v3992 = vadd.f32 %v3991, %v3872
      %v3993 = vadd.f32 %v3992, %v3876
      %v3994 = vadd.f32 %v3993, %v3880
      %v3995 = vadd.f32 %v3994, %v3884
      %v3996 = vadd.f32 %v3995, %v3888
      %v3997 = vadd.f32 %v3996, %v3892
      %v3998 = vadd.f32 %v3997, %v3896
      %v3999 = vadd.f32 %v3998, %v3900
      %v4000 = vadd.f32 %v3999, %v3904
      %v4001 = vadd.f32 %v4000, %v3908
      %v4002 = vadd.f32 %v4001, %v3912
      %v4003 = vadd.f32 %v4002, %v3916
      %v4004 = vadd.f32 %v4003, %v3920
      %v4005 = vadd.f32 %v4004, %v3924
      %v4006 = vadd.f32 %v4005, %v3928
      %v4007 = vadd.f32 %v4006, %v3932
      %v4008 = vadd.f32 %v4007, %v3936
      %v4009 = vadd.f32 %v4008, %v3940
      %v4010 = vadd.f32 %v4009, %v3944
      %v4011 = vadd.f32 %v4010, %v3948
      %v4012 = vadd.f32 %v4011, %v3952
      %v4013 = vadd.f32 %v4012, %v3956
      %v4014 = vadd.f32 %v4013, %v3960
      %v4015 = vadd.f32 %v4014, %v3964
      %v4016 = vadd.f32 %v4015, %v3968
      %v4017 = vadd.f32 %v4016, %v3972
      %v4018 = vadd.f32 %v4017, %v3976
      %v4019 = vadd.f32 %v4018, %v3980
      %v4020 = vadd.f32 %v4019, %v3984
      %v4021 = vadd.f32 %v4020, %v3988
      %v4022 = vrot.slane %v4021, 4
      %v4023 = vadd.f32 %v4021, %v4022
      %v4024 = vrot.slane %v4023, 2
      %v4025 = vadd.f32 %v4023, %v4024
      %v4026 = vrot.slane %v4025, 1
      %v4027 = vadd.f32 %v4025, %v4026
      %v4028 = vadd.f32 %v3866, %v3870
      %v4029 = vadd.f32 %v4028, %v3874
      %v4030 = vadd.f32 %v4029, %v3878
      %v4031 = vadd.f32 %v4030, %v3882
      %v4032 = vadd.f32 %v4031, %v3886
      %v4033 = vadd.f32 %v4032, %v3890
      %v4034 = vadd.f32 %v4033, %v3894
      %v4035 = vadd.f32 %v4034, %v3898
      %v4036 = vadd.f32 %v4035, %v3902
      %v4037 = vadd.f32 %v4036, %v3906
      %v4038 = vadd.f32 %v4037, %v3910
      %v4039 = vadd.f32 %v4038, %v3914
      %v4040 = vadd.f32 %v4039, %v3918
      %v4041 = vadd.f32 %v4040, %v3922
      %v4042 = vadd.f32 %v4041, %v3926
      %v4043 = vadd.f32 %v4042, %v3930
      %v4044 = vadd.f32 %v4043, %v3934
      %v4045 = vadd.f32 %v4044, %v3938
      %v4046 = vadd.f32 %v4045, %v3942
      %v4047 = vadd.f32 %v4046, %v3946
      %v4048 = vadd.f32 %v4047, %v3950
      %v4049 = vadd.f32 %v4048, %v3954
      %v4050 = vadd.f32 %v4049, %v3958
      %v4051 = vadd.f32 %v4050, %v3962
      %v4052 = vadd.f32 %v4051, %v3966
      %v4053 = vadd.f32 %v4052, %v3970
      %v4054 = vadd.f32 %v4053, %v3974
      %v4055 = vadd.f32 %v4054, %v3978
      %v4056 = vadd.f32 %v4055, %v3982
      %v4057 = vadd.f32 %v4056, %v3986
      %v4058 = vadd.f32 %v4057, %v3990
      %v4059 = vrot.slane %v4058, 4
      %v4060 = vadd.f32 %v4058, %v4059
      %v4061 = vrot.slane %v4060, 2
      %v4062 = vadd.f32 %v4060, %v4061
      %v4063 = vrot.slane %v4062, 1
      %v4064 = vadd.f32 %v4062, %v4063
      %v4065 = vrcp.pop %v4027
      %v4066 = vmul.f32 1.0, %v4065
      %v4067 = vrcp.pop %v4064
      %v4068 = vmul.f32 1.0, %v4067
      %4069 = vmatprep.subr.mxu0 %v3866
      %4070 = vmatpush1.msra.mxu0 %v3864
      %4071 = vmatprep.subr.mxu0 %v3870
      %4072 = vmatpush1.msra.mxu0 %v3868
      %4073 = vmatprep.subr.mxu0 %v3874
      %4074 = vmatpush1.msra.mxu0 %v3872
      %4075 = vmatprep.subr.mxu0 %v3878
      %4076 = vmatpush1.msra.mxu0 %v3876
      %4077 = vmatprep.subr.mxu0 %v3882
      %4078 = vmatpush1.msra.mxu0 %v3880
      %4079 = vmatprep.subr.mxu0 %v3886
      %4080 = vmatpush1.msra.mxu0 %v3884
      %4081 = vmatprep.subr.mxu0 %v3890
      %4082 = vmatpush1.msra.mxu0 %v3888
      %4083 = vmatprep.subr.mxu0 %v3894
      %4084 = vmatpush1.msra.mxu0 %v3892
      %4085 = vmatprep.subr.mxu0 %v3898
      %4086 = vmatpush1.msra.mxu0 %v3896
      %4087 = vmatprep.subr.mxu0 %v3902
      %4088 = vmatpush1.msra.mxu0 %v3900
      %4089 = vmatprep.subr.mxu0 %v3906
      %4090 = vmatpush1.msra.mxu0 %v3904
      %4091 = vmatprep.subr.mxu0 %v3910
      %4092 = vmatpush1.msra.mxu0 %v3908
      %4093 = vmatprep.subr.mxu0 %v3914
      %4094 = vmatpush1.msra.mxu0 %v3912
      %4095 = vmatprep.subr.mxu0 %v3918
      %4096 = vmatpush1.msra.mxu0 %v3916
      %4097 = vmatprep.subr.mxu0 %v3922
      %4098 = vmatpush1.msra.mxu0 %v3920
      %4099 = vmatprep.subr.mxu0 %v3926
      %4100 = vmatpush1.msra.mxu0 %v3924
      %4101 = vmatprep.subr.mxu0 %v3930
      %4102 = vmatpush1.msra.mxu0 %v3928
      %4103 = vmatprep.subr.mxu0 %v3934
      %4104 = vmatpush1.msra.mxu0 %v3932
      %4105 = vmatprep.subr.mxu0 %v3938
      %4106 = vmatpush1.msra.mxu0 %v3936
      %4107 = vmatprep.subr.mxu0 %v3942
      %4108 = vmatpush1.msra.mxu0 %v3940
      %4109 = vmatprep.subr.mxu0 %v3946
      %4110 = vmatpush1.msra.mxu0 %v3944
      %4111 = vmatprep.subr.mxu0 %v3950
      %4112 = vmatpush1.msra.mxu0 %v3948
      %4113 = vmatprep.subr.mxu0 %v3954
      %4114 = vmatpush1.msra.mxu0 %v3952
      %4115 = vmatprep.subr.mxu0 %v3958
      %4116 = vmatpush1.msra.mxu0 %v3956
      %4117 = vmatprep.subr.mxu0 %v3962
      %4118 = vmatpush1.msra.mxu0 %v3960
      %4119 = vmatprep.subr.mxu0 %v3966
      %4120 = vmatpush1.msra.mxu0 %v3964
      %4121 = vmatprep.subr.mxu0 %v3970
      %4122 = vmatpush1.msra.mxu0 %v3968
      %4123 = vmatprep.subr.mxu0 %v3974
      %4124 = vmatpush1.msra.mxu0 %v3972
      %4125 = vmatprep.subr.mxu0 %v3978
      %4126 = vmatpush1.msra.mxu0 %v3976
      %4127 = vmatprep.subr.mxu0 %v3982
      %4128 = vmatpush1.msra.mxu0 %v3980
      %4129 = vmatprep.subr.mxu0 %v3986
      %4130 = vmatpush1.msra.mxu0 %v3984
      %4131 = vmatprep.subr.mxu0 %v3990
      %4132 = vmatpush1.msra.mxu0 %v3988
      %4133 = vmatprep.mubr.f32.mxu0 %v634
      %4134 = vmatmul.mubr.f32.gmra.mrb[0].mxu0 %v633
      %v4135 = vpop.f32.mrb[0].mxu0
      %v4136 = vadd.f32 0.0, %v4135
      %v4137 = vpop.f32.mrb[0].mxu0
      %v4138 = vadd.f32 0.0, %v4137
      %4139 = vdwg.mxu0
      %v4140 = vmul.f32 %v4136, %v4066
      %v4141 = vmul.f32 %v4138, %v4068
      %4142 = vmatprep.subr.mxu0 %v4141
      %4143 = vmatpush1.msra.mxu0 %v4140
      %4144 = vmatprep.subr.mxu0 0.0
      %4145 = vmatpush1.msra.mxu0 0.0
      %4146 = vmatprep.subr.mxu0 0.0
      %4147 = vmatpush1.msra.mxu0 0.0
      %4148 = vmatprep.subr.mxu0 0.0
      %4149 = vmatpush1.msra.mxu0 0.0
      %4150 = vmatprep.subr.mxu0 0.0
      %4151 = vmatpush1.msra.mxu0 0.0
      %4152 = vmatprep.subr.mxu0 0.0
      %4153 = vmatpush1.msra.mxu0 0.0
      %4154 = vmatprep.subr.mxu0 0.0
      %4155 = vmatpush1.msra.mxu0 0.0
      %4156 = vmatprep.subr.mxu0 0.0
      %4157 = vmatpush1.msra.mxu0 0.0
      %4158 = vmatprep.subr.mxu0 0.0
      %4159 = vmatpush1.msra.mxu0 0.0
      %4160 = vmatprep.subr.mxu0 0.0
      %4161 = vmatpush1.msra.mxu0 0.0
      %4162 = vmatprep.subr.mxu0 0.0
      %4163 = vmatpush1.msra.mxu0 0.0
      %4164 = vmatprep.subr.mxu0 0.0
      %4165 = vmatpush1.msra.mxu0 0.0
      %4166 = vmatprep.subr.mxu0 0.0
      %4167 = vmatpush1.msra.mxu0 0.0
      %4168 = vmatprep.subr.mxu0 0.0
      %4169 = vmatpush1.msra.mxu0 0.0
      %4170 = vmatprep.subr.mxu0 0.0
      %4171 = vmatpush1.msra.mxu0 0.0
      %4172 = vmatprep.subr.mxu0 0.0
      %4173 = vmatpush1.msra.mxu0 0.0
      %4174 = vmatprep.subr.mxu0 0.0
      %4175 = vmatpush1.msra.mxu0 0.0
      %4176 = vmatprep.subr.mxu0 0.0
      %4177 = vmatpush1.msra.mxu0 0.0
      %4178 = vmatprep.subr.mxu0 0.0
      %4179 = vmatpush1.msra.mxu0 0.0
      %4180 = vmatprep.subr.mxu0 0.0
      %4181 = vmatpush1.msra.mxu0 0.0
      %4182 = vmatprep.subr.mxu0 0.0
      %4183 = vmatpush1.msra.mxu0 0.0
      %4184 = vmatprep.subr.mxu0 0.0
      %4185 = vmatpush1.msra.mxu0 0.0
      %4186 = vmatprep.subr.mxu0 0.0
      %4187 = vmatpush1.msra.mxu0 0.0
      %4188 = vmatprep.subr.mxu0 0.0
      %4189 = vmatpush1.msra.mxu0 0.0
      %4190 = vmatprep.subr.mxu0 0.0
      %4191 = vmatpush1.msra.mxu0 0.0
      %4192 = vmatprep.subr.mxu0 0.0
      %4193 = vmatpush1.msra.mxu0 0.0
      %4194 = vmatprep.subr.mxu0 0.0
      %4195 = vmatpush1.msra.mxu0 0.0
      %4196 = vmatprep.subr.mxu0 0.0
      %4197 = vmatpush1.msra.mxu0 0.0
      %4198 = vmatprep.subr.mxu0 0.0
      %4199 = vmatpush1.msra.mxu0 0.0
      %4200 = vmatprep.subr.mxu0 0.0
      %4201 = vmatpush1.msra.mxu0 0.0
      %4202 = vmatprep.subr.mxu0 0.0
      %4203 = vmatpush1.msra.mxu0 0.0
      %4204 = vmatprep.subr.mxu0 0.0
      %4205 = vmatpush1.msra.mxu0 0.0
      %4206 = vmatprep.mubr.f32.mxu0 0.0
      %4207 = vmatmul.mubr.f32.gmra.mrb[0].mxu0 %v2312
      %v4208 = vpop.f32.mrb[0].mxu0
      %v4209 = vadd.f32 0.0, %v4208
      %v4210 = vpop.f32.mrb[0].mxu0
      %v4211 = vadd.f32 0.0, %v4210
      %4212 = vmatprep.mubr.f32.mxu0 0.0
      %4213 = vmatmul.mubr.f32.gmra.mrb[0].mxu0 %v2314
      %v4214 = vpop.f32.mrb[0].mxu0
      %v4215 = vadd.f32 0.0, %v4214
      %v4216 = vpop.f32.mrb[0].mxu0
      %v4217 = vadd.f32 0.0, %v4216
      %4218 = vdwg.mxu0
      %4219 = vmatprep.subr.mxu0 %v3307
      %4220 = vmatpush1.msra.mxu0 %v3306
      %4221 = vmatprep.subr.mxu0 0.0
      %4222 = vmatpush1.msra.mxu0 0.0
      %4223 = vmatprep.subr.mxu0 0.0
      %4224 = vmatpush1.msra.mxu0 0.0
      %4225 = vmatprep.subr.mxu0 0.0
      %4226 = vmatpush1.msra.mxu0 0.0
      %4227 = vmatprep.subr.mxu0 0.0
      %4228 = vmatpush1.msra.mxu0 0.0
      %4229 = vmatprep.subr.mxu0 0.0
      %4230 = vmatpush1.msra.mxu0 0.0
      %4231 = vmatprep.subr.mxu0 0.0
      %4232 = vmatpush1.msra.mxu0 0.0
      %4233 = vmatprep.subr.mxu0 0.0
      %4234 = vmatpush1.msra.mxu0 0.0
      %4235 = vmatprep.subr.mxu0 0.0
      %4236 = vmatpush1.msra.mxu0 0.0
      %4237 = vmatprep.subr.mxu0 0.0
      %4238 = vmatpush1.msra.mxu0 0.0
      %4239 = vmatprep.subr.mxu0 0.0
      %4240 = vmatpush1.msra.mxu0 0.0
      %4241 = vmatprep.subr.mxu0 0.0
      %4242 = vmatpush1.msra.mxu0 0.0
      %4243 = vmatprep.subr.mxu0 0.0
      %4244 = vmatpush1.msra.mxu0 0.0
      %4245 = vmatprep.subr.mxu0 0.0
      %4246 = vmatpush1.msra.mxu0 0.0
      %4247 = vmatprep.subr.mxu0 0.0
      %4248 = vmatpush1.msra.mxu0 0.0
      %4249 = vmatprep.subr.mxu0 0.0
      %4250 = vmatpush1.msra.mxu0 0.0
      %4251 = vmatprep.subr.mxu0 0.0
      %4252 = vmatpush1.msra.mxu0 0.0
      %4253 = vmatprep.subr.mxu0 0.0
      %4254 = vmatpush1.msra.mxu0 0.0
      %4255 = vmatprep.subr.mxu0 0.0
      %4256 = vmatpush1.msra.mxu0 0.0
      %4257 = vmatprep.subr.mxu0 0.0
      %4258 = vmatpush1.msra.mxu0 0.0
      %4259 = vmatprep.subr.mxu0 0.0
      %4260 = vmatpush1.msra.mxu0 0.0
      %4261 = vmatprep.subr.mxu0 0.0
      %4262 = vmatpush1.msra.mxu0 0.0
      %4263 = vmatprep.subr.mxu0 0.0
      %4264 = vmatpush1.msra.mxu0 0.0
      %4265 = vmatprep.subr.mxu0 0.0
      %4266 = vmatpush1.msra.mxu0 0.0
      %4267 = vmatprep.subr.mxu0 0.0
      %4268 = vmatpush1.msra.mxu0 0.0
      %4269 = vmatprep.subr.mxu0 0.0
      %4270 = vmatpush1.msra.mxu0 0.0
      %4271 = vmatprep.subr.mxu0 0.0
      %4272 = vmatpush1.msra.mxu0 0.0
      %4273 = vmatprep.subr.mxu0 0.0
      %4274 = vmatpush1.msra.mxu0 0.0
      %4275 = vmatprep.subr.mxu0 0.0
      %4276 = vmatpush1.msra.mxu0 0.0
      %4277 = vmatprep.subr.mxu0 0.0
      %4278 = vmatpush1.msra.mxu0 0.0
      %4279 = vmatprep.subr.mxu0 0.0
      %4280 = vmatpush1.msra.mxu0 0.0
      %4281 = vmatprep.subr.mxu0 0.0
      %4282 = vmatpush1.msra.mxu0 0.0
      %4283 = vmatprep.mubr.f32.mxu0 0.0
      %4284 = vmatmul.mubr.f32.gmra.mrb[0].mxu0 %v2393
      %v4285 = vpop.f32.mrb[0].mxu0
      %v4286 = vadd.f32 %v4209, %v4285
      %v4287 = vpop.f32.mrb[0].mxu0
      %v4288 = vadd.f32 %v4211, %v4287
      %4289 = vmatprep.mubr.f32.mxu0 0.0
      %4290 = vmatmul.mubr.f32.gmra.mrb[0].mxu0 %v2395
      %v4291 = vpop.f32.mrb[0].mxu0
      %v4292 = vadd.f32 %v4215, %v4291
      %v4293 = vpop.f32.mrb[0].mxu0
      %v4294 = vadd.f32 %v4217, %v4293
      %4295 = vdwg.mxu0
      %4296 = vset.pattern.permute.xlu0 5
      %4297 = vperm.xlu0 %4296, %v215
      %v4298 = vpop.permute.xlu0 %4297
      %4300 = vset.pattern.permute.xlu0 5
      %4301 = vperm.xlu0 %4300, %v216
      %v4302 = vpop.permute.xlu0 %4301
      %v4304 = vadd.f32 %v2464, %v4298
      %v4305 = vadd.f32 %v2466, %v4298
      %v4306 = vadd.f32 %v4286, %v4298
      %v4307 = vadd.f32 %v4288, %v4298
      %v4308 = vadd.f32 %v2470, %v4302
      %v4309 = vadd.f32 %v2472, %v4302
      %v4310 = vadd.f32 %v4292, %v4302
      %v4311 = vadd.f32 %v4294, %v4302
      %v4312 = vadd.f32 %v4304, %v206
      %v4313 = vadd.f32 %v4305, %v207
      %v4314 = vadd.f32 %v4306, %v211
      %v4315 = vadd.f32 %v4307, %v212
      %v4316 = vadd.f32 %v4308, %v208
      %v4317 = vadd.f32 %v4309, %v209
      %v4318 = vadd.f32 %v4310, %v213
      %v4319 = vadd.f32 %v4311, %v214
      %v4320 = vadd.f32 %v4312, %v4316
      %v4321 = vrot.slane %v4320, 4
      %v4322 = vadd.f32 %v4320, %v4321
      %v4323 = vrot.slane %v4322, 2
      %v4324 = vadd.f32 %v4322, %v4323
      %v4325 = vrot.slane %v4324, 1
      %v4326 = vadd.f32 %v4324, %v4325
      %v4327 = vadd.f32 %v4313, %v4317
      %v4328 = vrot.slane %v4327, 4
      %v4329 = vadd.f32 %v4327, %v4328
      %v4330 = vrot.slane %v4329, 2
      %v4331 = vadd.f32 %v4329, %v4330
      %v4332 = vrot.slane %v4331, 1
      %v4333 = vadd.f32 %v4331, %v4332
      %v4334 = vadd.f32 %v4314, %v4318
      %v4335 = vrot.slane %v4334, 4
      %v4336 = vadd.f32 %v4334, %v4335
      %v4337 = vrot.slane %v4336, 2
      %v4338 = vadd.f32 %v4336, %v4337
      %v4339 = vrot.slane %v4338, 1
      %v4340 = vadd.f32 %v4338, %v4339
      %v4341 = vadd.f32 %v4315, %v4319
      %v4342 = vrot.slane %v4341, 4
      %v4343 = vadd.f32 %v4341, %v4342
      %v4344 = vrot.slane %v4343, 2
      %v4345 = vadd.f32 %v4343, %v4344
      %v4346 = vrot.slane %v4345, 1
      %v4347 = vadd.f32 %v4345, %v4346
      %v4348 = vmul.f32 %v4326, %v245
      %v4349 = vmul.f32 %v4333, %v245
      %v4350 = vmul.f32 %v4340, %v245
      %v4351 = vmul.f32 %v4347, %v245
      %v4352 = vmul.f32 %v4312, %v4312
      %v4353 = vmul.f32 %v4313, %v4313
      %v4354 = vmul.f32 %v4314, %v4314
      %v4355 = vmul.f32 %v4315, %v4315
      %v4356 = vmul.f32 %v4316, %v4316
      %v4357 = vmul.f32 %v4317, %v4317
      %v4358 = vmul.f32 %v4318, %v4318
      %v4359 = vmul.f32 %v4319, %v4319
      %v4360 = vadd.f32 %v4352, %v4356
      %v4361 = vrot.slane %v4360, 4
      %v4362 = vadd.f32 %v4360, %v4361
      %v4363 = vrot.slane %v4362, 2
      %v4364 = vadd.f32 %v4362, %v4363
      %v4365 = vrot.slane %v4364, 1
      %v4366 = vadd.f32 %v4364, %v4365
      %v4367 = vadd.f32 %v4353, %v4357
      %v4368 = vrot.slane %v4367, 4
      %v4369 = vadd.f32 %v4367, %v4368
      %v4370 = vrot.slane %v4369, 2
      %v4371 = vadd.f32 %v4369, %v4370
      %v4372 = vrot.slane %v4371, 1
      %v4373 = vadd.f32 %v4371, %v4372
      %v4374 = vadd.f32 %v4354, %v4358
      %v4375 = vrot.slane %v4374, 4
      %v4376 = vadd.f32 %v4374, %v4375
      %v4377 = vrot.slane %v4376, 2
      %v4378 = vadd.f32 %v4376, %v4377
      %v4379 = vrot.slane %v4378, 1
      %v4380 = vadd.f32 %v4378, %v4379
      %v4381 = vadd.f32 %v4355, %v4359
      %v4382 = vrot.slane %v4381, 4
      %v4383 = vadd.f32 %v4381, %v4382
      %v4384 = vrot.slane %v4383, 2
      %v4385 = vadd.f32 %v4383, %v4384
      %v4386 = vrot.slane %v4385, 1
      %v4387 = vadd.f32 %v4385, %v4386
      %v4388 = vmul.f32 %v4366, %v245
      %v4389 = vmul.f32 %v4373, %v245
      %v4390 = vmul.f32 %v4380, %v245
      %v4391 = vmul.f32 %v4387, %v245
      %v4392 = vmul.f32 %v4348, %v4348
      %v4393 = vmul.f32 %v4349, %v4349
      %v4394 = vmul.f32 %v4350, %v4350
      %v4395 = vmul.f32 %v4351, %v4351
      %v4396 = vsub.f32 %v4388, %v4392
      %v4397 = vsub.f32 %v4389, %v4393
      %v4398 = vsub.f32 %v4390, %v4394
      %v4399 = vsub.f32 %v4391, %v4395
      %v4400 = vmax.f32 %v4396, 0.0
      %v4401 = vmax.f32 %v4397, 0.0
      %v4402 = vmax.f32 %v4398, 0.0
      %v4403 = vmax.f32 %v4399, 0.0
      %v4404 = vsub.f32 %v4312, %v4348
      %v4405 = vsub.f32 %v4313, %v4349
      %v4406 = vsub.f32 %v4314, %v4350
      %v4407 = vsub.f32 %v4315, %v4351
      %v4408 = vsub.f32 %v4316, %v4348
      %v4409 = vsub.f32 %v4317, %v4349
      %v4410 = vsub.f32 %v4318, %v4350
      %v4411 = vsub.f32 %v4319, %v4351
      %v4412 = vadd.f32 %v4400, 1e-05
      %v4413 = vadd.f32 %v4401, 1e-05
      %v4414 = vadd.f32 %v4402, 1e-05
      %v4415 = vadd.f32 %v4403, 1e-05
      %v4416 = vrsqrt.pop %v4412
      %v4417 = vrsqrt.pop %v4413
      %v4418 = vrsqrt.pop %v4414
      %v4419 = vrsqrt.pop %v4415
      %v4420 = vmul.f32 %v4404, %v4416
      %v4421 = vmul.f32 %v4405, %v4417
      %v4422 = vmul.f32 %v4406, %v4418
      %v4423 = vmul.f32 %v4407, %v4419
      %v4424 = vmul.f32 %v4408, %v4416
      %v4425 = vmul.f32 %v4409, %v4417
      %v4426 = vmul.f32 %v4410, %v4418
      %v4427 = vmul.f32 %v4411, %v4419
      %4428 = vset.pattern.permute.xlu0 6
      %4429 = vperm.xlu0 %4428, %v215
      %v4430 = vpop.permute.xlu0 %4429
      %4432 = vset.pattern.permute.xlu0 6
      %4433 = vperm.xlu0 %4432, %v216
      %v4434 = vpop.permute.xlu0 %4433
      %v4436 = vmul.f32 %v4420, %v4430
      %v4437 = vmul.f32 %v4421, %v4430
      %v4438 = vmul.f32 %v4422, %v4430
      %v4439 = vmul.f32 %v4423, %v4430
      %v4440 = vmul.f32 %v4424, %v4434
      %v4441 = vmul.f32 %v4425, %v4434
      %v4442 = vmul.f32 %v4426, %v4434
      %v4443 = vmul.f32 %v4427, %v4434
      %4444 = vset.pattern.permute.xlu0 7
      %4445 = vperm.xlu0 %4444, %v215
      %v4446 = vpop.permute.xlu0 %4445
      %4448 = vset.pattern.permute.xlu0 7
      %4449 = vperm.xlu0 %4448, %v216
      %v4450 = vpop.permute.xlu0 %4449
      %v4452 = vadd.f32 %v4436, %v4446
      %v4453 = vadd.f32 %v4437, %v4446
      %v4454 = vadd.f32 %v4438, %v4446
      %v4455 = vadd.f32 %v4439, %v4446
      %v4456 = vadd.f32 %v4440, %v4450
      %v4457 = vadd.f32 %v4441, %v4450
      %v4458 = vadd.f32 %v4442, %v4450
      %v4459 = vadd.f32 %v4443, %v4450
      %s4460 = scalar_lea.vmem %s2, 16
      %v4461 = vld [vmem:[%s4460] sm:$0xff]
      %v4462 = vld [vmem:[%s4460 + $0x8] sm:$0xff]
      %4463 = vset.pattern.permute.xlu0 8
      %4464 = vperm.xlu0 %4463, %v215
      %v4465 = vpop.permute.xlu0 %4464
      %4467 = vset.pattern.permute.xlu0 8
      %4468 = vperm.xlu0 %4467, %v216
      %v4469 = vpop.permute.xlu0 %4468
      %v4472 = vsel %vm366, %v4461, 0
      %v4475 = vsel %vm366, %v4462, 0
      %4477 = vmatprep.subr.mxu0 %v4453
      %4478 = vmatpush1.msra.mxu0 %v4452
      %4479 = vmatprep.subr.mxu0 %v4457
      %4480 = vmatpush1.msra.mxu0 %v4456
      %4481 = vmatprep.subr.mxu0 0.0
      %4482 = vmatpush1.msra.mxu0 0.0
      %4483 = vmatprep.subr.mxu0 0.0
      %4484 = vmatpush1.msra.mxu0 0.0
      %4485 = vmatprep.subr.mxu0 0.0
      %4486 = vmatpush1.msra.mxu0 0.0
      %4487 = vmatprep.subr.mxu0 0.0
      %4488 = vmatpush1.msra.mxu0 0.0
      %4489 = vmatprep.subr.mxu0 0.0
      %4490 = vmatpush1.msra.mxu0 0.0
      %4491 = vmatprep.subr.mxu0 0.0
      %4492 = vmatpush1.msra.mxu0 0.0
      %4493 = vmatprep.subr.mxu0 0.0
      %4494 = vmatpush1.msra.mxu0 0.0
      %4495 = vmatprep.subr.mxu0 0.0
      %4496 = vmatpush1.msra.mxu0 0.0
      %4497 = vmatprep.subr.mxu0 0.0
      %4498 = vmatpush1.msra.mxu0 0.0
      %4499 = vmatprep.subr.mxu0 0.0
      %4500 = vmatpush1.msra.mxu0 0.0
      %4501 = vmatprep.subr.mxu0 0.0
      %4502 = vmatpush1.msra.mxu0 0.0
      %4503 = vmatprep.subr.mxu0 0.0
      %4504 = vmatpush1.msra.mxu0 0.0
      %4505 = vmatprep.subr.mxu0 0.0
      %4506 = vmatpush1.msra.mxu0 0.0
      %4507 = vmatprep.subr.mxu0 0.0
      %4508 = vmatpush1.msra.mxu0 0.0
      %4509 = vmatprep.subr.mxu0 0.0
      %4510 = vmatpush1.msra.mxu0 0.0
      %4511 = vmatprep.subr.mxu0 0.0
      %4512 = vmatpush1.msra.mxu0 0.0
      %4513 = vmatprep.subr.mxu0 0.0
      %4514 = vmatpush1.msra.mxu0 0.0
      %4515 = vmatprep.subr.mxu0 0.0
      %4516 = vmatpush1.msra.mxu0 0.0
      %4517 = vmatprep.subr.mxu0 0.0
      %4518 = vmatpush1.msra.mxu0 0.0
      %4519 = vmatprep.subr.mxu0 0.0
      %4520 = vmatpush1.msra.mxu0 0.0
      %4521 = vmatprep.subr.mxu0 0.0
      %4522 = vmatpush1.msra.mxu0 0.0
      %4523 = vmatprep.subr.mxu0 0.0
      %4524 = vmatpush1.msra.mxu0 0.0
      %4525 = vmatprep.subr.mxu0 0.0
      %4526 = vmatpush1.msra.mxu0 0.0
      %4527 = vmatprep.subr.mxu0 0.0
      %4528 = vmatpush1.msra.mxu0 0.0
      %4529 = vmatprep.subr.mxu0 0.0
      %4530 = vmatpush1.msra.mxu0 0.0
      %4531 = vmatprep.subr.mxu0 0.0
      %4532 = vmatpush1.msra.mxu0 0.0
      %4533 = vmatprep.subr.mxu0 0.0
      %4534 = vmatpush1.msra.mxu0 0.0
      %4535 = vmatprep.subr.mxu0 0.0
      %4536 = vmatpush1.msra.mxu0 0.0
      %4537 = vmatprep.subr.mxu0 0.0
      %4538 = vmatpush1.msra.mxu0 0.0
      %4539 = vmatprep.subr.mxu0 0.0
      %4540 = vmatpush1.msra.mxu0 0.0
      %4541 = vmatprep.mubr.f32.mxu0 0.0
      %4542 = vmatmul.mubr.f32.gmra.mrb[0].mxu0 %v4472
      %v4543 = vpop.f32.mrb[0].mxu0
      %v4544 = vadd.f32 %v4465, %v4543
      %v4545 = vpop.f32.mrb[0].mxu0
      %v4546 = vadd.f32 %v4465, %v4545
      %4547 = vmatprep.mubr.f32.mxu0 0.0
      %4548 = vmatmul.mubr.f32.gmra.mrb[0].mxu0 %v4475
      %v4549 = vpop.f32.mrb[0].mxu0
      %v4550 = vadd.f32 %v4469, %v4549
      %v4551 = vpop.f32.mrb[0].mxu0
      %v4552 = vadd.f32 %v4469, %v4551
      %4553 = vdwg.mxu0
      %4554 = vmatprep.subr.mxu0 %v4455
      %4555 = vmatpush1.msra.mxu0 %v4454
      %4556 = vmatprep.subr.mxu0 %v4459
      %4557 = vmatpush1.msra.mxu0 %v4458
      %4558 = vmatprep.subr.mxu0 0.0
      %4559 = vmatpush1.msra.mxu0 0.0
      %4560 = vmatprep.subr.mxu0 0.0
      %4561 = vmatpush1.msra.mxu0 0.0
      %4562 = vmatprep.subr.mxu0 0.0
      %4563 = vmatpush1.msra.mxu0 0.0
      %4564 = vmatprep.subr.mxu0 0.0
      %4565 = vmatpush1.msra.mxu0 0.0
      %4566 = vmatprep.subr.mxu0 0.0
      %4567 = vmatpush1.msra.mxu0 0.0
      %4568 = vmatprep.subr.mxu0 0.0
      %4569 = vmatpush1.msra.mxu0 0.0
      %4570 = vmatprep.subr.mxu0 0.0
      %4571 = vmatpush1.msra.mxu0 0.0
      %4572 = vmatprep.subr.mxu0 0.0
      %4573 = vmatpush1.msra.mxu0 0.0
      %4574 = vmatprep.subr.mxu0 0.0
      %4575 = vmatpush1.msra.mxu0 0.0
      %4576 = vmatprep.subr.mxu0 0.0
      %4577 = vmatpush1.msra.mxu0 0.0
      %4578 = vmatprep.subr.mxu0 0.0
      %4579 = vmatpush1.msra.mxu0 0.0
      %4580 = vmatprep.subr.mxu0 0.0
      %4581 = vmatpush1.msra.mxu0 0.0
      %4582 = vmatprep.subr.mxu0 0.0
      %4583 = vmatpush1.msra.mxu0 0.0
      %4584 = vmatprep.subr.mxu0 0.0
      %4585 = vmatpush1.msra.mxu0 0.0
      %4586 = vmatprep.subr.mxu0 0.0
      %4587 = vmatpush1.msra.mxu0 0.0
      %4588 = vmatprep.subr.mxu0 0.0
      %4589 = vmatpush1.msra.mxu0 0.0
      %4590 = vmatprep.subr.mxu0 0.0
      %4591 = vmatpush1.msra.mxu0 0.0
      %4592 = vmatprep.subr.mxu0 0.0
      %4593 = vmatpush1.msra.mxu0 0.0
      %4594 = vmatprep.subr.mxu0 0.0
      %4595 = vmatpush1.msra.mxu0 0.0
      %4596 = vmatprep.subr.mxu0 0.0
      %4597 = vmatpush1.msra.mxu0 0.0
      %4598 = vmatprep.subr.mxu0 0.0
      %4599 = vmatpush1.msra.mxu0 0.0
      %4600 = vmatprep.subr.mxu0 0.0
      %4601 = vmatpush1.msra.mxu0 0.0
      %4602 = vmatprep.subr.mxu0 0.0
      %4603 = vmatpush1.msra.mxu0 0.0
      %4604 = vmatprep.subr.mxu0 0.0
      %4605 = vmatpush1.msra.mxu0 0.0
      %4606 = vmatprep.subr.mxu0 0.0
      %4607 = vmatpush1.msra.mxu0 0.0
      %4608 = vmatprep.subr.mxu0 0.0
      %4609 = vmatpush1.msra.mxu0 0.0
      %4610 = vmatprep.subr.mxu0 0.0
      %4611 = vmatpush1.msra.mxu0 0.0
      %4612 = vmatprep.subr.mxu0 0.0
      %4613 = vmatpush1.msra.mxu0 0.0
      %4614 = vmatprep.subr.mxu0 0.0
      %4615 = vmatpush1.msra.mxu0 0.0
      %4616 = vmatprep.subr.mxu0 0.0
      %4617 = vmatpush1.msra.mxu0 0.0
      %4618 = vmatprep.mubr.f32.mxu0 0.0
      %4619 = vmatmul.mubr.f32.gmra.mrb[0].mxu0 %v4472
      %v4620 = vpop.f32.mrb[0].mxu0
      %v4621 = vadd.f32 %v4465, %v4620
      %v4622 = vpop.f32.mrb[0].mxu0
      %v4623 = vadd.f32 %v4465, %v4622
      %4624 = vmatprep.mubr.f32.mxu0 0.0
      %4625 = vmatmul.mubr.f32.gmra.mrb[0].mxu0 %v4475
      %v4626 = vpop.f32.mrb[0].mxu0
      %v4627 = vadd.f32 %v4469, %v4626
      %v4628 = vpop.f32.mrb[0].mxu0
      %v4629 = vadd.f32 %v4469, %v4628
      %4630 = vdwg.mxu0
      %v4631 = vmul.f32 %v4544, 0.5
      %v4632 = vmul.f32 %v4546, 0.5
      %v4633 = vmul.f32 %v4621, 0.5
      %v4634 = vmul.f32 %v4623, 0.5
      %v4635 = vmul.f32 %v4550, 0.5
      %v4636 = vmul.f32 %v4552, 0.5
      %v4637 = vmul.f32 %v4627, 0.5
      %v4638 = vmul.f32 %v4629, 0.5
      %v4639 = vmul.f32 %v4544, 0.70710677
      %v4640 = vmul.f32 %v4546, 0.70710677
      %v4641 = vmul.f32 %v4621, 0.70710677
      %v4642 = vmul.f32 %v4623, 0.70710677
      %v4643 = vmul.f32 %v4550, 0.70710677
      %v4644 = vmul.f32 %v4552, 0.70710677
      %v4645 = vmul.f32 %v4627, 0.70710677
      %v4646 = vmul.f32 %v4629, 0.70710677
      %vm4647 = vcmp.ge.f32.partialorder %v4639, 0.0
      %vm4648 = vcmp.ge.f32.partialorder %v4640, 0.0
      %vm4649 = vcmp.ge.f32.partialorder %v4641, 0.0
      %vm4650 = vcmp.ge.f32.partialorder %v4642, 0.0
      %vm4651 = vcmp.ge.f32.partialorder %v4643, 0.0
      %vm4652 = vcmp.ge.f32.partialorder %v4644, 0.0
      %vm4653 = vcmp.ge.f32.partialorder %v4645, 0.0
      %vm4654 = vcmp.ge.f32.partialorder %v4646, 0.0
      %v4655 = vsel %vm4647, 1.0, -1.0
      %v4656 = vsel %vm4648, 1.0, -1.0
      %v4657 = vsel %vm4649, 1.0, -1.0
      %v4658 = vsel %vm4650, 1.0, -1.0
      %v4659 = vsel %vm4651, 1.0, -1.0
      %v4660 = vsel %vm4652, 1.0, -1.0
      %v4661 = vsel %vm4653, 1.0, -1.0
      %v4662 = vsel %vm4654, 1.0, -1.0
      %v4663 = vand.u32 2147483647, %v4639
      %v4664 = vand.u32 2147483647, %v4640
      %v4665 = vand.u32 2147483647, %v4641
      %v4666 = vand.u32 2147483647, %v4642
      %v4667 = vand.u32 2147483647, %v4643
      %v4668 = vand.u32 2147483647, %v4644
      %v4669 = vand.u32 2147483647, %v4645
      %v4670 = vand.u32 2147483647, %v4646
      %v4671 = vmul.f32 %v4663, 0.3275911
      %v4672 = vmul.f32 %v4664, 0.3275911
      %v4673 = vmul.f32 %v4665, 0.3275911
      %v4674 = vmul.f32 %v4666, 0.3275911
      %v4675 = vmul.f32 %v4667, 0.3275911
      %v4676 = vmul.f32 %v4668, 0.3275911
      %v4677 = vmul.f32 %v4669, 0.3275911
      %v4678 = vmul.f32 %v4670, 0.3275911
      %v4679 = vadd.f32 %v4671, 1.0
      %v4680 = vadd.f32 %v4672, 1.0
      %v4681 = vadd.f32 %v4673, 1.0
      %v4682 = vadd.f32 %v4674, 1.0
      %v4683 = vadd.f32 %v4675, 1.0
      %v4684 = vadd.f32 %v4676, 1.0
      %v4685 = vadd.f32 %v4677, 1.0
      %v4686 = vadd.f32 %v4678, 1.0
      %v4687 = vrcp.pop %v4679
      %v4688 = vmul.f32 1.0, %v4687
      %v4689 = vrcp.pop %v4680
      %v4690 = vmul.f32 1.0, %v4689
      %v4691 = vrcp.pop %v4681
      %v4692 = vmul.f32 1.0, %v4691
      %v4693 = vrcp.pop %v4682
      %v4694 = vmul.f32 1.0, %v4693
      %v4695 = vrcp.pop %v4683
      %v4696 = vmul.f32 1.0, %v4695
      %v4697 = vrcp.pop %v4684
      %v4698 = vmul.f32 1.0, %v4697
      %v4699 = vrcp.pop %v4685
      %v4700 = vmul.f32 1.0, %v4699
      %v4701 = vrcp.pop %v4686
      %v4702 = vmul.f32 1.0, %v4701
      %v4703 = vmul.f32 %v4688, 1.0614054
      %v4704 = vmul.f32 %v4690, 1.0614054
      %v4705 = vmul.f32 %v4692, 1.0614054
      %v4706 = vmul.f32 %v4694, 1.0614054
      %v4707 = vmul.f32 %v4696, 1.0614054
      %v4708 = vmul.f32 %v4698, 1.0614054
      %v4709 = vmul.f32 %v4700, 1.0614054
      %v4710 = vmul.f32 %v4702, 1.0614054
      %v4711 = vadd.f32 %v4703, -1.4531521
      %v4712 = vadd.f32 %v4704, -1.4531521
      %v4713 = vadd.f32 %v4705, -1.4531521
      %v4714 = vadd.f32 %v4706, -1.4531521
      %v4715 = vadd.f32 %v4707, -1.4531521
      %v4716 = vadd.f32 %v4708, -1.4531521
      %v4717 = vadd.f32 %v4709, -1.4531521
      %v4718 = vadd.f32 %v4710, -1.4531521
      %v4719 = vmul.f32 %v4711, %v4688
      %v4720 = vmul.f32 %v4712, %v4690
      %v4721 = vmul.f32 %v4713, %v4692
      %v4722 = vmul.f32 %v4714, %v4694
      %v4723 = vmul.f32 %v4715, %v4696
      %v4724 = vmul.f32 %v4716, %v4698
      %v4725 = vmul.f32 %v4717, %v4700
      %v4726 = vmul.f32 %v4718, %v4702
      %v4727 = vadd.f32 %v4719, 1.4214138
      %v4728 = vadd.f32 %v4720, 1.4214138
      %v4729 = vadd.f32 %v4721, 1.4214138
      %v4730 = vadd.f32 %v4722, 1.4214138
      %v4731 = vadd.f32 %v4723, 1.4214138
      %v4732 = vadd.f32 %v4724, 1.4214138
      %v4733 = vadd.f32 %v4725, 1.4214138
      %v4734 = vadd.f32 %v4726, 1.4214138
      %v4735 = vmul.f32 %v4727, %v4688
      %v4736 = vmul.f32 %v4728, %v4690
      %v4737 = vmul.f32 %v4729, %v4692
      %v4738 = vmul.f32 %v4730, %v4694
      %v4739 = vmul.f32 %v4731, %v4696
      %v4740 = vmul.f32 %v4732, %v4698
      %v4741 = vmul.f32 %v4733, %v4700
      %v4742 = vmul.f32 %v4734, %v4702
      %v4743 = vadd.f32 %v4735, -0.28449672
      %v4744 = vadd.f32 %v4736, -0.28449672
      %v4745 = vadd.f32 %v4737, -0.28449672
      %v4746 = vadd.f32 %v4738, -0.28449672
      %v4747 = vadd.f32 %v4739, -0.28449672
      %v4748 = vadd.f32 %v4740, -0.28449672
      %v4749 = vadd.f32 %v4741, -0.28449672
      %v4750 = vadd.f32 %v4742, -0.28449672
      %v4751 = vmul.f32 %v4743, %v4688
      %v4752 = vmul.f32 %v4744, %v4690
      %v4753 = vmul.f32 %v4745, %v4692
      %v4754 = vmul.f32 %v4746, %v4694
      %v4755 = vmul.f32 %v4747, %v4696
      %v4756 = vmul.f32 %v4748, %v4698
      %v4757 = vmul.f32 %v4749, %v4700
      %v4758 = vmul.f32 %v4750, %v4702
      %v4759 = vadd.f32 %v4751, 0.2548296
      %v4760 = vadd.f32 %v4752, 0.2548296
      %v4761 = vadd.f32 %v4753, 0.2548296
      %v4762 = vadd.f32 %v4754, 0.2548296
      %v4763 = vadd.f32 %v4755, 0.2548296
      %v4764 = vadd.f32 %v4756, 0.2548296
      %v4765 = vadd.f32 %v4757, 0.2548296
      %v4766 = vadd.f32 %v4758, 0.2548296
      %v4767 = vmul.f32 %v4759, %v4688
      %v4768 = vmul.f32 %v4760, %v4690
      %v4769 = vmul.f32 %v4761, %v4692
      %v4770 = vmul.f32 %v4762, %v4694
      %v4771 = vmul.f32 %v4763, %v4696
      %v4772 = vmul.f32 %v4764, %v4698
      %v4773 = vmul.f32 %v4765, %v4700
      %v4774 = vmul.f32 %v4766, %v4702
      %v4775 = vsub.f32 0.0, %v4663
      %v4776 = vsub.f32 0.0, %v4664
      %v4777 = vsub.f32 0.0, %v4665
      %v4778 = vsub.f32 0.0, %v4666
      %v4779 = vsub.f32 0.0, %v4667
      %v4780 = vsub.f32 0.0, %v4668
      %v4781 = vsub.f32 0.0, %v4669
      %v4782 = vsub.f32 0.0, %v4670
      %v4783 = vmul.f32 %v4775, %v4663
      %v4784 = vmul.f32 %v4776, %v4664
      %v4785 = vmul.f32 %v4777, %v4665
      %v4786 = vmul.f32 %v4778, %v4666
      %v4787 = vmul.f32 %v4779, %v4667
      %v4788 = vmul.f32 %v4780, %v4668
      %v4789 = vmul.f32 %v4781, %v4669
      %v4790 = vmul.f32 %v4782, %v4670
      %v4791 = vmul.f32 %v4783, 1.442695
      %v4792 = vpow.pop %v4791
      %v4793 = vmul.f32 %v4784, 1.442695
      %v4794 = vpow.pop %v4793
      %v4795 = vmul.f32 %v4785, 1.442695
      %v4796 = vpow.pop %v4795
      %v4797 = vmul.f32 %v4786, 1.442695
      %v4798 = vpow.pop %v4797
      %v4799 = vmul.f32 %v4787, 1.442695
      %v4800 = vpow.pop %v4799
      %v4801 = vmul.f32 %v4788, 1.442695
      %v4802 = vpow.pop %v4801
      %v4803 = vmul.f32 %v4789, 1.442695
      %v4804 = vpow.pop %v4803
      %v4805 = vmul.f32 %v4790, 1.442695
      %v4806 = vpow.pop %v4805
      %v4807 = vmul.f32 %v4767, %v4792
      %v4808 = vmul.f32 %v4768, %v4794
      %v4809 = vmul.f32 %v4769, %v4796
      %v4810 = vmul.f32 %v4770, %v4798
      %v4811 = vmul.f32 %v4771, %v4800
      %v4812 = vmul.f32 %v4772, %v4802
      %v4813 = vmul.f32 %v4773, %v4804
      %v4814 = vmul.f32 %v4774, %v4806
      %v4815 = vsub.f32 1.0, %v4807
      %v4816 = vsub.f32 1.0, %v4808
      %v4817 = vsub.f32 1.0, %v4809
      %v4818 = vsub.f32 1.0, %v4810
      %v4819 = vsub.f32 1.0, %v4811
      %v4820 = vsub.f32 1.0, %v4812
      %v4821 = vsub.f32 1.0, %v4813
      %v4822 = vsub.f32 1.0, %v4814
      %v4823 = vmul.f32 %v4655, %v4815
      %v4824 = vmul.f32 %v4656, %v4816
      %v4825 = vmul.f32 %v4657, %v4817
      %v4826 = vmul.f32 %v4658, %v4818
      %v4827 = vmul.f32 %v4659, %v4819
      %v4828 = vmul.f32 %v4660, %v4820
      %v4829 = vmul.f32 %v4661, %v4821
      %v4830 = vmul.f32 %v4662, %v4822
      %v4831 = vadd.f32 %v4823, 1.0
      %v4832 = vadd.f32 %v4824, 1.0
      %v4833 = vadd.f32 %v4825, 1.0
      %v4834 = vadd.f32 %v4826, 1.0
      %v4835 = vadd.f32 %v4827, 1.0
      %v4836 = vadd.f32 %v4828, 1.0
      %v4837 = vadd.f32 %v4829, 1.0
      %v4838 = vadd.f32 %v4830, 1.0
      %v4839 = vmul.f32 %v4631, %v4831
      %v4840 = vmul.f32 %v4632, %v4832
      %v4841 = vmul.f32 %v4633, %v4833
      %v4842 = vmul.f32 %v4634, %v4834
      %v4843 = vmul.f32 %v4635, %v4835
      %v4844 = vmul.f32 %v4636, %v4836
      %v4845 = vmul.f32 %v4637, %v4837
      %v4846 = vmul.f32 %v4638, %v4838
      %s4847 = scalar_lea.vmem %s2, 32
      %v4848 = vld [vmem:[%s4847] sm:$0xff]
      %v4849 = vld [vmem:[%s4847 + $0x8] sm:$0xff]
      %4850 = vset.pattern.permute.xlu0 9
      %4851 = vperm.xlu0 %4850, %v215
      %v4852 = vpop.permute.xlu0 %4851
      %4854 = vset.pattern.permute.xlu0 9
      %4855 = vperm.xlu0 %4854, %v216
      %v4856 = vpop.permute.xlu0 %4855
      %v4859 = vsel %vm366, %v4848, 0
      %v4862 = vsel %vm366, %v4849, 0
      %4864 = vmatprep.subr.mxu0 %v4840
      %4865 = vmatpush1.msra.mxu0 %v4839
      %4866 = vmatprep.subr.mxu0 %v4844
      %4867 = vmatpush1.msra.mxu0 %v4843
      %4868 = vmatprep.subr.mxu0 0.0
      %4869 = vmatpush1.msra.mxu0 0.0
      %4870 = vmatprep.subr.mxu0 0.0
      %4871 = vmatpush1.msra.mxu0 0.0
      %4872 = vmatprep.subr.mxu0 0.0
      %4873 = vmatpush1.msra.mxu0 0.0
      %4874 = vmatprep.subr.mxu0 0.0
      %4875 = vmatpush1.msra.mxu0 0.0
      %4876 = vmatprep.subr.mxu0 0.0
      %4877 = vmatpush1.msra.mxu0 0.0
      %4878 = vmatprep.subr.mxu0 0.0
      %4879 = vmatpush1.msra.mxu0 0.0
      %4880 = vmatprep.subr.mxu0 0.0
      %4881 = vmatpush1.msra.mxu0 0.0
      %4882 = vmatprep.subr.mxu0 0.0
      %4883 = vmatpush1.msra.mxu0 0.0
      %4884 = vmatprep.subr.mxu0 0.0
      %4885 = vmatpush1.msra.mxu0 0.0
      %4886 = vmatprep.subr.mxu0 0.0
      %4887 = vmatpush1.msra.mxu0 0.0
      %4888 = vmatprep.subr.mxu0 0.0
      %4889 = vmatpush1.msra.mxu0 0.0
      %4890 = vmatprep.subr.mxu0 0.0
      %4891 = vmatpush1.msra.mxu0 0.0
      %4892 = vmatprep.subr.mxu0 0.0
      %4893 = vmatpush1.msra.mxu0 0.0
      %4894 = vmatprep.subr.mxu0 0.0
      %4895 = vmatpush1.msra.mxu0 0.0
      %4896 = vmatprep.subr.mxu0 0.0
      %4897 = vmatpush1.msra.mxu0 0.0
      %4898 = vmatprep.subr.mxu0 0.0
      %4899 = vmatpush1.msra.mxu0 0.0
      %4900 = vmatprep.subr.mxu0 0.0
      %4901 = vmatpush1.msra.mxu0 0.0
      %4902 = vmatprep.subr.mxu0 0.0
      %4903 = vmatpush1.msra.mxu0 0.0
      %4904 = vmatprep.subr.mxu0 0.0
      %4905 = vmatpush1.msra.mxu0 0.0
      %4906 = vmatprep.subr.mxu0 0.0
      %4907 = vmatpush1.msra.mxu0 0.0
      %4908 = vmatprep.subr.mxu0 0.0
      %4909 = vmatpush1.msra.mxu0 0.0
      %4910 = vmatprep.subr.mxu0 0.0
      %4911 = vmatpush1.msra.mxu0 0.0
      %4912 = vmatprep.subr.mxu0 0.0
      %4913 = vmatpush1.msra.mxu0 0.0
      %4914 = vmatprep.subr.mxu0 0.0
      %4915 = vmatpush1.msra.mxu0 0.0
      %4916 = vmatprep.subr.mxu0 0.0
      %4917 = vmatpush1.msra.mxu0 0.0
      %4918 = vmatprep.subr.mxu0 0.0
      %4919 = vmatpush1.msra.mxu0 0.0
      %4920 = vmatprep.subr.mxu0 0.0
      %4921 = vmatpush1.msra.mxu0 0.0
      %4922 = vmatprep.subr.mxu0 0.0
      %4923 = vmatpush1.msra.mxu0 0.0
      %4924 = vmatprep.subr.mxu0 0.0
      %4925 = vmatpush1.msra.mxu0 0.0
      %4926 = vmatprep.subr.mxu0 0.0
      %4927 = vmatpush1.msra.mxu0 0.0
      %4928 = vmatprep.mubr.f32.mxu0 0.0
      %4929 = vmatmul.mubr.f32.gmra.mrb[0].mxu0 %v4859
      %v4930 = vpop.f32.mrb[0].mxu0
      %v4931 = vadd.f32 %v4852, %v4930
      %v4932 = vpop.f32.mrb[0].mxu0
      %v4933 = vadd.f32 %v4852, %v4932
      %4934 = vmatprep.mubr.f32.mxu0 0.0
      %4935 = vmatmul.mubr.f32.gmra.mrb[0].mxu0 %v4862
      %v4936 = vpop.f32.mrb[0].mxu0
      %v4937 = vadd.f32 %v4856, %v4936
      %v4938 = vpop.f32.mrb[0].mxu0
      %v4939 = vadd.f32 %v4856, %v4938
      %4940 = vdwg.mxu0
      %4941 = vmatprep.subr.mxu0 %v4842
      %4942 = vmatpush1.msra.mxu0 %v4841
      %4943 = vmatprep.subr.mxu0 %v4846
      %4944 = vmatpush1.msra.mxu0 %v4845
      %4945 = vmatprep.subr.mxu0 0.0
      %4946 = vmatpush1.msra.mxu0 0.0
      %4947 = vmatprep.subr.mxu0 0.0
      %4948 = vmatpush1.msra.mxu0 0.0
      %4949 = vmatprep.subr.mxu0 0.0
      %4950 = vmatpush1.msra.mxu0 0.0
      %4951 = vmatprep.subr.mxu0 0.0
      %4952 = vmatpush1.msra.mxu0 0.0
      %4953 = vmatprep.subr.mxu0 0.0
      %4954 = vmatpush1.msra.mxu0 0.0
      %4955 = vmatprep.subr.mxu0 0.0
      %4956 = vmatpush1.msra.mxu0 0.0
      %4957 = vmatprep.subr.mxu0 0.0
      %4958 = vmatpush1.msra.mxu0 0.0
      %4959 = vmatprep.subr.mxu0 0.0
      %4960 = vmatpush1.msra.mxu0 0.0
      %4961 = vmatprep.subr.mxu0 0.0
      %4962 = vmatpush1.msra.mxu0 0.0
      %4963 = vmatprep.subr.mxu0 0.0
      %4964 = vmatpush1.msra.mxu0 0.0
      %4965 = vmatprep.subr.mxu0 0.0
      %4966 = vmatpush1.msra.mxu0 0.0
      %4967 = vmatprep.subr.mxu0 0.0
      %4968 = vmatpush1.msra.mxu0 0.0
      %4969 = vmatprep.subr.mxu0 0.0
      %4970 = vmatpush1.msra.mxu0 0.0
      %4971 = vmatprep.subr.mxu0 0.0
      %4972 = vmatpush1.msra.mxu0 0.0
      %4973 = vmatprep.subr.mxu0 0.0
      %4974 = vmatpush1.msra.mxu0 0.0
      %4975 = vmatprep.subr.mxu0 0.0
      %4976 = vmatpush1.msra.mxu0 0.0
      %4977 = vmatprep.subr.mxu0 0.0
      %4978 = vmatpush1.msra.mxu0 0.0
      %4979 = vmatprep.subr.mxu0 0.0
      %4980 = vmatpush1.msra.mxu0 0.0
      %4981 = vmatprep.subr.mxu0 0.0
      %4982 = vmatpush1.msra.mxu0 0.0
      %4983 = vmatprep.subr.mxu0 0.0
      %4984 = vmatpush1.msra.mxu0 0.0
      %4985 = vmatprep.subr.mxu0 0.0
      %4986 = vmatpush1.msra.mxu0 0.0
      %4987 = vmatprep.subr.mxu0 0.0
      %4988 = vmatpush1.msra.mxu0 0.0
      %4989 = vmatprep.subr.mxu0 0.0
      %4990 = vmatpush1.msra.mxu0 0.0
      %4991 = vmatprep.subr.mxu0 0.0
      %4992 = vmatpush1.msra.mxu0 0.0
      %4993 = vmatprep.subr.mxu0 0.0
      %4994 = vmatpush1.msra.mxu0 0.0
      %4995 = vmatprep.subr.mxu0 0.0
      %4996 = vmatpush1.msra.mxu0 0.0
      %4997 = vmatprep.subr.mxu0 0.0
      %4998 = vmatpush1.msra.mxu0 0.0
      %4999 = vmatprep.subr.mxu0 0.0
      %5000 = vmatpush1.msra.mxu0 0.0
      %5001 = vmatprep.subr.mxu0 0.0
      %5002 = vmatpush1.msra.mxu0 0.0
      %5003 = vmatprep.subr.mxu0 0.0
      %5004 = vmatpush1.msra.mxu0 0.0
      %5005 = vmatprep.mubr.f32.mxu0 0.0
      %5006 = vmatmul.mubr.f32.gmra.mrb[0].mxu0 %v4859
      %v5007 = vpop.f32.mrb[0].mxu0
      %v5008 = vadd.f32 %v4852, %v5007
      %v5009 = vpop.f32.mrb[0].mxu0
      %v5010 = vadd.f32 %v4852, %v5009
      %5011 = vmatprep.mubr.f32.mxu0 0.0
      %5012 = vmatmul.mubr.f32.gmra.mrb[0].mxu0 %v4862
      %v5013 = vpop.f32.mrb[0].mxu0
      %v5014 = vadd.f32 %v4856, %v5013
      %v5015 = vpop.f32.mrb[0].mxu0
      %v5016 = vadd.f32 %v4856, %v5015
      %5017 = vdwg.mxu0
      %v5018 = vadd.f32 %v4931, %v4312
      %v5019 = vadd.f32 %v4933, %v4313
      %v5020 = vadd.f32 %v5008, %v4314
      %v5021 = vadd.f32 %v5010, %v4315
      %v5022 = vadd.f32 %v4937, %v4316
      %v5023 = vadd.f32 %v4939, %v4317
      %v5024 = vadd.f32 %v5014, %v4318
      %v5025 = vadd.f32 %v5016, %v4319
      %5026 = vst [vmem:[%s204] sm:$0xff] %v5018
      %5027 = vst [vmem:[%s204 + $0x8] sm:$0xff] %v5019
      %5028 = vst [vmem:[%s204 + $0x10] sm:$0xff] %v5022
      %5029 = vst [vmem:[%s204 + $0x18] sm:$0xff] %v5023
      %s5030 = scalar_lea.vmem %s204, 32
      %5031 = vst [vmem:[%s5030] sm:$0xff] %v5020
      %5032 = vst [vmem:[%s5030 + $0x8] sm:$0xff] %v5021
      %5033 = vst [vmem:[%s5030 + $0x10] sm:$0xff] %v5024
      %5034 = vst [vmem:[%s5030 + $0x18] sm:$0xff] %v5025
      %s5035 = smul.u32 2, %s15
      %p5036 = scmp.lt.s32.totalorder %s5035, 3
      %s5037 = scalar_select %p5036, %s5035, 3
      %s5038 = smul.addr %s5037, 4
      %s5039 = smul.addr %s5038, 8
      %s5040 = scalar_lea.vmem %s4, %s5039
      // Predicated region
      $region37: #{self_attention_forward.1} parent=35 // pred_check
        %p5041 = pneg %p122
      $region38: #{self_attention_forward.1} parent=35 // pred_check_branch
        %5043 = sbr.rel (%p5041) target = $region40
      $region39: #{self_attention_forward.1} parent=35 // pred_region
        %s5044 = smul.u32 2, %s15
      $region40: #{self_attention_forward.1} parent=35 // pred_fallthru
        _
    $region36: #{self_attention_forward.1} parent=5 // pred_fallthru
      _
    %p5045 = scmp.le.s32.totalorder 2, %s10
    // Predicated region
    $region41: #{self_attention_forward.1} parent=5 // pred_check
      %p5046 = pneg %p5045
    $region42: #{self_attention_forward.1} parent=5 // pred_check_branch
      %5048 = sbr.rel (%p5046) target = $region44
    $region43: #{self_attention_forward.1} parent=5 // pred_region
      %s5049 = ssub.s32 %s10, 2
      // Predicated region
      $region45: #{self_attention_forward.1} parent=43 // pred_check
        %p5050 = pneg %p128
      $region46: #{self_attention_forward.1} parent=43 // pred_check_branch
        %5052 = sbr.rel (%p5050) target = $region48
      $region47: #{self_attention_forward.1} parent=43 // pred_region
        %s5053 = smul.u32 2, %s16
        %p5054 = scmp.lt.s32.totalorder %s5053, 3
        %s5055 = scalar_select %p5054, %s5053, 3
        %s5056 = smul.addr %s5055, 4
        %s5057 = smul.addr %s5056, 8
        %s5058 = scalar_lea.vmem %s4, %s5057
      $region48: #{self_attention_forward.1} parent=43 // pred_fallthru
        _
    $region44: #{self_attention_forward.1} parent=5 // pred_fallthru
      _
  $region6: #{self_attention_forward.1} parent=0 // loop_footer
    %s14 = sadd.s32 1, %s10
  $region7: #{self_attention_forward.1} parent=0 // loop_footer_branch
    %9 = sbr.rel target = $region3
  $region8: #{self_attention_forward.1} parent=0 // loop_exit
    _

</llo_original>
